<compile_context>
chip_gen: v6e
topology: v6e:2x2x1
jax: 0.10.0
libtpu: 0.0.40
codegen_flags: <defaults>
</compile_context>

<pallas_src>
import functools

import jax
import jax.numpy as jnp
from jax.experimental import pallas as pl
from jax.experimental.pallas import tpu as pltpu

LN_EPS = 1e-12   # DistilBERT LayerNorm eps
LANES = 128      # TPU lane width


# ----------------------------- in-kernel helpers -----------------------------

def _layernorm(x, gamma, beta):
    mean = jnp.mean(x, axis=-1, keepdims=True)
    var = jnp.mean(jnp.square(x - mean), axis=-1, keepdims=True)
    return (x - mean) * jax.lax.rsqrt(var + LN_EPS) * gamma + beta


def _erf_approx(x):
    # Abramowitz & Stegun 7.1.26 rational approximation (max abs err ~1.5e-7).
    # The divide is done with pl.reciprocal so it rides the EUP slot (idle
    # alongside the exp) instead of the VALU divide path.
    a1, a2, a3, a4, a5 = 0.254829592, -0.284496736, 1.421413741, -1.453152027, 1.061405429
    p = 0.3275911
    ax = jnp.abs(x)
    t = pl.reciprocal(1.0 + p * ax, approx=True)
    poly = ((((a5 * t + a4) * t + a3) * t + a2) * t + a1) * t
    y = 1.0 - poly * jnp.exp(-ax * ax)
    return jnp.where(x >= 0, y, -y)


def _gelu_exact(x):
    # HF "gelu" is the erf-based GELU.
    return 0.5 * x * (1.0 + _erf_approx(x * 0.7071067811865475))


# ------------------------------ fused kernel ----------------------------------
# Grid axis 0 = layer index ("arbitrary"); hidden state h is carried in VMEM
# scratch (h_ref) across grid steps.  Packed vector slabs:
#   gvec rows: 0 emb_ln_g, 1 emb_ln_b, 2 pre_classifier bias
#   lvec rows: 0 q_b, 1 k_b, 2 v_b, 3 o_b, 4 sa_ln_g, 5 sa_ln_b,
#              6 ffn_b2, 7 out_ln_g, 8 out_ln_b

def fused_forward_kernel(n_heads, B, S, compute_dtype,
                         x_ref, pos_ref, gvec_ref,
                         qkvw_ref, ow_ref, w1_ref, b1_ref, w2_ref, lvec_ref,
                         pw_ref, cw_ref, cb_ref,
                         o_ref, h_ref):
    layer = pl.program_id(0)
    D = x_ref.shape[-1]
    BS = B * S
    hd = D // n_heads
    scale = 1.0 / (hd ** 0.5)

    # --- first grid step: add position embeddings + LayerNorm (dropout = id).
    @pl.when(layer == 0)
    def _():
        x = x_ref[...] + pos_ref[...]                           # (B,S,D)+(S,D)
        h_ref[...] = _layernorm(x.reshape(BS, D), gvec_ref[0:1], gvec_ref[1:2])

    # --- one transformer block per grid step ---------------------------------
    h = h_ref[...]                                              # (B*S, D) f32
    hm = h.astype(compute_dtype)

    # Fused QKV projection: one wide-N matmul instead of three; scale hoisted.
    qkv = jnp.dot(hm, qkvw_ref[...], preferred_element_type=jnp.float32)  # (BS,3D)
    q = (qkv[:, 0:D] + lvec_ref[0:1]) * scale
    k = qkv[:, D:2 * D] + lvec_ref[1:2]
    v = qkv[:, 2 * D:3 * D] + lvec_ref[2:3]

    # Multi-head attention.  Head slices are already 128/NH-lane-aligned chunks;
    # the per-head contexts are lane-concatenated and pushed through a SINGLE
    # K=D output projection (instead of NH accumulated K=hd matmuls).
    # TODO(synk): head-batched 4-D einsum ('bqhd,bkhd->bhqk') would shrink the
    # unrolled program further but needs a (B,S,NH,hd)->(B,NH,S,hd) transpose
    # whose Mosaic lowering is not guaranteed at these tiny minor dims.
    ctxs = []
    for head in range(n_heads):
        sl = slice(head * hd, (head + 1) * hd)
        qh = q[:, sl].reshape(B, S, hd).astype(compute_dtype)
        kh = k[:, sl].reshape(B, S, hd).astype(compute_dtype)
        vh = v[:, sl].reshape(B, S, hd)
        s = jnp.einsum('bqd,bkd->bqk', qh, kh,
                       preferred_element_type=jnp.float32)      # (B, S, S)
        s = s - jnp.max(s, axis=-1, keepdims=True)
        p = jnp.exp(s)
        p = p * pl.reciprocal(jnp.sum(p, axis=-1, keepdims=True), approx=True)
        ctx = jnp.einsum('bqk,bkd->bqd', p.astype(compute_dtype),
                         vh.astype(compute_dtype),
                         preferred_element_type=jnp.float32)    # (B, S, hd)
        ctxs.append(ctx.reshape(BS, hd))
    ctx_full = jnp.concatenate(ctxs, axis=-1)                   # (BS, D)
    attn = jnp.dot(ctx_full.astype(compute_dtype), ow_ref[...],
                   preferred_element_type=jnp.float32) + lvec_ref[3:4]

    sa = _layernorm(attn + h, lvec_ref[4:5], lvec_ref[5:6])

    f = jnp.dot(sa.astype(compute_dtype), w1_ref[...],
                preferred_element_type=jnp.float32) + b1_ref[...]
    f = _gelu_exact(f)
    f = jnp.dot(f.astype(compute_dtype), w2_ref[...],
                preferred_element_type=jnp.float32) + lvec_ref[6:7]
    h_new = _layernorm(f + sa, lvec_ref[7:8], lvec_ref[8:9])
    h_ref[...] = h_new

    # --- last grid step: gather [CLS] rows, classifier head, lane-dense store.
    @pl.when(layer == pl.num_programs(0) - 1)
    def _():
        cls = h_new.reshape(B, S, D)[:, 0, :]                   # (B, D)
        pooled = jnp.dot(cls.astype(compute_dtype), pw_ref[...],
                         preferred_element_type=jnp.float32) + gvec_ref[2:3]
        pooled = jnp.maximum(pooled, 0.0)                       # ReLU
        o_ref[...] = jnp.dot(pooled.astype(compute_dtype), cw_ref[...],
                             preferred_element_type=jnp.float32) + cb_ref[...]


# --------------------------------- wrapper ------------------------------------

def my_classifier_embed_transformer(embedding, params, *,
                                    compute_dtype=jnp.float32,
                                    vmem_limit_bytes=None):
    """Equivalent of MyClassifierEmbedTransformer.forward(embedding) -> logits.

    compute_dtype: dtype of MXU operands (accumulation stays f32).  Use
    jnp.bfloat16 on v6e/v7x at production dims; f32 here for strict parity.
    """
    B, S, D = embedding.shape
    n_heads = params["n_heads"]
    layers = params["layers"]
    n_layers = len(layers)
    H = layers[0]["ffn_w1"].shape[1]
    num_labels = params["clf_w"].shape[1]
    out_cols = ((num_labels + LANES - 1) // LANES) * LANES
    wdt = compute_dtype

    # Fused QKV weights (one wide-N matmul per layer) + per-layer packed slabs.
    qkv_w = jnp.stack([jnp.concatenate([lp["q_w"], lp["k_w"], lp["v_w"]], axis=1)
                       for lp in layers]).astype(wdt)            # (NL, D, 3D)
    o_w = jnp.stack([lp["o_w"] for lp in layers]).astype(wdt)    # (NL, D, D)
    w1 = jnp.stack([lp["ffn_w1"] for lp in layers]).astype(wdt)  # (NL, D, H)
    b1 = jnp.stack([lp["ffn_b1"] for lp in layers])              # (NL, 1, H)
    w2 = jnp.stack([lp["ffn_w2"] for lp in layers]).astype(wdt)  # (NL, H, D)
    lvec = jnp.stack([jnp.concatenate(
        [lp["q_b"], lp["k_b"], lp["v_b"], lp["o_b"],
         lp["sa_ln_g"], lp["sa_ln_b"], lp["ffn_b2"],
         lp["out_ln_g"], lp["out_ln_b"]], axis=0)
        for lp in layers])                                       # (NL, 9, D)
    gvec = jnp.concatenate([params["emb_ln_g"], params["emb_ln_b"],
                            params["pre_b"]], axis=0)            # (3, D)
    pre_w = params["pre_w"].astype(wdt)
    # Zero-pad the classifier to a lane-dense slab; real labels sliced after.
    clf_w = jnp.pad(params["clf_w"],
                    ((0, 0), (0, out_cols - num_labels))).astype(wdt)
    clf_b = jnp.pad(params["clf_b"], ((0, 0), (0, out_cols - num_labels)))

    # Generation-aware VMEM budget (leave headroom below the physical ceiling:
    # ~48 MiB on v7x (64 MiB physical), up to ~96 MiB on v5e/v6e (128 MiB)).
    if vmem_limit_bytes is None:
        try:
            cap = pltpu.get_tpu_info().vmem_capacity_bytes
        except Exception:
            cap = 64 * 1024 * 1024
        vmem_limit_bytes = min(int(cap * 3 // 4), 96 * 1024 * 1024)

    kernel = functools.partial(fused_forward_kernel, n_heads, B, S, compute_dtype)

    # grid=(n_layers,): per-layer weight blocks are double-buffered by Pallas so
    # layer l+1 weight DMA overlaps layer l compute; everything else is resident.
    # TODO(synk): at production B*S add a 'parallel' batch/sequence grid axis so
    # both v7x TensorCores get work; at B*S=16 the extra step overhead loses.
    grid_spec = pltpu.PrefetchScalarGridSpec(
        num_scalar_prefetch=0,
        grid=(n_layers,),
        in_specs=[
            pl.BlockSpec((B, S, D), lambda l: (0, 0, 0)),          # embeddings
            pl.BlockSpec((S, D), lambda l: (0, 0)),                # pos_emb
            pl.BlockSpec((3, D), lambda l: (0, 0)),                # gvec pack
            pl.BlockSpec((None, D, 3 * D), lambda l: (l, 0, 0)),   # fused QKV w
            pl.BlockSpec((None, D, D), lambda l: (l, 0, 0)),       # out-proj w
            pl.BlockSpec((None, D, H), lambda l: (l, 0, 0)),       # ffn w1
            pl.BlockSpec((None, 1, H), lambda l: (l, 0, 0)),       # ffn b1
            pl.BlockSpec((None, H, D), lambda l: (l, 0, 0)),       # ffn w2
            pl.BlockSpec((None, 9, D), lambda l: (l, 0, 0)),       # lvec pack
            pl.BlockSpec((D, D), lambda l: (0, 0)),                # pre_classifier w
            pl.BlockSpec((D, out_cols), lambda l: (0, 0)),         # classifier w
            pl.BlockSpec((1, out_cols), lambda l: (0, 0)),         # classifier b
        ],
        out_specs=pl.BlockSpec((B, out_cols), lambda l: (0, 0)),
        scratch_shapes=[pltpu.VMEM((B * S, D), jnp.float32)],      # carried h
    )

    logits_pad = pl.pallas_call(
        kernel,
        out_shape=jax.ShapeDtypeStruct((B, out_cols), jnp.float32),
        grid_spec=grid_spec,
        compiler_params=pltpu.CompilerParams(
            dimension_semantics=("arbitrary",),
            vmem_limit_bytes=vmem_limit_bytes),
    )(embedding, params["pos_emb"], gvec,
      qkv_w, o_w, w1, b1, w2, lvec,
      pre_w, clf_w, clf_b)

    # Real label columns ([CLS] pooling already done in-kernel).
    return logits_pad[:, :num_labels]


# ----------------------------- params & reference ------------------------------

def init_params(key, *, seq_len, dim, hidden_dim, n_heads, n_layers, num_labels):
    keys = iter(jax.random.split(key, 128))

    def rnd(shape, scale=0.02):
        return (scale * jax.random.normal(next(keys), shape)).astype(jnp.float32)

    params = {
        "n_heads": n_heads,
        "pos_emb": rnd((seq_len, dim)),
        "emb_ln_g": jnp.ones((1, dim), jnp.float32),
        "emb_ln_b": jnp.zeros((1, dim), jnp.float32),
        "pre_w": rnd((dim, dim)), "pre_b": rnd((1, dim)),
        "clf_w": rnd((dim, num_labels)), "clf_b": rnd((1, num_labels)),
        "layers": [],
    }
    for _ in range(n_layers):
        params["layers"].append({
            "q_w": rnd((dim, dim)), "q_b": rnd((1, dim)),
            "k_w": rnd((dim, dim)), "k_b": rnd((1, dim)),
            "v_w": rnd((dim, dim)), "v_b": rnd((1, dim)),
            "o_w": rnd((dim, dim)), "o_b": rnd((1, dim)),
            "sa_ln_g": jnp.ones((1, dim), jnp.float32),
            "sa_ln_b": jnp.zeros((1, dim), jnp.float32),
            "ffn_w1": rnd((dim, hidden_dim)), "ffn_b1": rnd((1, hidden_dim)),
            "ffn_w2": rnd((hidden_dim, dim)), "ffn_b2": rnd((1, dim)),
            "out_ln_g": jnp.ones((1, dim), jnp.float32),
            "out_ln_b": jnp.zeros((1, dim), jnp.float32),
        })
    return params


def reference_forward(embedding, params):
    """Pure-JAX reference mirroring DistilBertForSequenceClassification (eval)."""
    with jax.default_matmul_precision("highest"):
        nh = params["n_heads"]
        h = _layernorm(embedding + params["pos_emb"][None],
                       params["emb_ln_g"], params["emb_ln_b"])
        B, S, D = h.shape
        hd = D // nh
        scale = 1.0 / (hd ** 0.5)
        for lp in params["layers"]:
            q = (h @ lp["q_w"] + lp["q_b"]) * scale
            k = h @ lp["k_w"] + lp["k_b"]
            v = h @ lp["v_w"] + lp["v_b"]
            q = q.reshape(B, S, nh, hd)
            k = k.reshape(B, S, nh, hd)
            v = v.reshape(B, S, nh, hd)
            scores = jnp.einsum("bqhd,bkhd->bhqk", q, k)
            scores = scores - scores.max(-1, keepdims=True)
            p = jnp.exp(scores)
            p = p / p.sum(-1, keepdims=True)
            ctx = jnp.einsum("bhqk,bkhd->bqhd", p, v).reshape(B, S, D)
            attn = ctx @ lp["o_w"] + lp["o_b"]
            sa = _layernorm(attn + h, lp["sa_ln_g"], lp["sa_ln_b"])
            f = jax.nn.gelu(sa @ lp["ffn_w1"] + lp["ffn_b1"], approximate=False)
            f = f @ lp["ffn_w2"] + lp["ffn_b2"]
            h = _layernorm(f + sa, lp["out_ln_g"], lp["out_ln_b"])
        pooled = jnp.maximum(h[:, 0] @ params["pre_w"] + params["pre_b"], 0.0)
        return pooled @ params["clf_w"] + params["clf_b"]


# ------------------------------------ main -------------------------------------

if __name__ == "__main__":
    # Small shapes consistent with the module (n_layers=2, n_heads=4, num_labels=2);
    # model dim scaled down from 768 -> 128, ffn hidden 3072 -> 256 for a quick run.
    B, S, D, H, NH, NL, NUM_LABELS = 2, 8, 128, 256, 4, 2, 2

    key = jax.random.PRNGKey(0)
    k_emb, k_par = jax.random.split(key)
    embedding = jax.random.normal(k_emb, (B, S, D), dtype=jnp.float32)
    params = init_params(k_par, seq_len=S, dim=D, hidden_dim=H,
                         n_heads=NH, n_layers=NL, num_labels=NUM_LABELS)

    logits = my_classifier_embed_transformer(embedding, params)
    logits = jax.block_until_ready(logits)

    ref = reference_forward(embedding, params)
    assert logits.shape == (B, NUM_LABELS), logits.shape
    # Tolerance covers the A&S erf approximation and the approximate (EUP)
    # reciprocals versus the 'highest'-precision pure-JAX reference.
    assert jnp.allclose(logits, ref, atol=3e-3, rtol=3e-3), (logits, ref)

    # TODO(synk): dropout layers are eval-mode identities (no RNG dropout modeled).
    print("KERNEL_OK")
</pallas_src>

<mosaic_0001>
module attributes {stable_mosaic.version = 11 : i64} {
  func.func @fused_forward_kernel(%arg0: i32, %arg1: memref<2x8x128xf32, #tpu.memory_space<vmem>>, %arg2: memref<8x128xf32, #tpu.memory_space<vmem>>, %arg3: memref<3x128xf32, #tpu.memory_space<vmem>>, %arg4: memref<1x128x384xf32, #tpu.memory_space<vmem>>, %arg5: memref<1x128x128xf32, #tpu.memory_space<vmem>>, %arg6: memref<1x128x256xf32, #tpu.memory_space<vmem>>, %arg7: memref<1x1x256xf32, #tpu.memory_space<vmem>>, %arg8: memref<1x256x128xf32, #tpu.memory_space<vmem>>, %arg9: memref<1x9x128xf32, #tpu.memory_space<vmem>>, %arg10: memref<128x128xf32, #tpu.memory_space<vmem>>, %arg11: memref<128x128xf32, #tpu.memory_space<vmem>>, %arg12: memref<1x128xf32, #tpu.memory_space<vmem>>, %arg13: memref<2x128xf32, #tpu.memory_space<vmem>>, %arg14: memref<16x128xf32, #tpu.memory_space<vmem>>) attributes {dimension_semantics = [#tpu.dimension_semantics<arbitrary>], iteration_bounds = array<i64: 2>, scalar_prefetch = 0 : i64, scratch_operands = 1 : i64, tpu.core_type = #tpu.core_type<tc>, window_params = [{pipeline_mode = #tpu.pipeline_mode<synchronous>, transform_indices = @transform_0, window_bounds = array<i64: 2, 8, 128>}, {pipeline_mode = #tpu.pipeline_mode<synchronous>, transform_indices = @transform_1, window_bounds = array<i64: 8, 128>}, {pipeline_mode = #tpu.pipeline_mode<synchronous>, transform_indices = @transform_2, window_bounds = array<i64: 3, 128>}, {transform_indices = @transform_3, window_bounds = array<i64: 1, 128, 384>}, {transform_indices = @transform_4, window_bounds = array<i64: 1, 128, 128>}, {transform_indices = @transform_5, window_bounds = array<i64: 1, 128, 256>}, {transform_indices = @transform_6, window_bounds = array<i64: 1, 1, 256>}, {transform_indices = @transform_7, window_bounds = array<i64: 1, 256, 128>}, {transform_indices = @transform_8, window_bounds = array<i64: 1, 9, 128>}, {pipeline_mode = #tpu.pipeline_mode<synchronous>, transform_indices = @transform_9, window_bounds = array<i64: 128, 128>}, {pipeline_mode = #tpu.pipeline_mode<synchronous>, transform_indices = @transform_10, window_bounds = array<i64: 128, 128>}, {pipeline_mode = #tpu.pipeline_mode<synchronous>, transform_indices = @transform_11, window_bounds = array<i64: 1, 128>}, {pipeline_mode = #tpu.pipeline_mode<synchronous>, transform_indices = @transform_12, window_bounds = array<i64: 2, 128>}]} {
    %c0_i32 = arith.constant 0 : i32
    %0 = arith.cmpi eq, %arg0, %c0_i32 : i32
    %1 = arith.extui %0 : i1 to i32
    %c0_i32_0 = arith.constant 0 : i32
    %2 = arith.cmpi ne, %1, %c0_i32_0 : i32
    scf.if %2 {
      %c0_83 = arith.constant 0 : index
      %c0_84 = arith.constant 0 : index
      %c0_85 = arith.constant 0 : index
      %219 = vector.load %arg1[%c0_83, %c0_84, %c0_85] : memref<2x8x128xf32, #tpu.memory_space<vmem>>, vector<2x8x128xf32>
      %c0_86 = arith.constant 0 : index
      %c0_87 = arith.constant 0 : index
      %220 = vector.load %arg2[%c0_86, %c0_87] : memref<8x128xf32, #tpu.memory_space<vmem>>, vector<8x128xf32>
      %221 = vector.shape_cast %220 : vector<8x128xf32> to vector<1x8x128xf32>
      %222 = vector.broadcast %221 : vector<1x8x128xf32> to vector<2x8x128xf32>
      %223 = arith.addf %219, %222 : vector<2x8x128xf32>
      %224 = vector.shape_cast %223 : vector<2x8x128xf32> to vector<16x128xf32>
      %c0_88 = arith.constant 0 : index
      %c0_89 = arith.constant 0 : index
      %225 = vector.load %arg3[%c0_88, %c0_89] : memref<3x128xf32, #tpu.memory_space<vmem>>, vector<1x128xf32>
      %c1_90 = arith.constant 1 : index
      %c0_91 = arith.constant 0 : index
      %226 = vector.load %arg3[%c1_90, %c0_91] : memref<3x128xf32, #tpu.memory_space<vmem>>, vector<1x128xf32>
      %cst_92 = arith.constant dense<0.000000e+00> : vector<16xf32>
      %227 = vector.multi_reduction <add>, %224, %cst_92 [1] : vector<16x128xf32> to vector<16xf32>
      %228 = vector.shape_cast %227 : vector<16xf32> to vector<16x1xf32>
      %cst_93 = arith.constant 1.280000e+02 : f32
      %229 = vector.broadcast %cst_93 : f32 to vector<16x1xf32>
      %230 = arith.divf %228, %229 : vector<16x1xf32>
      %231 = vector.broadcast %230 : vector<16x1xf32> to vector<16x128xf32>
      %232 = arith.subf %224, %231 : vector<16x128xf32>
      %233 = arith.mulf %232, %232 : vector<16x128xf32>
      %cst_94 = arith.constant dense<0.000000e+00> : vector<16xf32>
      %234 = vector.multi_reduction <add>, %233, %cst_94 [1] : vector<16x128xf32> to vector<16xf32>
      %235 = vector.shape_cast %234 : vector<16xf32> to vector<16x1xf32>
      %cst_95 = arith.constant 1.280000e+02 : f32
      %236 = vector.broadcast %cst_95 : f32 to vector<16x1xf32>
      %237 = arith.divf %235, %236 : vector<16x1xf32>
      %238 = vector.broadcast %230 : vector<16x1xf32> to vector<16x128xf32>
      %239 = arith.subf %224, %238 : vector<16x128xf32>
      %cst_96 = arith.constant 9.99999996E-13 : f32
      %240 = vector.broadcast %cst_96 : f32 to vector<16x1xf32>
      %241 = arith.addf %237, %240 : vector<16x1xf32>
      %242 = math.rsqrt %241 : vector<16x1xf32>
      %243 = vector.broadcast %242 : vector<16x1xf32> to vector<16x128xf32>
      %244 = arith.mulf %239, %243 : vector<16x128xf32>
      %245 = vector.broadcast %225 : vector<1x128xf32> to vector<16x128xf32>
      %246 = arith.mulf %244, %245 : vector<16x128xf32>
      %247 = vector.broadcast %226 : vector<1x128xf32> to vector<16x128xf32>
      %248 = arith.addf %246, %247 : vector<16x128xf32>
      %c0_97 = arith.constant 0 : index
      %c0_98 = arith.constant 0 : index
      %249 = vector.load %arg14[%c0_97, %c0_98] : memref<16x128xf32, #tpu.memory_space<vmem>>, vector<16x128xf32>
      tpu.vector_store %arg14[%c0_97, %c0_98], %248 {strides = array<i32>} : memref<16x128xf32, #tpu.memory_space<vmem>>, vector<16x128xf32>,
    } else {
    }
    %c0 = arith.constant 0 : index
    %c0_1 = arith.constant 0 : index
    %3 = vector.load %arg14[%c0, %c0_1] : memref<16x128xf32, #tpu.memory_space<vmem>>, vector<16x128xf32>
    %c0_2 = arith.constant 0 : index
    %c0_3 = arith.constant 0 : index
    %c0_4 = arith.constant 0 : index
    %4 = vector.load %arg4[%c0_2, %c0_3, %c0_4] : memref<1x128x384xf32, #tpu.memory_space<vmem>>, vector<1x128x384xf32>
    %5 = vector.shape_cast %4 : vector<1x128x384xf32> to vector<128x384xf32>
    %cst = arith.constant dense<0.000000e+00> : vector<16x384xf32>
    %6 = tpu.matmul %3, %5, %cst {dimension_numbers = #tpu.dot_dimension_numbers<[1], [0], [0], [1], [0, 0, 1, 1], [], []>} : vector<16x128xf32>, vector<128x384xf32>, vector<16x384xf32> -> vector<16x384xf32>
    %7 = vector.extract_strided_slice %6 {offsets = [0, 0], sizes = [16, 128], strides = [1, 1]} : vector<16x384xf32> to vector<16x128xf32>
    %c0_5 = arith.constant 0 : index
    %c0_6 = arith.constant 0 : index
    %c0_7 = arith.constant 0 : index
    %8 = vector.load %arg9[%c0_5, %c0_6, %c0_7] : memref<1x9x128xf32, #tpu.memory_space<vmem>>, vector<1x1x128xf32>
    %9 = vector.shape_cast %8 : vector<1x1x128xf32> to vector<1x128xf32>
    %10 = vector.broadcast %9 : vector<1x128xf32> to vector<16x128xf32>
    %11 = arith.addf %7, %10 : vector<16x128xf32>
    %cst_8 = arith.constant 0.176776692 : f32
    %12 = vector.broadcast %cst_8 : f32 to vector<16x128xf32>
    %13 = arith.mulf %11, %12 : vector<16x128xf32>
    %14 = vector.extract_strided_slice %6 {offsets = [0, 128], sizes = [16, 128], strides = [1, 1]} : vector<16x384xf32> to vector<16x128xf32>
    %c0_9 = arith.constant 0 : index
    %c1 = arith.constant 1 : index
    %c0_10 = arith.constant 0 : index
    %15 = vector.load %arg9[%c0_9, %c1, %c0_10] : memref<1x9x128xf32, #tpu.memory_space<vmem>>, vector<1x1x128xf32>
    %16 = vector.shape_cast %15 : vector<1x1x128xf32> to vector<1x128xf32>
    %17 = vector.broadcast %16 : vector<1x128xf32> to vector<16x128xf32>
    %18 = arith.addf %14, %17 : vector<16x128xf32>
    %19 = vector.extract_strided_slice %6 {offsets = [0, 256], sizes = [16, 128], strides = [1, 1]} : vector<16x384xf32> to vector<16x128xf32>
    %c0_11 = arith.constant 0 : index
    %c2 = arith.constant 2 : index
    %c0_12 = arith.constant 0 : index
    %20 = vector.load %arg9[%c0_11, %c2, %c0_12] : memref<1x9x128xf32, #tpu.memory_space<vmem>>, vector<1x1x128xf32>
    %21 = vector.shape_cast %20 : vector<1x1x128xf32> to vector<1x128xf32>
    %22 = vector.broadcast %21 : vector<1x128xf32> to vector<16x128xf32>
    %23 = arith.addf %19, %22 : vector<16x128xf32>
    %24 = vector.extract_strided_slice %13 {offsets = [0, 0], sizes = [16, 32], strides = [1, 1]} : vector<16x128xf32> to vector<16x32xf32>
    %25 = vector.shape_cast %24 : vector<16x32xf32> to vector<2x8x32xf32>
    %26 = vector.extract_strided_slice %18 {offsets = [0, 0], sizes = [16, 32], strides = [1, 1]} : vector<16x128xf32> to vector<16x32xf32>
    %27 = vector.shape_cast %26 : vector<16x32xf32> to vector<2x8x32xf32>
    %28 = vector.extract_strided_slice %23 {offsets = [0, 0], sizes = [16, 32], strides = [1, 1]} : vector<16x128xf32> to vector<16x32xf32>
    %29 = vector.shape_cast %28 : vector<16x32xf32> to vector<2x8x32xf32>
    "tpu.trace_start"() <{level = 10 : i32, message = "bqd,bkd->bqk"}> : () -> ()
    %cst_13 = arith.constant dense<0.000000e+00> : vector<2x8x8xf32>
    %30 = tpu.matmul %25, %27, %cst_13 {dimension_numbers = #tpu.dot_dimension_numbers<[2], [2], [1], [1], [0, 0, 0, 1, 1, 1], [0], [0]>} : vector<2x8x32xf32>, vector<2x8x32xf32>, vector<2x8x8xf32> -> vector<2x8x8xf32>
    "tpu.trace_stop"() : () -> ()
    %cst_14 = arith.constant dense<0xFF800000> : vector<2x8xf32>
    %31 = vector.multi_reduction <maximumf>, %30, %cst_14 [2] : vector<2x8x8xf32> to vector<2x8xf32>
    %32 = vector.shape_cast %31 : vector<2x8xf32> to vector<2x8x1xf32>
    %33 = vector.broadcast %32 : vector<2x8x1xf32> to vector<2x8x8xf32>
    %34 = arith.subf %30, %33 : vector<2x8x8xf32>
    %35 = math.exp %34 : vector<2x8x8xf32>
    %cst_15 = arith.constant dense<0.000000e+00> : vector<2x8xf32>
    %36 = vector.multi_reduction <add>, %35, %cst_15 [2] : vector<2x8x8xf32> to vector<2x8xf32>
    %37 = vector.shape_cast %36 : vector<2x8xf32> to vector<2x8x1xf32>
    %38 = tpu.reciprocal %37 {approx = true} : vector<2x8x1xf32> -> vector<2x8x1xf32>
    %39 = vector.broadcast %38 : vector<2x8x1xf32> to vector<2x8x8xf32>
    %40 = arith.mulf %35, %39 : vector<2x8x8xf32>
    "tpu.trace_start"() <{level = 10 : i32, message = "bqk,bkd->bqd"}> : () -> ()
    %cst_16 = arith.constant dense<0.000000e+00> : vector<2x8x32xf32>
    %41 = tpu.matmul %40, %29, %cst_16 {dimension_numbers = #tpu.dot_dimension_numbers<[2], [1], [1], [2], [0, 0, 0, 1, 1, 2], [0], [0]>} : vector<2x8x8xf32>, vector<2x8x32xf32>, vector<2x8x32xf32> -> vector<2x8x32xf32>
    "tpu.trace_stop"() : () -> ()
    %42 = vector.shape_cast %41 : vector<2x8x32xf32> to vector<16x32xf32>
    %43 = vector.extract_strided_slice %13 {offsets = [0, 32], sizes = [16, 32], strides = [1, 1]} : vector<16x128xf32> to vector<16x32xf32>
    %44 = vector.shape_cast %43 : vector<16x32xf32> to vector<2x8x32xf32>
    %45 = vector.extract_strided_slice %18 {offsets = [0, 32], sizes = [16, 32], strides = [1, 1]} : vector<16x128xf32> to vector<16x32xf32>
    %46 = vector.shape_cast %45 : vector<16x32xf32> to vector<2x8x32xf32>
    %47 = vector.extract_strided_slice %23 {offsets = [0, 32], sizes = [16, 32], strides = [1, 1]} : vector<16x128xf32> to vector<16x32xf32>
    %48 = vector.shape_cast %47 : vector<16x32xf32> to vector<2x8x32xf32>
    "tpu.trace_start"() <{level = 10 : i32, message = "bqd,bkd->bqk"}> : () -> ()
    %cst_17 = arith.constant dense<0.000000e+00> : vector<2x8x8xf32>
    %49 = tpu.matmul %44, %46, %cst_17 {dimension_numbers = #tpu.dot_dimension_numbers<[2], [2], [1], [1], [0, 0, 0, 1, 1, 1], [0], [0]>} : vector<2x8x32xf32>, vector<2x8x32xf32>, vector<2x8x8xf32> -> vector<2x8x8xf32>
    "tpu.trace_stop"() : () -> ()
    %cst_18 = arith.constant dense<0xFF800000> : vector<2x8xf32>
    %50 = vector.multi_reduction <maximumf>, %49, %cst_18 [2] : vector<2x8x8xf32> to vector<2x8xf32>
    %51 = vector.shape_cast %50 : vector<2x8xf32> to vector<2x8x1xf32>
    %52 = vector.broadcast %51 : vector<2x8x1xf32> to vector<2x8x8xf32>
    %53 = arith.subf %49, %52 : vector<2x8x8xf32>
    %54 = math.exp %53 : vector<2x8x8xf32>
    %cst_19 = arith.constant dense<0.000000e+00> : vector<2x8xf32>
    %55 = vector.multi_reduction <add>, %54, %cst_19 [2] : vector<2x8x8xf32> to vector<2x8xf32>
    %56 = vector.shape_cast %55 : vector<2x8xf32> to vector<2x8x1xf32>
    %57 = tpu.reciprocal %56 {approx = true} : vector<2x8x1xf32> -> vector<2x8x1xf32>
    %58 = vector.broadcast %57 : vector<2x8x1xf32> to vector<2x8x8xf32>
    %59 = arith.mulf %54, %58 : vector<2x8x8xf32>
    "tpu.trace_start"() <{level = 10 : i32, message = "bqk,bkd->bqd"}> : () -> ()
    %cst_20 = arith.constant dense<0.000000e+00> : vector<2x8x32xf32>
    %60 = tpu.matmul %59, %48, %cst_20 {dimension_numbers = #tpu.dot_dimension_numbers<[2], [1], [1], [2], [0, 0, 0, 1, 1, 2], [0], [0]>} : vector<2x8x8xf32>, vector<2x8x32xf32>, vector<2x8x32xf32> -> vector<2x8x32xf32>
    "tpu.trace_stop"() : () -> ()
    %61 = vector.shape_cast %60 : vector<2x8x32xf32> to vector<16x32xf32>
    %62 = vector.extract_strided_slice %13 {offsets = [0, 64], sizes = [16, 32], strides = [1, 1]} : vector<16x128xf32> to vector<16x32xf32>
    %63 = vector.shape_cast %62 : vector<16x32xf32> to vector<2x8x32xf32>
    %64 = vector.extract_strided_slice %18 {offsets = [0, 64], sizes = [16, 32], strides = [1, 1]} : vector<16x128xf32> to vector<16x32xf32>
    %65 = vector.shape_cast %64 : vector<16x32xf32> to vector<2x8x32xf32>
    %66 = vector.extract_strided_slice %23 {offsets = [0, 64], sizes = [16, 32], strides = [1, 1]} : vector<16x128xf32> to vector<16x32xf32>
    %67 = vector.shape_cast %66 : vector<16x32xf32> to vector<2x8x32xf32>
    "tpu.trace_start"() <{level = 10 : i32, message = "bqd,bkd->bqk"}> : () -> ()
    %cst_21 = arith.constant dense<0.000000e+00> : vector<2x8x8xf32>
    %68 = tpu.matmul %63, %65, %cst_21 {dimension_numbers = #tpu.dot_dimension_numbers<[2], [2], [1], [1], [0, 0, 0, 1, 1, 1], [0], [0]>} : vector<2x8x32xf32>, vector<2x8x32xf32>, vector<2x8x8xf32> -> vector<2x8x8xf32>
    "tpu.trace_stop"() : () -> ()
    %cst_22 = arith.constant dense<0xFF800000> : vector<2x8xf32>
    %69 = vector.multi_reduction <maximumf>, %68, %cst_22 [2] : vector<2x8x8xf32> to vector<2x8xf32>
    %70 = vector.shape_cast %69 : vector<2x8xf32> to vector<2x8x1xf32>
    %71 = vector.broadcast %70 : vector<2x8x1xf32> to vector<2x8x8xf32>
    %72 = arith.subf %68, %71 : vector<2x8x8xf32>
    %73 = math.exp %72 : vector<2x8x8xf32>
    %cst_23 = arith.constant dense<0.000000e+00> : vector<2x8xf32>
    %74 = vector.multi_reduction <add>, %73, %cst_23 [2] : vector<2x8x8xf32> to vector<2x8xf32>
    %75 = vector.shape_cast %74 : vector<2x8xf32> to vector<2x8x1xf32>
    %76 = tpu.reciprocal %75 {approx = true} : vector<2x8x1xf32> -> vector<2x8x1xf32>
    %77 = vector.broadcast %76 : vector<2x8x1xf32> to vector<2x8x8xf32>
    %78 = arith.mulf %73, %77 : vector<2x8x8xf32>
    "tpu.trace_start"() <{level = 10 : i32, message = "bqk,bkd->bqd"}> : () -> ()
    %cst_24 = arith.constant dense<0.000000e+00> : vector<2x8x32xf32>
    %79 = tpu.matmul %78, %67, %cst_24 {dimension_numbers = #tpu.dot_dimension_numbers<[2], [1], [1], [2], [0, 0, 0, 1, 1, 2], [0], [0]>} : vector<2x8x8xf32>, vector<2x8x32xf32>, vector<2x8x32xf32> -> vector<2x8x32xf32>
    "tpu.trace_stop"() : () -> ()
    %80 = vector.shape_cast %79 : vector<2x8x32xf32> to vector<16x32xf32>
    %81 = vector.extract_strided_slice %13 {offsets = [0, 96], sizes = [16, 32], strides = [1, 1]} : vector<16x128xf32> to vector<16x32xf32>
    %82 = vector.shape_cast %81 : vector<16x32xf32> to vector<2x8x32xf32>
    %83 = vector.extract_strided_slice %18 {offsets = [0, 96], sizes = [16, 32], strides = [1, 1]} : vector<16x128xf32> to vector<16x32xf32>
    %84 = vector.shape_cast %83 : vector<16x32xf32> to vector<2x8x32xf32>
    %85 = vector.extract_strided_slice %23 {offsets = [0, 96], sizes = [16, 32], strides = [1, 1]} : vector<16x128xf32> to vector<16x32xf32>
    %86 = vector.shape_cast %85 : vector<16x32xf32> to vector<2x8x32xf32>
    "tpu.trace_start"() <{level = 10 : i32, message = "bqd,bkd->bqk"}> : () -> ()
    %cst_25 = arith.constant dense<0.000000e+00> : vector<2x8x8xf32>
    %87 = tpu.matmul %82, %84, %cst_25 {dimension_numbers = #tpu.dot_dimension_numbers<[2], [2], [1], [1], [0, 0, 0, 1, 1, 1], [0], [0]>} : vector<2x8x32xf32>, vector<2x8x32xf32>, vector<2x8x8xf32> -> vector<2x8x8xf32>
    "tpu.trace_stop"() : () -> ()
    %cst_26 = arith.constant dense<0xFF800000> : vector<2x8xf32>
    %88 = vector.multi_reduction <maximumf>, %87, %cst_26 [2] : vector<2x8x8xf32> to vector<2x8xf32>
    %89 = vector.shape_cast %88 : vector<2x8xf32> to vector<2x8x1xf32>
    %90 = vector.broadcast %89 : vector<2x8x1xf32> to vector<2x8x8xf32>
    %91 = arith.subf %87, %90 : vector<2x8x8xf32>
    %92 = math.exp %91 : vector<2x8x8xf32>
    %cst_27 = arith.constant dense<0.000000e+00> : vector<2x8xf32>
    %93 = vector.multi_reduction <add>, %92, %cst_27 [2] : vector<2x8x8xf32> to vector<2x8xf32>
    %94 = vector.shape_cast %93 : vector<2x8xf32> to vector<2x8x1xf32>
    %95 = tpu.reciprocal %94 {approx = true} : vector<2x8x1xf32> -> vector<2x8x1xf32>
    %96 = vector.broadcast %95 : vector<2x8x1xf32> to vector<2x8x8xf32>
    %97 = arith.mulf %92, %96 : vector<2x8x8xf32>
    "tpu.trace_start"() <{level = 10 : i32, message = "bqk,bkd->bqd"}> : () -> ()
    %cst_28 = arith.constant dense<0.000000e+00> : vector<2x8x32xf32>
    %98 = tpu.matmul %97, %86, %cst_28 {dimension_numbers = #tpu.dot_dimension_numbers<[2], [1], [1], [2], [0, 0, 0, 1, 1, 2], [0], [0]>} : vector<2x8x8xf32>, vector<2x8x32xf32>, vector<2x8x32xf32> -> vector<2x8x32xf32>
    "tpu.trace_stop"() : () -> ()
    %99 = vector.shape_cast %98 : vector<2x8x32xf32> to vector<16x32xf32>
    %100 = tpu.concatenate %42, %61, %80, %99 in 1 : vector<16x32xf32>, vector<16x32xf32>, vector<16x32xf32>, vector<16x32xf32> -> vector<16x128xf32>
    %c0_29 = arith.constant 0 : index
    %c0_30 = arith.constant 0 : index
    %c0_31 = arith.constant 0 : index
    %101 = vector.load %arg5[%c0_29, %c0_30, %c0_31] : memref<1x128x128xf32, #tpu.memory_space<vmem>>, vector<1x128x128xf32>
    %102 = vector.shape_cast %101 : vector<1x128x128xf32> to vector<128x128xf32>
    %cst_32 = arith.constant dense<0.000000e+00> : vector<16x128xf32>
    %103 = tpu.matmul %100, %102, %cst_32 {dimension_numbers = #tpu.dot_dimension_numbers<[1], [0], [0], [1], [0, 0, 1, 1], [], []>} : vector<16x128xf32>, vector<128x128xf32>, vector<16x128xf32> -> vector<16x128xf32>
    %c0_33 = arith.constant 0 : index
    %c3 = arith.constant 3 : index
    %c0_34 = arith.constant 0 : index
    %104 = vector.load %arg9[%c0_33, %c3, %c0_34] : memref<1x9x128xf32, #tpu.memory_space<vmem>>, vector<1x1x128xf32>
    %105 = vector.shape_cast %104 : vector<1x1x128xf32> to vector<1x128xf32>
    %106 = vector.broadcast %105 : vector<1x128xf32> to vector<16x128xf32>
    %107 = arith.addf %103, %106 : vector<16x128xf32>
    %108 = arith.addf %107, %3 : vector<16x128xf32>
    %c0_35 = arith.constant 0 : index
    %c4 = arith.constant 4 : index
    %c0_36 = arith.constant 0 : index
    %109 = vector.load %arg9[%c0_35, %c4, %c0_36] : memref<1x9x128xf32, #tpu.memory_space<vmem>>, vector<1x1x128xf32>
    %110 = vector.shape_cast %109 : vector<1x1x128xf32> to vector<1x128xf32>
    %c0_37 = arith.constant 0 : index
    %c5 = arith.constant 5 : index
    %c0_38 = arith.constant 0 : index
    %111 = vector.load %arg9[%c0_37, %c5, %c0_38] : memref<1x9x128xf32, #tpu.memory_space<vmem>>, vector<1x1x128xf32>
    %112 = vector.shape_cast %111 : vector<1x1x128xf32> to vector<1x128xf32>
    %cst_39 = arith.constant dense<0.000000e+00> : vector<16xf32>
    %113 = vector.multi_reduction <add>, %108, %cst_39 [1] : vector<16x128xf32> to vector<16xf32>
    %114 = vector.shape_cast %113 : vector<16xf32> to vector<16x1xf32>
    %cst_40 = arith.constant 1.280000e+02 : f32
    %115 = vector.broadcast %cst_40 : f32 to vector<16x1xf32>
    %116 = arith.divf %114, %115 : vector<16x1xf32>
    %117 = vector.broadcast %116 : vector<16x1xf32> to vector<16x128xf32>
    %118 = arith.subf %108, %117 : vector<16x128xf32>
    %119 = arith.mulf %118, %118 : vector<16x128xf32>
    %cst_41 = arith.constant dense<0.000000e+00> : vector<16xf32>
    %120 = vector.multi_reduction <add>, %119, %cst_41 [1] : vector<16x128xf32> to vector<16xf32>
    %121 = vector.shape_cast %120 : vector<16xf32> to vector<16x1xf32>
    %cst_42 = arith.constant 1.280000e+02 : f32
    %122 = vector.broadcast %cst_42 : f32 to vector<16x1xf32>
    %123 = arith.divf %121, %122 : vector<16x1xf32>
    %124 = vector.broadcast %116 : vector<16x1xf32> to vector<16x128xf32>
    %125 = arith.subf %108, %124 : vector<16x128xf32>
    %cst_43 = arith.constant 9.99999996E-13 : f32
    %126 = vector.broadcast %cst_43 : f32 to vector<16x1xf32>
    %127 = arith.addf %123, %126 : vector<16x1xf32>
    %128 = math.rsqrt %127 : vector<16x1xf32>
    %129 = vector.broadcast %128 : vector<16x1xf32> to vector<16x128xf32>
    %130 = arith.mulf %125, %129 : vector<16x128xf32>
    %131 = vector.broadcast %110 : vector<1x128xf32> to vector<16x128xf32>
    %132 = arith.mulf %130, %131 : vector<16x128xf32>
    %133 = vector.broadcast %112 : vector<1x128xf32> to vector<16x128xf32>
    %134 = arith.addf %132, %133 : vector<16x128xf32>
    %c0_44 = arith.constant 0 : index
    %c0_45 = arith.constant 0 : index
    %c0_46 = arith.constant 0 : index
    %135 = vector.load %arg6[%c0_44, %c0_45, %c0_46] : memref<1x128x256xf32, #tpu.memory_space<vmem>>, vector<1x128x256xf32>
    %136 = vector.shape_cast %135 : vector<1x128x256xf32> to vector<128x256xf32>
    %cst_47 = arith.constant dense<0.000000e+00> : vector<16x256xf32>
    %137 = tpu.matmul %134, %136, %cst_47 {dimension_numbers = #tpu.dot_dimension_numbers<[1], [0], [0], [1], [0, 0, 1, 1], [], []>} : vector<16x128xf32>, vector<128x256xf32>, vector<16x256xf32> -> vector<16x256xf32>
    %c0_48 = arith.constant 0 : index
    %c0_49 = arith.constant 0 : index
    %c0_50 = arith.constant 0 : index
    %138 = vector.load %arg7[%c0_48, %c0_49, %c0_50] : memref<1x1x256xf32, #tpu.memory_space<vmem>>, vector<1x1x256xf32>
    %139 = vector.shape_cast %138 : vector<1x1x256xf32> to vector<1x256xf32>
    %140 = vector.broadcast %139 : vector<1x256xf32> to vector<16x256xf32>
    %141 = arith.addf %137, %140 : vector<16x256xf32>
    %cst_51 = arith.constant 5.000000e-01 : f32
    %142 = vector.broadcast %cst_51 : f32 to vector<16x256xf32>
    %143 = arith.mulf %142, %141 : vector<16x256xf32>
    %cst_52 = arith.constant 0.707106769 : f32
    %144 = vector.broadcast %cst_52 : f32 to vector<16x256xf32>
    %145 = arith.mulf %141, %144 : vector<16x256xf32>
    %146 = math.absf %145 : vector<16x256xf32>
    %cst_53 = arith.constant 0.327591091 : f32
    %147 = vector.broadcast %cst_53 : f32 to vector<16x256xf32>
    %148 = arith.mulf %147, %146 : vector<16x256xf32>
    %cst_54 = arith.constant 1.000000e+00 : f32
    %149 = vector.broadcast %cst_54 : f32 to vector<16x256xf32>
    %150 = arith.addf %149, %148 : vector<16x256xf32>
    %151 = tpu.reciprocal %150 {approx = true} : vector<16x256xf32> -> vector<16x256xf32>
    %cst_55 = arith.constant 1.06140542 : f32
    %152 = vector.broadcast %cst_55 : f32 to vector<16x256xf32>
    %153 = arith.mulf %152, %151 : vector<16x256xf32>
    %cst_56 = arith.constant -1.45315206 : f32
    %154 = vector.broadcast %cst_56 : f32 to vector<16x256xf32>
    %155 = arith.addf %153, %154 : vector<16x256xf32>
    %156 = arith.mulf %155, %151 : vector<16x256xf32>
    %cst_57 = arith.constant 1.42141378 : f32
    %157 = vector.broadcast %cst_57 : f32 to vector<16x256xf32>
    %158 = arith.addf %156, %157 : vector<16x256xf32>
    %159 = arith.mulf %158, %151 : vector<16x256xf32>
    %cst_58 = arith.constant -0.284496725 : f32
    %160 = vector.broadcast %cst_58 : f32 to vector<16x256xf32>
    %161 = arith.addf %159, %160 : vector<16x256xf32>
    %162 = arith.mulf %161, %151 : vector<16x256xf32>
    %cst_59 = arith.constant 0.254829586 : f32
    %163 = vector.broadcast %cst_59 : f32 to vector<16x256xf32>
    %164 = arith.addf %162, %163 : vector<16x256xf32>
    %165 = arith.mulf %164, %151 : vector<16x256xf32>
    %cst_60 = arith.constant 0.000000e+00 : f32
    %166 = vector.broadcast %cst_60 : f32 to vector<16x256xf32>
    %167 = arith.subf %166, %146 : vector<16x256xf32>
    %168 = arith.mulf %167, %146 : vector<16x256xf32>
    %169 = math.exp %168 : vector<16x256xf32>
    %170 = arith.mulf %165, %169 : vector<16x256xf32>
    %cst_61 = arith.constant 1.000000e+00 : f32
    %171 = vector.broadcast %cst_61 : f32 to vector<16x256xf32>
    %172 = arith.subf %171, %170 : vector<16x256xf32>
    %cst_62 = arith.constant 0.000000e+00 : f32
    %173 = vector.broadcast %cst_62 : f32 to vector<16x256xf32>
    %174 = arith.cmpf oge, %145, %173 : vector<16x256xf32>
    %cst_63 = arith.constant 0.000000e+00 : f32
    %175 = vector.broadcast %cst_63 : f32 to vector<16x256xf32>
    %176 = arith.subf %175, %172 : vector<16x256xf32>
    %177 = arith.select %174, %172, %176 : vector<16x256xi1>, vector<16x256xf32>
    %cst_64 = arith.constant 1.000000e+00 : f32
    %178 = vector.broadcast %cst_64 : f32 to vector<16x256xf32>
    %179 = arith.addf %178, %177 : vector<16x256xf32>
    %180 = arith.mulf %143, %179 : vector<16x256xf32>
    %c0_65 = arith.constant 0 : index
    %c0_66 = arith.constant 0 : index
    %c0_67 = arith.constant 0 : index
    %181 = vector.load %arg8[%c0_65, %c0_66, %c0_67] : memref<1x256x128xf32, #tpu.memory_space<vmem>>, vector<1x256x128xf32>
    %182 = vector.shape_cast %181 : vector<1x256x128xf32> to vector<256x128xf32>
    %cst_68 = arith.constant dense<0.000000e+00> : vector<16x128xf32>
    %183 = tpu.matmul %180, %182, %cst_68 {dimension_numbers = #tpu.dot_dimension_numbers<[1], [0], [0], [1], [0, 0, 1, 1], [], []>} : vector<16x256xf32>, vector<256x128xf32>, vector<16x128xf32> -> vector<16x128xf32>
    %c0_69 = arith.constant 0 : index
    %c6 = arith.constant 6 : index
    %c0_70 = arith.constant 0 : index
    %184 = vector.load %arg9[%c0_69, %c6, %c0_70] : memref<1x9x128xf32, #tpu.memory_space<vmem>>, vector<1x1x128xf32>
    %185 = vector.shape_cast %184 : vector<1x1x128xf32> to vector<1x128xf32>
    %186 = vector.broadcast %185 : vector<1x128xf32> to vector<16x128xf32>
    %187 = arith.addf %183, %186 : vector<16x128xf32>
    %188 = arith.addf %187, %134 : vector<16x128xf32>
    %c0_71 = arith.constant 0 : index
    %c7 = arith.constant 7 : index
    %c0_72 = arith.constant 0 : index
    %189 = vector.load %arg9[%c0_71, %c7, %c0_72] : memref<1x9x128xf32, #tpu.memory_space<vmem>>, vector<1x1x128xf32>
    %190 = vector.shape_cast %189 : vector<1x1x128xf32> to vector<1x128xf32>
    %c0_73 = arith.constant 0 : index
    %c8 = arith.constant 8 : index
    %c0_74 = arith.constant 0 : index
    %191 = vector.load %arg9[%c0_73, %c8, %c0_74] : memref<1x9x128xf32, #tpu.memory_space<vmem>>, vector<1x1x128xf32>
    %192 = vector.shape_cast %191 : vector<1x1x128xf32> to vector<1x128xf32>
    %cst_75 = arith.constant dense<0.000000e+00> : vector<16xf32>
    %193 = vector.multi_reduction <add>, %188, %cst_75 [1] : vector<16x128xf32> to vector<16xf32>
    %194 = vector.shape_cast %193 : vector<16xf32> to vector<16x1xf32>
    %cst_76 = arith.constant 1.280000e+02 : f32
    %195 = vector.broadcast %cst_76 : f32 to vector<16x1xf32>
    %196 = arith.divf %194, %195 : vector<16x1xf32>
    %197 = vector.broadcast %196 : vector<16x1xf32> to vector<16x128xf32>
    %198 = arith.subf %188, %197 : vector<16x128xf32>
    %199 = arith.mulf %198, %198 : vector<16x128xf32>
    %cst_77 = arith.constant dense<0.000000e+00> : vector<16xf32>
    %200 = vector.multi_reduction <add>, %199, %cst_77 [1] : vector<16x128xf32> to vector<16xf32>
    %201 = vector.shape_cast %200 : vector<16xf32> to vector<16x1xf32>
    %cst_78 = arith.constant 1.280000e+02 : f32
    %202 = vector.broadcast %cst_78 : f32 to vector<16x1xf32>
    %203 = arith.divf %201, %202 : vector<16x1xf32>
    %204 = vector.broadcast %196 : vector<16x1xf32> to vector<16x128xf32>
    %205 = arith.subf %188, %204 : vector<16x128xf32>
    %cst_79 = arith.constant 9.99999996E-13 : f32
    %206 = vector.broadcast %cst_79 : f32 to vector<16x1xf32>
    %207 = arith.addf %203, %206 : vector<16x1xf32>
    %208 = math.rsqrt %207 : vector<16x1xf32>
    %209 = vector.broadcast %208 : vector<16x1xf32> to vector<16x128xf32>
    %210 = arith.mulf %205, %209 : vector<16x128xf32>
    %211 = vector.broadcast %190 : vector<1x128xf32> to vector<16x128xf32>
    %212 = arith.mulf %210, %211 : vector<16x128xf32>
    %213 = vector.broadcast %192 : vector<1x128xf32> to vector<16x128xf32>
    %214 = arith.addf %212, %213 : vector<16x128xf32>
    %c0_80 = arith.constant 0 : index
    %c0_81 = arith.constant 0 : index
    %215 = vector.load %arg14[%c0_80, %c0_81] : memref<16x128xf32, #tpu.memory_space<vmem>>, vector<16x128xf32>
    tpu.vector_store %arg14[%c0_80, %c0_81], %214 {strides = array<i32>} : memref<16x128xf32, #tpu.memory_space<vmem>>, vector<16x128xf32>,
    %c1_i32 = arith.constant 1 : i32
    %216 = arith.cmpi eq, %arg0, %c1_i32 : i32
    %217 = arith.extui %216 : i1 to i32
    %c0_i32_82 = arith.constant 0 : i32
    %218 = arith.cmpi ne, %217, %c0_i32_82 : i32
    scf.if %218 {
      %219 = vector.shape_cast %214 : vector<16x128xf32> to vector<2x8x128xf32>
      %220 = vector.extract_strided_slice %219 {offsets = [0, 0, 0], sizes = [2, 1, 128], strides = [1, 1, 1]} : vector<2x8x128xf32> to vector<2x1x128xf32>
      %221 = vector.shape_cast %220 : vector<2x1x128xf32> to vector<2x128xf32>
      %c0_83 = arith.constant 0 : index
      %c0_84 = arith.constant 0 : index
      %222 = vector.load %arg10[%c0_83, %c0_84] : memref<128x128xf32, #tpu.memory_space<vmem>>, vector<128x128xf32>
      %cst_85 = arith.constant dense<0.000000e+00> : vector<2x128xf32>
      %223 = tpu.matmul %221, %222, %cst_85 {dimension_numbers = #tpu.dot_dimension_numbers<[1], [0], [0], [1], [0, 0, 1, 1], [], []>} : vector<2x128xf32>, vector<128x128xf32>, vector<2x128xf32> -> vector<2x128xf32>
      %c2_86 = arith.constant 2 : index
      %c0_87 = arith.constant 0 : index
      %224 = vector.load %arg3[%c2_86, %c0_87] : memref<3x128xf32, #tpu.memory_space<vmem>>, vector<1x128xf32>
      %225 = vector.broadcast %224 : vector<1x128xf32> to vector<2x128xf32>
      %226 = arith.addf %223, %225 : vector<2x128xf32>
      %cst_88 = arith.constant 0.000000e+00 : f32
      %227 = vector.broadcast %cst_88 : f32 to vector<2x128xf32>
      %228 = arith.maximumf %226, %227 : vector<2x128xf32>
      %c0_89 = arith.constant 0 : index
      %c0_90 = arith.constant 0 : index
      %229 = vector.load %arg11[%c0_89, %c0_90] : memref<128x128xf32, #tpu.memory_space<vmem>>, vector<128x128xf32>
      %cst_91 = arith.constant dense<0.000000e+00> : vector<2x128xf32>
      %230 = tpu.matmul %228, %229, %cst_91 {dimension_numbers = #tpu.dot_dimension_numbers<[1], [0], [0], [1], [0, 0, 1, 1], [], []>} : vector<2x128xf32>, vector<128x128xf32>, vector<2x128xf32> -> vector<2x128xf32>
      %c0_92 = arith.constant 0 : index
      %c0_93 = arith.constant 0 : index
      %231 = vector.load %arg12[%c0_92, %c0_93] : memref<1x128xf32, #tpu.memory_space<vmem>>, vector<1x128xf32>
      %232 = vector.broadcast %231 : vector<1x128xf32> to vector<2x128xf32>
      %233 = arith.addf %230, %232 : vector<2x128xf32>
      %c0_94 = arith.constant 0 : index
      %c0_95 = arith.constant 0 : index
      %234 = vector.load %arg13[%c0_94, %c0_95] : memref<2x128xf32, #tpu.memory_space<vmem>>, vector<2x128xf32>
      tpu.vector_store %arg13[%c0_94, %c0_95], %233 {strides = array<i32>} : memref<2x128xf32, #tpu.memory_space<vmem>>, vector<2x128xf32>,
    } else {
    }
    return
  }
  func.func @transform_0(%arg0: i32) -> (i32, i32, i32) {
    %c0_i32 = arith.constant 0 : i32
    %c0_i32_0 = arith.constant 0 : i32
    %c0_i32_1 = arith.constant 0 : i32
    %c0_i32_2 = arith.constant 0 : i32
    return %c0_i32, %c0_i32_0, %c0_i32_1 : i32, i32, i32
  }
  func.func @transform_1(%arg0: i32) -> (i32, i32) {
    %c0_i32 = arith.constant 0 : i32
    %c0_i32_0 = arith.constant 0 : i32
    %c0_i32_1 = arith.constant 0 : i32
    return %c0_i32, %c0_i32_0 : i32, i32
  }
  func.func @transform_2(%arg0: i32) -> (i32, i32) {
    %c0_i32 = arith.constant 0 : i32
    %c0_i32_0 = arith.constant 0 : i32
    %c0_i32_1 = arith.constant 0 : i32
    return %c0_i32, %c0_i32_0 : i32, i32
  }
  func.func @transform_3(%arg0: i32) -> (i32, i32, i32) {
    %c0_i32 = arith.constant 0 : i32
    %c0_i32_0 = arith.constant 0 : i32
    %c0_i32_1 = arith.constant 0 : i32
    return %arg0, %c0_i32, %c0_i32_0 : i32, i32, i32
  }
  func.func @transform_4(%arg0: i32) -> (i32, i32, i32) {
    %c0_i32 = arith.constant 0 : i32
    %c0_i32_0 = arith.constant 0 : i32
    %c0_i32_1 = arith.constant 0 : i32
    return %arg0, %c0_i32, %c0_i32_0 : i32, i32, i32
  }
  func.func @transform_5(%arg0: i32) -> (i32, i32, i32) {
    %c0_i32 = arith.constant 0 : i32
    %c0_i32_0 = arith.constant 0 : i32
    %c0_i32_1 = arith.constant 0 : i32
    return %arg0, %c0_i32, %c0_i32_0 : i32, i32, i32
  }
  func.func @transform_6(%arg0: i32) -> (i32, i32, i32) {
    %c0_i32 = arith.constant 0 : i32
    %c0_i32_0 = arith.constant 0 : i32
    %c0_i32_1 = arith.constant 0 : i32
    return %arg0, %c0_i32, %c0_i32_0 : i32, i32, i32
  }
  func.func @transform_7(%arg0: i32) -> (i32, i32, i32) {
    %c0_i32 = arith.constant 0 : i32
    %c0_i32_0 = arith.constant 0 : i32
    %c0_i32_1 = arith.constant 0 : i32
    return %arg0, %c0_i32, %c0_i32_0 : i32, i32, i32
  }
  func.func @transform_8(%arg0: i32) -> (i32, i32, i32) {
    %c0_i32 = arith.constant 0 : i32
    %c0_i32_0 = arith.constant 0 : i32
    %c0_i32_1 = arith.constant 0 : i32
    return %arg0, %c0_i32, %c0_i32_0 : i32, i32, i32
  }
  func.func @transform_9(%arg0: i32) -> (i32, i32) {
    %c0_i32 = arith.constant 0 : i32
    %c0_i32_0 = arith.constant 0 : i32
    %c0_i32_1 = arith.constant 0 : i32
    return %c0_i32, %c0_i32_0 : i32, i32
  }
  func.func @transform_10(%arg0: i32) -> (i32, i32) {
    %c0_i32 = arith.constant 0 : i32
    %c0_i32_0 = arith.constant 0 : i32
    %c0_i32_1 = arith.constant 0 : i32
    return %c0_i32, %c0_i32_0 : i32, i32
  }
  func.func @transform_11(%arg0: i32) -> (i32, i32) {
    %c0_i32 = arith.constant 0 : i32
    %c0_i32_0 = arith.constant 0 : i32
    %c0_i32_1 = arith.constant 0 : i32
    return %c0_i32, %c0_i32_0 : i32, i32
  }
  func.func @transform_12(%arg0: i32) -> (i32, i32) {
    %c0_i32 = arith.constant 0 : i32
    %c0_i32_0 = arith.constant 0 : i32
    %c0_i32_1 = arith.constant 0 : i32
    return %c0_i32, %c0_i32_0 : i32, i32
  }
}

</mosaic_0001>

<llo_original>
// kernel: tpu_custom_call.1
$region0: #{tpu_custom_call.1}
  #allocation0 [shape = 'u32[]', space=smem, size = 0x4, offset = 0x4, fixed_abs, tag = 'smem constant byte address 0x4 - core index']
  #allocation1 [shape = 'u32[144,128]{1,0:T(1,128)}', space=vmem, size = 0x12000, scoped, tag = 'internal scratch']
  #allocation2 [shape = 'f32[16,128]{1,0:T(8,128)}', space=vmem, size = 0x2000, scoped, tag = 'scratch operand']
  %s0 = inlined_call_operand.vmem [shape: f32[2,8,128], index: 0, kind: input, shape index: {}]
  %s1 = inlined_call_operand.vmem [shape: f32[8,128], index: 1, kind: input, shape index: {}]
  %s2 = inlined_call_operand.vmem [shape: f32[3,128], index: 2, kind: input, shape index: {}]
  %s3 = inlined_call_operand.hbm [shape: f32[2,128,384], index: 3, kind: input, shape index: {}]
  %s4 = inlined_call_operand.hbm [shape: f32[2,128,128], index: 4, kind: input, shape index: {}]
  %s5 = inlined_call_operand.hbm [shape: f32[2,128,256], index: 5, kind: input, shape index: {}]
  %s6 = inlined_call_operand.vmem [shape: f32[2,1,256], index: 6, kind: input, shape index: {}]
  %s7 = inlined_call_operand.hbm [shape: f32[2,256,128], index: 7, kind: input, shape index: {}]
  %s8 = inlined_call_operand.vmem [shape: f32[2,9,128], index: 8, kind: input, shape index: {}]
  %s9 = inlined_call_operand.hbm [shape: f32[128,128], index: 9, kind: input, shape index: {}]
  %s10 = inlined_call_operand.hbm [shape: f32[128,128], index: 10, kind: input, shape index: {}]
  %s11 = inlined_call_operand.vmem [shape: f32[1,128], index: 11, kind: input, shape index: {}]
  %s12 = inlined_call_operand.hbm [shape: f32[2,128], index: 12, kind: output, shape index: {}]
  %s13 = sld [smem:[#allocation0]]
  $region113: #{tpu_custom_call.1} parent=0
    _
  %s15 = ssub.s32 1, %s13
  %s16 = scalar_select 0, %s15, %s13
  $region1: #{tpu_custom_call.1} parent=0
    #allocation3 [shape = 'u8[393216]{0}', space=vmem, size = 0x60000, scoped, tag = 'input window, operand 3']
    #allocation4 [shape = 's32[2]{0}', space=sflag, size = 0x8, scoped, tag = 'scoped memory for tpu_custom_call.1']
    #allocation5 [shape = 's32[2]{0}', space=sflag, size = 0x8, scoped, tag = 'scoped memory for tpu_custom_call.1']
    #allocation6 [shape = 'u8[131072]{0}', space=vmem, size = 0x20000, scoped, tag = 'input window, operand 4']
    #allocation7 [shape = 's32[2]{0}', space=sflag, size = 0x8, scoped, tag = 'scoped memory for tpu_custom_call.1']
    #allocation8 [shape = 'u8[262144]{0}', space=vmem, size = 0x40000, scoped, tag = 'input window, operand 5']
    #allocation9 [shape = 'u8[262144]{0}', space=vmem, size = 0x40000, scoped, tag = 'input window, operand 7']
    #allocation10 [shape = 's32[2]{0}', space=sflag, size = 0x8, scoped, tag = 'scoped memory for tpu_custom_call.1']
    #allocation11 [shape = 'u8[65536]{0}', space=vmem, size = 0x10000, scoped, tag = 'input window, operand 9, single buffered']
    #allocation12 [shape = 'u8[65536]{0}', space=vmem, size = 0x10000, scoped, tag = 'input window, operand 10, single buffered']
    #allocation13 [shape = 's32[1]{0}', space=sflag, size = 0x4, scoped, tag = 'scoped memory for tpu_custom_call.1']
    #allocation14 [shape = 'u8[1024]{0}', space=vmem, size = 0x400, scoped, tag = 'output window, operand 0, single buffered']
    %17 = vsyncpa [#allocation4], 0
    %s18 = scalar_lea.sflag [#allocation4], 1
    %19 = vsyncpa %s18, 0
    %20 = vsyncpa [#allocation7], 0
    %s21 = scalar_lea.sflag [#allocation7], 1
    %22 = vsyncpa %s21, 0
    %23 = vsyncpa [#allocation10], 0
    %s24 = scalar_lea.sflag [#allocation10], 1
    %25 = vsyncpa %s24, 0
    %26 = vsyncpa [#allocation13], 0
    %27 = vsyncpa [#allocation5], 0
    loop: start=0, step=1, limit=4
    $region2: #{tpu_custom_call.1} parent=1 // loop_pre_header
      _
    $region3: #{tpu_custom_call.1} parent=1 // loop_header
      %s29 = sphi 0, %s33
      %p30 = scmp.ge.s32.totalorder %s29, 4
      %s37 = sphi 0, %s37
      %s39 = sphi 0, %s37
      %s40 = sphi 0, %s39
      %s54 = sphi 0, %s40
      %s58 = sphi 0, %s58
      %s60 = sphi 0, %s58
      %s61 = sphi 0, %s60
      %s75 = sphi 0, %s61
      %s79 = sphi 0, %s79
      %s81 = sphi 0, %s79
      %s82 = sphi 0, %s81
      %s96 = sphi 0, %s82
      %s102 = sphi 0, %s104
      %s105 = sphi 0, %s102
      %s106 = sphi 0, %s105
      %s122 = sphi 0, %s106
      %s128 = sphi 0, %s130
      %s131 = sphi 0, %s128
      %s132 = sphi 0, %s131
      %s148 = sphi 0, %s132
      %s154 = sphi 0, %s156
      %s157 = sphi 0, %s154
      %s158 = sphi 0, %s157
      %s174 = sphi 0, %s158
      %s180 = sphi 0, %s182
      %s183 = sphi 0, %s180
      %s184 = sphi 0, %s183
      %s200 = sphi 0, %s184
      %s206 = sphi 0, %s208
      %s209 = sphi 0, %s206
      %s210 = sphi 0, %s209
      %s226 = sphi 0, %s210
      %s232 = sphi 0, %s234
      %s235 = sphi 0, %s232
      %s236 = sphi 0, %s235
      %s252 = sphi 0, %s236
      %s256 = sphi 0, %s256
      %s258 = sphi 0, %s256
      %s259 = sphi 0, %s258
      %s273 = sphi 0, %s259
      %s277 = sphi 0, %s277
      %s279 = sphi 0, %s277
      %s280 = sphi 0, %s279
      %s294 = sphi 0, %s280
      %s298 = sphi 0, %s298
      %s300 = sphi 0, %s298
      %s301 = sphi 0, %s300
      %s315 = sphi 0, %s301
      %s319 = sphi 0, %s319
      %s321 = sphi 0, %s319
      %s322 = sphi 0, %s321
      %s336 = sphi 0, %s322
    $region4: #{tpu_custom_call.1} parent=1 // loop_header_branch
      %32 = sbr.rel (%p30) target = $region8
    $region5: #{tpu_custom_call.1} parent=1 // loop_body
      %s34 = ssub.s32 %s29, 1
      %s35 = ssub.s32 %s29, 2
      %s36 = sadd.s32 %s29, 1
      %s38 = sadd.s32 %s37, 1
      %p41 = scmp.eq.s32.totalorder %s29, 1
      %p42 = scmp.ne.s32.totalorder %s37, %s39
      %p43 = scmp.eq.s32.totalorder %s29, 0
      %p44 = por %p42, %p43
      %p45 = scmp.ne.s32.totalorder %s37, %s39
      %p46 = scmp.eq.s32.totalorder %s34, 1
      %p47 = por %p45, %p46
      %p48 = scmp.ne.s32.totalorder %s39, %s40
      %p49 = scmp.eq.s32.totalorder %s34, 0
      %p50 = por %p48, %p49
      %p51 = scmp.ne.s32.totalorder %s39, %s40
      %p52 = scmp.eq.s32.totalorder %s35, 1
      %p53 = por %p51, %p52
      %p55 = scmp.ne.s32.totalorder %s40, %s54
      %p56 = scmp.eq.s32.totalorder %s35, 0
      %p57 = por %p55, %p56
      %s59 = sadd.s32 %s58, 1
      %p62 = scmp.eq.s32.totalorder %s29, 1
      %p63 = scmp.ne.s32.totalorder %s58, %s60
      %p64 = scmp.eq.s32.totalorder %s29, 0
      %p65 = por %p63, %p64
      %p66 = scmp.ne.s32.totalorder %s58, %s60
      %p67 = scmp.eq.s32.totalorder %s34, 1
      %p68 = por %p66, %p67
      %p69 = scmp.ne.s32.totalorder %s60, %s61
      %p70 = scmp.eq.s32.totalorder %s34, 0
      %p71 = por %p69, %p70
      %p72 = scmp.ne.s32.totalorder %s60, %s61
      %p73 = scmp.eq.s32.totalorder %s35, 1
      %p74 = por %p72, %p73
      %p76 = scmp.ne.s32.totalorder %s61, %s75
      %p77 = scmp.eq.s32.totalorder %s35, 0
      %p78 = por %p76, %p77
      %s80 = sadd.s32 %s79, 1
      %p83 = scmp.eq.s32.totalorder %s29, 1
      %p84 = scmp.ne.s32.totalorder %s79, %s81
      %p85 = scmp.eq.s32.totalorder %s29, 0
      %p86 = por %p84, %p85
      %p87 = scmp.ne.s32.totalorder %s79, %s81
      %p88 = scmp.eq.s32.totalorder %s34, 1
      %p89 = por %p87, %p88
      %p90 = scmp.ne.s32.totalorder %s81, %s82
      %p91 = scmp.eq.s32.totalorder %s34, 0
      %p92 = por %p90, %p91
      %p93 = scmp.ne.s32.totalorder %s81, %s82
      %p94 = scmp.eq.s32.totalorder %s35, 1
      %p95 = por %p93, %p94
      %p97 = scmp.ne.s32.totalorder %s82, %s96
      %p98 = scmp.eq.s32.totalorder %s35, 0
      %p99 = por %p97, %p98
      %s100 = ssub.s32 %s29, %s36
      %p101 = scmp.eq.s32.totalorder %s100, 0
      %s103 = sadd.s32 %s102, 1
      %s104 = scalar_select %p101, %s102, %s103
      %p107 = pneg %p101
      %p108 = scmp.eq.s32.totalorder %s29, 1
      %p109 = por %p107, %p108
      %p110 = scmp.ne.s32.totalorder %s102, %s105
      %p111 = scmp.eq.s32.totalorder %s29, 0
      %p112 = por %p110, %p111
      %p113 = scmp.ne.s32.totalorder %s102, %s105
      %p114 = scmp.eq.s32.totalorder %s34, 1
      %p115 = por %p113, %p114
      %p116 = scmp.ne.s32.totalorder %s105, %s106
      %p117 = scmp.eq.s32.totalorder %s34, 0
      %p118 = por %p116, %p117
      %p119 = scmp.ne.s32.totalorder %s105, %s106
      %p120 = scmp.eq.s32.totalorder %s35, 1
      %p121 = por %p119, %p120
      %p123 = scmp.ne.s32.totalorder %s106, %s122
      %p124 = scmp.eq.s32.totalorder %s35, 0
      %p125 = por %p123, %p124
      %s126 = ssub.s32 %s29, %s36
      %p127 = scmp.eq.s32.totalorder %s126, 0
      %s129 = sadd.s32 %s128, 1
      %s130 = scalar_select %p127, %s128, %s129
      %p133 = pneg %p127
      %p134 = scmp.eq.s32.totalorder %s29, 1
      %p135 = por %p133, %p134
      %p136 = scmp.ne.s32.totalorder %s128, %s131
      %p137 = scmp.eq.s32.totalorder %s29, 0
      %p138 = por %p136, %p137
      %p139 = scmp.ne.s32.totalorder %s128, %s131
      %p140 = scmp.eq.s32.totalorder %s34, 1
      %p141 = por %p139, %p140
      %p142 = scmp.ne.s32.totalorder %s131, %s132
      %p143 = scmp.eq.s32.totalorder %s34, 0
      %p144 = por %p142, %p143
      %p145 = scmp.ne.s32.totalorder %s131, %s132
      %p146 = scmp.eq.s32.totalorder %s35, 1
      %p147 = por %p145, %p146
      %p149 = scmp.ne.s32.totalorder %s132, %s148
      %p150 = scmp.eq.s32.totalorder %s35, 0
      %p151 = por %p149, %p150
      %s152 = ssub.s32 %s29, %s36
      %p153 = scmp.eq.s32.totalorder %s152, 0
      %s155 = sadd.s32 %s154, 1
      %s156 = scalar_select %p153, %s154, %s155
      %p159 = pneg %p153
      %p160 = scmp.eq.s32.totalorder %s29, 1
      %p161 = por %p159, %p160
      %p162 = scmp.ne.s32.totalorder %s154, %s157
      %p163 = scmp.eq.s32.totalorder %s29, 0
      %p164 = por %p162, %p163
      %p165 = scmp.ne.s32.totalorder %s154, %s157
      %p166 = scmp.eq.s32.totalorder %s34, 1
      %p167 = por %p165, %p166
      %p168 = scmp.ne.s32.totalorder %s157, %s158
      %p169 = scmp.eq.s32.totalorder %s34, 0
      %p170 = por %p168, %p169
      %p171 = scmp.ne.s32.totalorder %s157, %s158
      %p172 = scmp.eq.s32.totalorder %s35, 1
      %p173 = por %p171, %p172
      %p175 = scmp.ne.s32.totalorder %s158, %s174
      %p176 = scmp.eq.s32.totalorder %s35, 0
      %p177 = por %p175, %p176
      %s178 = ssub.s32 %s29, %s36
      %p179 = scmp.eq.s32.totalorder %s178, 0
      %s181 = sadd.s32 %s180, 1
      %s182 = scalar_select %p179, %s180, %s181
      %p185 = pneg %p179
      %p186 = scmp.eq.s32.totalorder %s29, 1
      %p187 = por %p185, %p186
      %p188 = scmp.ne.s32.totalorder %s180, %s183
      %p189 = scmp.eq.s32.totalorder %s29, 0
      %p190 = por %p188, %p189
      %p191 = scmp.ne.s32.totalorder %s180, %s183
      %p192 = scmp.eq.s32.totalorder %s34, 1
      %p193 = por %p191, %p192
      %p194 = scmp.ne.s32.totalorder %s183, %s184
      %p195 = scmp.eq.s32.totalorder %s34, 0
      %p196 = por %p194, %p195
      %p197 = scmp.ne.s32.totalorder %s183, %s184
      %p198 = scmp.eq.s32.totalorder %s35, 1
      %p199 = por %p197, %p198
      %p201 = scmp.ne.s32.totalorder %s184, %s200
      %p202 = scmp.eq.s32.totalorder %s35, 0
      %p203 = por %p201, %p202
      %s204 = ssub.s32 %s29, %s36
      %p205 = scmp.eq.s32.totalorder %s204, 0
      %s207 = sadd.s32 %s206, 1
      %s208 = scalar_select %p205, %s206, %s207
      %p211 = pneg %p205
      %p212 = scmp.eq.s32.totalorder %s29, 1
      %p213 = por %p211, %p212
      %p214 = scmp.ne.s32.totalorder %s206, %s209
      %p215 = scmp.eq.s32.totalorder %s29, 0
      %p216 = por %p214, %p215
      %p217 = scmp.ne.s32.totalorder %s206, %s209
      %p218 = scmp.eq.s32.totalorder %s34, 1
      %p219 = por %p217, %p218
      %p220 = scmp.ne.s32.totalorder %s209, %s210
      %p221 = scmp.eq.s32.totalorder %s34, 0
      %p222 = por %p220, %p221
      %p223 = scmp.ne.s32.totalorder %s209, %s210
      %p224 = scmp.eq.s32.totalorder %s35, 1
      %p225 = por %p223, %p224
      %p227 = scmp.ne.s32.totalorder %s210, %s226
      %p228 = scmp.eq.s32.totalorder %s35, 0
      %p229 = por %p227, %p228
      %s230 = ssub.s32 %s29, %s36
      %p231 = scmp.eq.s32.totalorder %s230, 0
      %s233 = sadd.s32 %s232, 1
      %s234 = scalar_select %p231, %s232, %s233
      %p237 = pneg %p231
      %p238 = scmp.eq.s32.totalorder %s29, 1
      %p239 = por %p237, %p238
      %p240 = scmp.ne.s32.totalorder %s232, %s235
      %p241 = scmp.eq.s32.totalorder %s29, 0
      %p242 = por %p240, %p241
      %p243 = scmp.ne.s32.totalorder %s232, %s235
      %p244 = scmp.eq.s32.totalorder %s34, 1
      %p245 = por %p243, %p244
      %p246 = scmp.ne.s32.totalorder %s235, %s236
      %p247 = scmp.eq.s32.totalorder %s34, 0
      %p248 = por %p246, %p247
      %p249 = scmp.ne.s32.totalorder %s235, %s236
      %p250 = scmp.eq.s32.totalorder %s35, 1
      %p251 = por %p249, %p250
      %p253 = scmp.ne.s32.totalorder %s236, %s252
      %p254 = scmp.eq.s32.totalorder %s35, 0
      %p255 = por %p253, %p254
      %s257 = sadd.s32 %s256, 1
      %p260 = scmp.eq.s32.totalorder %s29, 1
      %p261 = scmp.ne.s32.totalorder %s256, %s258
      %p262 = scmp.eq.s32.totalorder %s29, 0
      %p263 = por %p261, %p262
      %p264 = scmp.ne.s32.totalorder %s256, %s258
      %p265 = scmp.eq.s32.totalorder %s34, 1
      %p266 = por %p264, %p265
      %p267 = scmp.ne.s32.totalorder %s258, %s259
      %p268 = scmp.eq.s32.totalorder %s34, 0
      %p269 = por %p267, %p268
      %p270 = scmp.ne.s32.totalorder %s258, %s259
      %p271 = scmp.eq.s32.totalorder %s35, 1
      %p272 = por %p270, %p271
      %p274 = scmp.ne.s32.totalorder %s259, %s273
      %p275 = scmp.eq.s32.totalorder %s35, 0
      %p276 = por %p274, %p275
      %s278 = sadd.s32 %s277, 1
      %p281 = scmp.eq.s32.totalorder %s29, 1
      %p282 = scmp.ne.s32.totalorder %s277, %s279
      %p283 = scmp.eq.s32.totalorder %s29, 0
      %p284 = por %p282, %p283
      %p285 = scmp.ne.s32.totalorder %s277, %s279
      %p286 = scmp.eq.s32.totalorder %s34, 1
      %p287 = por %p285, %p286
      %p288 = scmp.ne.s32.totalorder %s279, %s280
      %p289 = scmp.eq.s32.totalorder %s34, 0
      %p290 = por %p288, %p289
      %p291 = scmp.ne.s32.totalorder %s279, %s280
      %p292 = scmp.eq.s32.totalorder %s35, 1
      %p293 = por %p291, %p292
      %p295 = scmp.ne.s32.totalorder %s280, %s294
      %p296 = scmp.eq.s32.totalorder %s35, 0
      %p297 = por %p295, %p296
      %s299 = sadd.s32 %s298, 1
      %p302 = scmp.eq.s32.totalorder %s29, 1
      %p303 = scmp.ne.s32.totalorder %s298, %s300
      %p304 = scmp.eq.s32.totalorder %s29, 0
      %p305 = por %p303, %p304
      %p306 = scmp.ne.s32.totalorder %s298, %s300
      %p307 = scmp.eq.s32.totalorder %s34, 1
      %p308 = por %p306, %p307
      %p309 = scmp.ne.s32.totalorder %s300, %s301
      %p310 = scmp.eq.s32.totalorder %s34, 0
      %p311 = por %p309, %p310
      %p312 = scmp.ne.s32.totalorder %s300, %s301
      %p313 = scmp.eq.s32.totalorder %s35, 1
      %p314 = por %p312, %p313
      %p316 = scmp.ne.s32.totalorder %s301, %s315
      %p317 = scmp.eq.s32.totalorder %s35, 0
      %p318 = por %p316, %p317
      %s320 = sadd.s32 %s319, 1
      %p323 = scmp.eq.s32.totalorder %s29, 1
      %p324 = scmp.ne.s32.totalorder %s319, %s321
      %p325 = scmp.eq.s32.totalorder %s29, 0
      %p326 = por %p324, %p325
      %p327 = scmp.ne.s32.totalorder %s319, %s321
      %p328 = scmp.eq.s32.totalorder %s34, 1
      %p329 = por %p327, %p328
      %p330 = scmp.ne.s32.totalorder %s321, %s322
      %p331 = scmp.eq.s32.totalorder %s34, 0
      %p332 = por %p330, %p331
      %p333 = scmp.ne.s32.totalorder %s321, %s322
      %p334 = scmp.eq.s32.totalorder %s35, 1
      %p335 = por %p333, %p334
      %p337 = scmp.ne.s32.totalorder %s322, %s336
      %p338 = scmp.eq.s32.totalorder %s35, 0
      %p339 = por %p337, %p338
      %p340 = scmp.le.s32.totalorder 1, %s29
      %p341 = scmp.lt.s32.totalorder %s29, 3
      %p342 = pnand %p340, %p341
      %p343 = pneg %p342
      // Predicated region
      $region9: #{tpu_custom_call.1} parent=5 // pred_check
        _
      $region10: #{tpu_custom_call.1} parent=5 // pred_check_branch
        %345 = sbr.rel (%p342) target = $region12
      $region11: #{tpu_custom_call.1} parent=5 // pred_region
        %s346 = ssub.s32 %s29, 1
        // Predicated region
        $region13: #{tpu_custom_call.1} parent=11 // pred_check
          %p347 = pneg %p50
        $region14: #{tpu_custom_call.1} parent=11 // pred_check_branch
          %349 = sbr.rel (%p347) target = $region16
        $region15: #{tpu_custom_call.1} parent=11 // pred_region
          _
        $region16: #{tpu_custom_call.1} parent=11 // pred_fallthru
          _
        // Predicated region
        $region17: #{tpu_custom_call.1} parent=11 // pred_check
          %p350 = pneg %p71
        $region18: #{tpu_custom_call.1} parent=11 // pred_check_branch
          %352 = sbr.rel (%p350) target = $region20
        $region19: #{tpu_custom_call.1} parent=11 // pred_region
          _
        $region20: #{tpu_custom_call.1} parent=11 // pred_fallthru
          _
        // Predicated region
        $region21: #{tpu_custom_call.1} parent=11 // pred_check
          %p353 = pneg %p92
        $region22: #{tpu_custom_call.1} parent=11 // pred_check_branch
          %355 = sbr.rel (%p353) target = $region24
        $region23: #{tpu_custom_call.1} parent=11 // pred_region
          _
        $region24: #{tpu_custom_call.1} parent=11 // pred_fallthru
          _
        // Predicated region
        $region25: #{tpu_custom_call.1} parent=11 // pred_check
          %p356 = pneg %p269
        $region26: #{tpu_custom_call.1} parent=11 // pred_check_branch
          %358 = sbr.rel (%p356) target = $region28
        $region27: #{tpu_custom_call.1} parent=11 // pred_region
          %s360 = ssub.s32 2048, 2048
          %361 = vsyncadd [#allocation10], %s360
          %s362 = sshll.u32 [#allocation11], 4
          %s363 = int_to_ptr.vmem [resolvable:$true] %s362
          %368 = dma.hbm_to_vmem [thread:$0]  %s9, 2048, %s363, [#allocation10], 128, 128, 8
        $region28: #{tpu_custom_call.1} parent=11 // pred_fallthru
          _
        // Predicated region
        $region29: #{tpu_custom_call.1} parent=11 // pred_check
          %p369 = pneg %p290
        $region30: #{tpu_custom_call.1} parent=11 // pred_check_branch
          %371 = sbr.rel (%p369) target = $region32
        $region31: #{tpu_custom_call.1} parent=11 // pred_region
          %s373 = ssub.s32 2048, 2048
          %374 = vsyncadd [#allocation13], %s373
          %s375 = sshll.u32 [#allocation12], 4
          %s376 = int_to_ptr.vmem [resolvable:$true] %s375
          %381 = dma.hbm_to_vmem [thread:$0]  %s10, 2048, %s376, [#allocation13], 128, 128, 8
        $region32: #{tpu_custom_call.1} parent=11 // pred_fallthru
          _
        // Predicated region
        $region33: #{tpu_custom_call.1} parent=11 // pred_check
          %p382 = pneg %p311
        $region34: #{tpu_custom_call.1} parent=11 // pred_check_branch
          %384 = sbr.rel (%p382) target = $region36
        $region35: #{tpu_custom_call.1} parent=11 // pred_region
          _
        $region36: #{tpu_custom_call.1} parent=11 // pred_fallthru
          _
      $region12: #{tpu_custom_call.1} parent=5 // pred_fallthru
        _
      %p385 = scmp.lt.s32.totalorder %s29, 2
      // Predicated region
      $region37: #{tpu_custom_call.1} parent=5 // pred_check
        %p386 = pneg %p385
      $region38: #{tpu_custom_call.1} parent=5 // pred_check_branch
        %388 = sbr.rel (%p386) target = $region40
      $region39: #{tpu_custom_call.1} parent=5 // pred_region
        // Predicated region
        $region41: #{tpu_custom_call.1} parent=39 // pred_check
          %p389 = pneg %p112
        $region42: #{tpu_custom_call.1} parent=39 // pred_check_branch
          %391 = sbr.rel (%p389) target = $region44
        $region43: #{tpu_custom_call.1} parent=39 // pred_region
          %s392 = sand.u32 %s102, 1
          %s393 = scalar_lea.sflag [#allocation4], %s392
          %s394 = sand.u32 %s102, 1
          %s395 = smul.addr %s394, 384
          %s396 = scalar_lea.vmem [#allocation3], %s395
          %s398 = ssub.s32 6144, 6144
          %399 = vsyncadd %s393, %s398
          %s400 = smul.addr %s29, 48
          %s401 = smul.addr %s400, 128
          %s402 = scalar_lea.hbm %s3, %s401
          %s403 = sshll.u32 %s396, 4
          %s404 = int_to_ptr.vmem [resolvable:$true] %s403
          %409 = dma.hbm_to_vmem [thread:$0]  %s402, 6144, %s404, %s393, 384, 384, 24
        $region44: #{tpu_custom_call.1} parent=39 // pred_fallthru
          _
        // Predicated region
        $region45: #{tpu_custom_call.1} parent=39 // pred_check
          %p410 = pneg %p138
        $region46: #{tpu_custom_call.1} parent=39 // pred_check_branch
          %412 = sbr.rel (%p410) target = $region48
        $region47: #{tpu_custom_call.1} parent=39 // pred_region
          %s413 = sand.u32 %s29, 1
          %s414 = scalar_lea.sflag [#allocation7], %s413
          %s415 = sand.u32 %s128, 1
          %s416 = smul.addr %s415, 128
          %s417 = scalar_lea.vmem [#allocation6], %s416
          %s419 = ssub.s32 2048, 2048
          %420 = vsyncadd %s414, %s419
          %s421 = smul.addr %s29, 16
          %s422 = smul.addr %s421, 128
          %s423 = scalar_lea.hbm %s4, %s422
          %s424 = sshll.u32 %s417, 4
          %s425 = int_to_ptr.vmem [resolvable:$true] %s424
          %430 = dma.hbm_to_vmem [thread:$0]  %s423, 2048, %s425, %s414, 128, 128, 8
        $region48: #{tpu_custom_call.1} parent=39 // pred_fallthru
          _
        // Predicated region
        $region49: #{tpu_custom_call.1} parent=39 // pred_check
          %p431 = pneg %p164
        $region50: #{tpu_custom_call.1} parent=39 // pred_check_branch
          %433 = sbr.rel (%p431) target = $region52
        $region51: #{tpu_custom_call.1} parent=39 // pred_region
          %s434 = sand.u32 %s29, 1
          %s435 = scalar_lea.sflag [#allocation7], %s434
          %s436 = sand.u32 %s154, 1
          %s437 = smul.addr %s436, 256
          %s438 = scalar_lea.vmem [#allocation8], %s437
          %s440 = ssub.s32 4096, 4096
          %441 = vsyncadd %s435, %s440
          %s442 = smul.addr %s29, 32
          %s443 = smul.addr %s442, 128
          %s444 = scalar_lea.hbm %s5, %s443
          %s445 = sshll.u32 %s438, 4
          %s446 = int_to_ptr.vmem [resolvable:$true] %s445
          %451 = dma.hbm_to_vmem [thread:$0]  %s444, 4096, %s446, %s435, 256, 256, 16
        $region52: #{tpu_custom_call.1} parent=39 // pred_fallthru
          _
        // Predicated region
        $region53: #{tpu_custom_call.1} parent=39 // pred_check
          %p452 = pneg %p190
        $region54: #{tpu_custom_call.1} parent=39 // pred_check_branch
          %454 = sbr.rel (%p452) target = $region56
        $region55: #{tpu_custom_call.1} parent=39 // pred_region
          %p455 = scmp.lt.s32.totalorder %s29, 1
          %s456 = scalar_select %p455, %s29, 1
          %s457 = smul.addr %s456, 2
          %s458 = scalar_lea.vmem %s6, %s457
        $region56: #{tpu_custom_call.1} parent=39 // pred_fallthru
          _
        // Predicated region
        $region57: #{tpu_custom_call.1} parent=39 // pred_check
          %p459 = pneg %p216
        $region58: #{tpu_custom_call.1} parent=39 // pred_check_branch
          %461 = sbr.rel (%p459) target = $region60
        $region59: #{tpu_custom_call.1} parent=39 // pred_region
          %s462 = sand.u32 %s29, 1
          %s463 = scalar_lea.sflag [#allocation10], %s462
          %s464 = sand.u32 %s206, 1
          %s465 = smul.addr %s464, 256
          %s466 = scalar_lea.vmem [#allocation9], %s465
          %s468 = ssub.s32 4096, 4096
          %469 = vsyncadd %s463, %s468
          %s470 = smul.addr %s29, 32
          %s471 = smul.addr %s470, 128
          %s472 = scalar_lea.hbm %s7, %s471
          %s473 = sshll.u32 %s466, 4
          %s474 = int_to_ptr.vmem [resolvable:$true] %s473
          %479 = dma.hbm_to_vmem [thread:$0]  %s472, 4096, %s474, %s463, 128, 128, 8
        $region60: #{tpu_custom_call.1} parent=39 // pred_fallthru
          _
        // Predicated region
        $region61: #{tpu_custom_call.1} parent=39 // pred_check
          %p480 = pneg %p242
        $region62: #{tpu_custom_call.1} parent=39 // pred_check_branch
          %482 = sbr.rel (%p480) target = $region64
        $region63: #{tpu_custom_call.1} parent=39 // pred_region
          %p483 = scmp.lt.s32.totalorder %s29, 1
          %s484 = scalar_select %p483, %s29, 1
          %s485 = smul.addr %s484, 2
          %s486 = smul.addr %s485, 8
          %s487 = scalar_lea.vmem %s8, %s486
        $region64: #{tpu_custom_call.1} parent=39 // pred_fallthru
          _
      $region40: #{tpu_custom_call.1} parent=5 // pred_fallthru
        _
      %p488 = scmp.le.s32.totalorder 1, %s29
      %p489 = scmp.lt.s32.totalorder %s29, 3
      %p490 = pnand %p488, %p489
      %p491 = pneg %p490
      // Predicated region
      $region65: #{tpu_custom_call.1} parent=5 // pred_check
        _
      $region66: #{tpu_custom_call.1} parent=5 // pred_check_branch
        %493 = sbr.rel (%p490) target = $region68
      $region67: #{tpu_custom_call.1} parent=5 // pred_region
        %s494 = ssub.s32 %s29, 1
        %s495 = sand.u32 %s105, 1
        %s496 = scalar_lea.sflag [#allocation4], %s495
        %s497 = sand.u32 %s105, 1
        %s498 = smul.addr %s497, 384
        %s499 = scalar_lea.vmem [#allocation3], %s498
        // Predicated region
        $region69: #{tpu_custom_call.1} parent=67 // pred_check
          %p500 = pneg %p118
        $region70: #{tpu_custom_call.1} parent=67 // pred_check_branch
          %502 = sbr.rel (%p500) target = $region72
        $region71: #{tpu_custom_call.1} parent=67 // pred_region
          %503 = dma.done %s496, 6144
        $region72: #{tpu_custom_call.1} parent=67 // pred_fallthru
          _
        %s504 = sand.u32 %s34, 1
        %s505 = scalar_lea.sflag [#allocation7], %s504
        %s506 = sand.u32 %s131, 1
        %s507 = smul.addr %s506, 128
        %s508 = scalar_lea.vmem [#allocation6], %s507
        // Predicated region
        $region73: #{tpu_custom_call.1} parent=67 // pred_check
          %p509 = pneg %p144
        $region74: #{tpu_custom_call.1} parent=67 // pred_check_branch
          %511 = sbr.rel (%p509) target = $region76
        $region75: #{tpu_custom_call.1} parent=67 // pred_region
          %512 = dma.done %s505, 2048
        $region76: #{tpu_custom_call.1} parent=67 // pred_fallthru
          _
        %s513 = sand.u32 %s34, 1
        %s514 = scalar_lea.sflag [#allocation7], %s513
        %s515 = sand.u32 %s157, 1
        %s516 = smul.addr %s515, 256
        %s517 = scalar_lea.vmem [#allocation8], %s516
        // Predicated region
        $region77: #{tpu_custom_call.1} parent=67 // pred_check
          %p518 = pneg %p170
        $region78: #{tpu_custom_call.1} parent=67 // pred_check_branch
          %520 = sbr.rel (%p518) target = $region80
        $region79: #{tpu_custom_call.1} parent=67 // pred_region
          %521 = dma.done %s514, 4096
        $region80: #{tpu_custom_call.1} parent=67 // pred_fallthru
          _
        %s522 = sand.u32 %s34, 1
        %s523 = scalar_lea.sflag [#allocation10], %s522
        %s524 = sand.u32 %s209, 1
        %s525 = smul.addr %s524, 256
        %s526 = scalar_lea.vmem [#allocation9], %s525
        // Predicated region
        $region81: #{tpu_custom_call.1} parent=67 // pred_check
          %p527 = pneg %p222
        $region82: #{tpu_custom_call.1} parent=67 // pred_check_branch
          %529 = sbr.rel (%p527) target = $region84
        $region83: #{tpu_custom_call.1} parent=67 // pred_region
          %530 = dma.done %s523, 4096
        $region84: #{tpu_custom_call.1} parent=67 // pred_fallthru
          _
        // Predicated region
        $region85: #{tpu_custom_call.1} parent=67 // pred_check
          %p531 = pneg %p269
        $region86: #{tpu_custom_call.1} parent=67 // pred_check_branch
          %533 = sbr.rel (%p531) target = $region88
        $region87: #{tpu_custom_call.1} parent=67 // pred_region
          %534 = dma.done [#allocation10], 2048
        $region88: #{tpu_custom_call.1} parent=67 // pred_fallthru
          _
        // Predicated region
        $region89: #{tpu_custom_call.1} parent=67 // pred_check
          %p535 = pneg %p290
        $region90: #{tpu_custom_call.1} parent=67 // pred_check_branch
          %537 = sbr.rel (%p535) target = $region92
        $region91: #{tpu_custom_call.1} parent=67 // pred_region
          %538 = dma.done [#allocation13], 2048
        $region92: #{tpu_custom_call.1} parent=67 // pred_fallthru
          _
        %p539 = pneg %p50
        %p540 = pneg %p47
        %p541 = pneg %p71
        %p542 = pneg %p68
        %p543 = pneg %p92
        %p544 = pneg %p89
        %s545 = sand.u32 %s105, 1
        %s546 = scalar_lea.sflag [#allocation4], %s545
        %s547 = sand.u32 %s105, 1
        %s548 = smul.addr %s547, 384
        %s549 = scalar_lea.vmem [#allocation3], %s548
        %p550 = pneg %p118
        %p551 = pneg %p115
        %s552 = sand.u32 %s34, 1
        %s553 = scalar_lea.sflag [#allocation7], %s552
        %s554 = sand.u32 %s131, 1
        %s555 = smul.addr %s554, 128
        %s556 = scalar_lea.vmem [#allocation6], %s555
        %p557 = pneg %p144
        %p558 = pneg %p141
        %s559 = sand.u32 %s34, 1
        %s560 = scalar_lea.sflag [#allocation7], %s559
        %s561 = sand.u32 %s157, 1
        %s562 = smul.addr %s561, 256
        %s563 = scalar_lea.vmem [#allocation8], %s562
        %p564 = pneg %p170
        %p565 = pneg %p167
        %p566 = scmp.lt.s32.totalorder %s34, 1
        %s567 = scalar_select %p566, %s34, 1
        %s568 = smul.addr %s567, 2
        %s569 = scalar_lea.vmem %s6, %s568
        %p570 = pneg %p196
        %p571 = pneg %p193
        %s572 = sand.u32 %s34, 1
        %s573 = scalar_lea.sflag [#allocation10], %s572
        %s574 = sand.u32 %s209, 1
        %s575 = smul.addr %s574, 256
        %s576 = scalar_lea.vmem [#allocation9], %s575
        %p577 = pneg %p222
        %p578 = pneg %p219
        %p579 = scmp.lt.s32.totalorder %s34, 1
        %s580 = scalar_select %p579, %s34, 1
        %s581 = smul.addr %s580, 2
        %s582 = smul.addr %s581, 8
        %s583 = scalar_lea.vmem %s8, %s582
        %p584 = pneg %p248
        %p585 = pneg %p245
        %p586 = pneg %p269
        %p587 = pneg %p266
        %p588 = pneg %p290
        %p589 = pneg %p287
        %p590 = pneg %p311
        %p591 = pneg %p308
        %p592 = pneg %p332
        %p593 = pneg %p329
        %p594 = scmp.lt.s32.totalorder %s34, 1
        %s595 = scalar_select %p594, %s34, 1
        %s596 = smul.addr %s595, 2
        %s597 = scalar_lea.vmem %s6, %s596
        %p598 = scmp.lt.s32.totalorder %s34, 1
        %s599 = scalar_select %p598, %s34, 1
        %s600 = smul.addr %s599, 2
        %s601 = smul.addr %s600, 8
        %s602 = scalar_lea.vmem %s8, %s601
        %p603 = scmp.eq.s32.totalorder %s34, 0
        // Predicated region
        $region93: #{tpu_custom_call.1} parent=67 // pred_check
          %p604 = pneg %p603
        $region94: #{tpu_custom_call.1} parent=67 // pred_check_branch
          %606 = sbr.rel (%p604) target = $region96
        $region95: #{tpu_custom_call.1} parent=67 // pred_region
          %v607 = vld [vmem:[%s0] sm:$0xff]
          %v608 = vld [vmem:[%s0 + $0x8] sm:$0xff]
          %v609 = vld [vmem:[%s1] sm:$0xff]
          %v610 = vadd.f32 %v607, %v609
          %v611 = vadd.f32 %v608, %v609
          %v612 = vld [vmem:[%s2] sm:$0x1]
          %v613 = vld [vmem:[%s2 + $0x1] sm:$0x1]
          %614 = vadd.xlane.f32.xlu0 %v610
          %v615 = vpop.xlane.xlu0 %614
          %616 = vadd.xlane.f32.xlu0 %v611
          %v617 = vpop.xlane.xlu0 %616
          %v618 = vrcp.pop 128.0
          %v619 = vmul.f32 %v615, %v618
          %v620 = vmul.f32 %v617, %v618
          %v621 = vsub.f32 %v610, %v619
          %v622 = vsub.f32 %v611, %v620
          %v623 = vmul.f32 %v621, %v621
          %v624 = vmul.f32 %v622, %v622
          %625 = vadd.xlane.f32.xlu0 %v623
          %v626 = vpop.xlane.xlu0 %625
          %627 = vadd.xlane.f32.xlu0 %v624
          %v628 = vpop.xlane.xlu0 %627
          %v629 = vmul.f32 %v626, %v618
          %v630 = vmul.f32 %v628, %v618
          %v631 = vadd.f32 %v629, 1e-12
          %v632 = vadd.f32 %v630, 1e-12
          %v633 = vrsqrt.pop %v631
          %v634 = vrsqrt.pop %v632
          %v635 = vmul.f32 %v621, %v633
          %v636 = vmul.f32 %v622, %v634
          %v637 = vlaneseq
          %v638 = vshrl.u32 %v637, 7
          %v639 = vsub.s32 0, %v638
          %v640 = vrot.slane %v612, %v639
          %v641 = vmul.f32 %v635, %v640
          %v642 = vmul.f32 %v636, %v640
          %v643 = vlaneseq
          %v644 = vshrl.u32 %v643, 7
          %v645 = vsub.s32 0, %v644
          %v646 = vrot.slane %v613, %v645
          %v647 = vadd.f32 %v641, %v646
          %v648 = vadd.f32 %v642, %v646
          %649 = vst [vmem:[#allocation2] sm:$0xff] %v647
          %650 = vst [vmem:[#allocation2 + $0x8] sm:$0xff] %v648
        $region96: #{tpu_custom_call.1} parent=67 // pred_fallthru
          _
        %v651 = vld [vmem:[#allocation2] sm:$0xff]
        %v652 = vld [vmem:[#allocation2 + $0x8] sm:$0xff]
        %v653 = vld [vmem:[%s499] sm:$0xff]
        %v654 = vld [vmem:[%s499 + $0x8] sm:$0xff]
        %v655 = vld [vmem:[%s499 + $0x10] sm:$0xff]
        %v656 = vld [vmem:[%s499 + $0x18] sm:$0xff]
        %v657 = vld [vmem:[%s499 + $0x20] sm:$0xff]
        %v658 = vld [vmem:[%s499 + $0x28] sm:$0xff]
        %v659 = vld [vmem:[%s499 + $0x30] sm:$0xff]
        %v660 = vld [vmem:[%s499 + $0x38] sm:$0xff]
        %v661 = vld [vmem:[%s499 + $0x40] sm:$0xff]
        %v662 = vld [vmem:[%s499 + $0x48] sm:$0xff]
        %v663 = vld [vmem:[%s499 + $0x50] sm:$0xff]
        %v664 = vld [vmem:[%s499 + $0x58] sm:$0xff]
        %v665 = vld [vmem:[%s499 + $0x60] sm:$0xff]
        %v666 = vld [vmem:[%s499 + $0x68] sm:$0xff]
        %v667 = vld [vmem:[%s499 + $0x70] sm:$0xff]
        %v668 = vld [vmem:[%s499 + $0x78] sm:$0xff]
        %v669 = vld [vmem:[%s499 + $0x80] sm:$0xff]
        %v670 = vld [vmem:[%s499 + $0x88] sm:$0xff]
        %v671 = vld [vmem:[%s499 + $0x90] sm:$0xff]
        %v672 = vld [vmem:[%s499 + $0x98] sm:$0xff]
        %v673 = vld [vmem:[%s499 + $0xa0] sm:$0xff]
        %v674 = vld [vmem:[%s499 + $0xa8] sm:$0xff]
        %v675 = vld [vmem:[%s499 + $0xb0] sm:$0xff]
        %v676 = vld [vmem:[%s499 + $0xb8] sm:$0xff]
        %v677 = vld [vmem:[%s499 + $0xc0] sm:$0xff]
        %v678 = vld [vmem:[%s499 + $0xc8] sm:$0xff]
        %v679 = vld [vmem:[%s499 + $0xd0] sm:$0xff]
        %v680 = vld [vmem:[%s499 + $0xd8] sm:$0xff]
        %v681 = vld [vmem:[%s499 + $0xe0] sm:$0xff]
        %v682 = vld [vmem:[%s499 + $0xe8] sm:$0xff]
        %v683 = vld [vmem:[%s499 + $0xf0] sm:$0xff]
        %v684 = vld [vmem:[%s499 + $0xf8] sm:$0xff]
        %v685 = vld [vmem:[%s499 + $0x100] sm:$0xff]
        %v686 = vld [vmem:[%s499 + $0x108] sm:$0xff]
        %v687 = vld [vmem:[%s499 + $0x110] sm:$0xff]
        %v688 = vld [vmem:[%s499 + $0x118] sm:$0xff]
        %v689 = vld [vmem:[%s499 + $0x120] sm:$0xff]
        %v690 = vld [vmem:[%s499 + $0x128] sm:$0xff]
        %v691 = vld [vmem:[%s499 + $0x130] sm:$0xff]
        %v692 = vld [vmem:[%s499 + $0x138] sm:$0xff]
        %v693 = vld [vmem:[%s499 + $0x140] sm:$0xff]
        %v694 = vld [vmem:[%s499 + $0x148] sm:$0xff]
        %v695 = vld [vmem:[%s499 + $0x150] sm:$0xff]
        %v696 = vld [vmem:[%s499 + $0x158] sm:$0xff]
        %v697 = vld [vmem:[%s499 + $0x160] sm:$0xff]
        %v698 = vld [vmem:[%s499 + $0x168] sm:$0xff]
        %v699 = vld [vmem:[%s499 + $0x170] sm:$0xff]
        %v700 = vld [vmem:[%s499 + $0x178] sm:$0xff]
        %701 = vmatprep.subr.mxu0 %v699
        %702 = vmatpush1.msra.mxu0 %v698
        %703 = vmatprep.subr.mxu0 %v696
        %704 = vmatpush1.msra.mxu0 %v695
        %705 = vmatprep.subr.mxu0 %v693
        %706 = vmatpush1.msra.mxu0 %v692
        %707 = vmatprep.subr.mxu0 %v690
        %708 = vmatpush1.msra.mxu0 %v689
        %709 = vmatprep.subr.mxu0 %v687
        %710 = vmatpush1.msra.mxu0 %v686
        %711 = vmatprep.subr.mxu0 %v684
        %712 = vmatpush1.msra.mxu0 %v683
        %713 = vmatprep.subr.mxu0 %v681
        %714 = vmatpush1.msra.mxu0 %v680
        %715 = vmatprep.subr.mxu0 %v678
        %716 = vmatpush1.msra.mxu0 %v677
        %717 = vmatprep.subr.mxu0 %v675
        %718 = vmatpush1.msra.mxu0 %v674
        %719 = vmatprep.subr.mxu0 %v672
        %720 = vmatpush1.msra.mxu0 %v671
        %721 = vmatprep.subr.mxu0 %v669
        %722 = vmatpush1.msra.mxu0 %v668
        %723 = vmatprep.subr.mxu0 %v666
        %724 = vmatpush1.msra.mxu0 %v665
        %725 = vmatprep.subr.mxu0 %v663
        %726 = vmatpush1.msra.mxu0 %v662
        %727 = vmatprep.subr.mxu0 %v660
        %728 = vmatpush1.msra.mxu0 %v659
        %729 = vmatprep.subr.mxu0 %v657
        %730 = vmatpush1.msra.mxu0 %v656
        %731 = vmatprep.subr.mxu0 %v654
        %732 = vmatpush1.msra.mxu0 %v653
        %733 = vmatprep.subr.mxu0 0.0
        %734 = vmatpush2.msra.mxu0 0.0
        %735 = vmatprep.subr.mxu0 0.0
        %736 = vmatpush2.msra.mxu0 0.0
        %737 = vmatprep.subr.mxu0 0.0
        %738 = vmatpush2.msra.mxu0 0.0
        %739 = vmatprep.subr.mxu0 0.0
        %740 = vmatpush2.msra.mxu0 0.0
        %741 = vmatprep.subr.mxu0 0.0
        %742 = vmatpush2.msra.mxu0 0.0
        %743 = vmatprep.subr.mxu0 0.0
        %744 = vmatpush2.msra.mxu0 0.0
        %745 = vmatprep.subr.mxu0 0.0
        %746 = vmatpush2.msra.mxu0 0.0
        %747 = vmatprep.subr.mxu0 0.0
        %748 = vmatpush2.msra.mxu0 0.0
        %749 = vmatprep.subr.mxu0 0.0
        %750 = vmatpush2.msra.mxu0 0.0
        %751 = vmatprep.subr.mxu0 0.0
        %752 = vmatpush2.msra.mxu0 0.0
        %753 = vmatprep.subr.mxu0 0.0
        %754 = vmatpush2.msra.mxu0 0.0
        %755 = vmatprep.subr.mxu0 0.0
        %756 = vmatpush2.msra.mxu0 0.0
        %757 = vmatprep.subr.mxu0 0.0
        %758 = vmatpush2.msra.mxu0 0.0
        %759 = vmatprep.subr.mxu0 0.0
        %760 = vmatpush2.msra.mxu0 0.0
        %761 = vmatprep.subr.mxu0 0.0
        %762 = vmatpush2.msra.mxu0 0.0
        %763 = vmatprep.subr.mxu0 0.0
        %764 = vmatpush2.msra.mxu0 0.0
        %765 = vmatprep.mubr.f32.mxu0 0.0
        %766 = vmatmul.mubr.f32.gmra.mxu0 %v651
        %v767 = vpop.f32.mrf.mxu0
        %v768 = vadd.f32 0.0, %v767
        %v769 = vpop.f32.mrf.mxu0
        %v770 = vadd.f32 0.0, %v769
        %771 = vmatprep.mubr.f32.mxu0 0.0
        %772 = vmatmul.mubr.f32.gmra.mxu0 %v652
        %v773 = vpop.f32.mrf.mxu0
        %v774 = vadd.f32 0.0, %v773
        %v775 = vpop.f32.mrf.mxu0
        %v776 = vadd.f32 0.0, %v775
        %777 = vdwg.mxu0
        %778 = vmatprep.subr.mxu0 0.0
        %779 = vmatpush1.msra.mxu0 %v700
        %780 = vmatprep.subr.mxu0 0.0
        %781 = vmatpush1.msra.mxu0 %v697
        %782 = vmatprep.subr.mxu0 0.0
        %783 = vmatpush1.msra.mxu0 %v694
        %784 = vmatprep.subr.mxu0 0.0
        %785 = vmatpush1.msra.mxu0 %v691
        %786 = vmatprep.subr.mxu0 0.0
        %787 = vmatpush1.msra.mxu0 %v688
        %788 = vmatprep.subr.mxu0 0.0
        %789 = vmatpush1.msra.mxu0 %v685
        %790 = vmatprep.subr.mxu0 0.0
        %791 = vmatpush1.msra.mxu0 %v682
        %792 = vmatprep.subr.mxu0 0.0
        %793 = vmatpush1.msra.mxu0 %v679
        %794 = vmatprep.subr.mxu0 0.0
        %795 = vmatpush1.msra.mxu0 %v676
        %796 = vmatprep.subr.mxu0 0.0
        %797 = vmatpush1.msra.mxu0 %v673
        %798 = vmatprep.subr.mxu0 0.0
        %799 = vmatpush1.msra.mxu0 %v670
        %800 = vmatprep.subr.mxu0 0.0
        %801 = vmatpush1.msra.mxu0 %v667
        %802 = vmatprep.subr.mxu0 0.0
        %803 = vmatpush1.msra.mxu0 %v664
        %804 = vmatprep.subr.mxu0 0.0
        %805 = vmatpush1.msra.mxu0 %v661
        %806 = vmatprep.subr.mxu0 0.0
        %807 = vmatpush1.msra.mxu0 %v658
        %808 = vmatprep.subr.mxu0 0.0
        %809 = vmatpush1.msra.mxu0 %v655
        %810 = vmatprep.subr.mxu0 0.0
        %811 = vmatpush2.msra.mxu0 0.0
        %812 = vmatprep.subr.mxu0 0.0
        %813 = vmatpush2.msra.mxu0 0.0
        %814 = vmatprep.subr.mxu0 0.0
        %815 = vmatpush2.msra.mxu0 0.0
        %816 = vmatprep.subr.mxu0 0.0
        %817 = vmatpush2.msra.mxu0 0.0
        %818 = vmatprep.subr.mxu0 0.0
        %819 = vmatpush2.msra.mxu0 0.0
        %820 = vmatprep.subr.mxu0 0.0
        %821 = vmatpush2.msra.mxu0 0.0
        %822 = vmatprep.subr.mxu0 0.0
        %823 = vmatpush2.msra.mxu0 0.0
        %824 = vmatprep.subr.mxu0 0.0
        %825 = vmatpush2.msra.mxu0 0.0
        %826 = vmatprep.subr.mxu0 0.0
        %827 = vmatpush2.msra.mxu0 0.0
        %828 = vmatprep.subr.mxu0 0.0
        %829 = vmatpush2.msra.mxu0 0.0
        %830 = vmatprep.subr.mxu0 0.0
        %831 = vmatpush2.msra.mxu0 0.0
        %832 = vmatprep.subr.mxu0 0.0
        %833 = vmatpush2.msra.mxu0 0.0
        %834 = vmatprep.subr.mxu0 0.0
        %835 = vmatpush2.msra.mxu0 0.0
        %836 = vmatprep.subr.mxu0 0.0
        %837 = vmatpush2.msra.mxu0 0.0
        %838 = vmatprep.subr.mxu0 0.0
        %839 = vmatpush2.msra.mxu0 0.0
        %840 = vmatprep.subr.mxu0 0.0
        %841 = vmatpush2.msra.mxu0 0.0
        %842 = vmatprep.mubr.f32.mxu0 0.0
        %843 = vmatmul.mubr.f32.gmra.mxu0 %v651
        %v844 = vpop.f32.mrf.mxu0
        %v845 = vadd.f32 0.0, %v844
        %v846 = vpop.f32.mrf.mxu0
        %847 = vmatprep.mubr.f32.mxu0 0.0
        %848 = vmatmul.mubr.f32.gmra.mxu0 %v652
        %v849 = vpop.f32.mrf.mxu0
        %v850 = vadd.f32 0.0, %v849
        %v851 = vpop.f32.mrf.mxu0
        %852 = vdwg.mxu0
        %v853 = vld [vmem:[%s602] sm:$0x1]
        %v854 = vlaneseq
        %v855 = vshrl.u32 %v854, 7
        %v856 = vsub.s32 0, %v855
        %v857 = vrot.slane %v853, %v856
        %v858 = vadd.f32 %v768, %v857
        %v859 = vadd.f32 %v774, %v857
        %v860 = vmul.f32 %v858, 0.17677669
        %v861 = vmul.f32 %v859, 0.17677669
        %v862 = vld [vmem:[%s602 + $0x1] sm:$0x1]
        %v863 = vlaneseq
        %v864 = vshrl.u32 %v863, 7
        %v865 = vsub.s32 0, %v864
        %v866 = vrot.slane %v862, %v865
        %v867 = vadd.f32 %v770, %v866
        %v868 = vadd.f32 %v776, %v866
        %v869 = vld [vmem:[%s602 + $0x2] sm:$0x1]
        %v870 = vlaneseq
        %v871 = vshrl.u32 %v870, 7
        %v872 = vsub.s32 0, %v871
        %v873 = vrot.slane %v869, %v872
        %v874 = vadd.f32 %v845, %v873
        %v875 = vadd.f32 %v850, %v873
        %vm876 = vcmask 261120
        %v878 = vsel %vm876, %v860, 0
        %v881 = vsel %vm876, %v867, 0
        %883 = vmatprep.subr.mxu0 0.0
        %884 = vmatpush1.xpose.msra.mxu0 0.0
        %885 = vmatprep.subr.mxu0 0.0
        %886 = vmatpush1.xpose.msra.mxu0 0.0
        %887 = vmatprep.subr.mxu0 0.0
        %888 = vmatpush1.xpose.msra.mxu0 0.0
        %889 = vmatprep.subr.mxu0 0.0
        %890 = vmatpush1.xpose.msra.mxu0 0.0
        %891 = vmatprep.subr.mxu0 0.0
        %892 = vmatpush1.xpose.msra.mxu0 0.0
        %893 = vmatprep.subr.mxu0 0.0
        %894 = vmatpush1.xpose.msra.mxu0 0.0
        %895 = vmatprep.subr.mxu0 0.0
        %896 = vmatpush1.xpose.msra.mxu0 0.0
        %897 = vmatprep.subr.mxu0 0.0
        %898 = vmatpush1.xpose.msra.mxu0 0.0
        %899 = vmatprep.subr.mxu0 0.0
        %900 = vmatpush1.xpose.msra.mxu0 0.0
        %901 = vmatprep.subr.mxu0 0.0
        %902 = vmatpush1.xpose.msra.mxu0 0.0
        %903 = vmatprep.subr.mxu0 0.0
        %904 = vmatpush1.xpose.msra.mxu0 0.0
        %905 = vmatprep.subr.mxu0 0.0
        %906 = vmatpush1.xpose.msra.mxu0 0.0
        %907 = vmatprep.subr.mxu0 0.0
        %908 = vmatpush1.xpose.msra.mxu0 0.0
        %909 = vmatprep.subr.mxu0 0.0
        %910 = vmatpush1.xpose.msra.mxu0 0.0
        %911 = vmatprep.subr.mxu0 0.0
        %912 = vmatpush1.xpose.msra.mxu0 0.0
        %913 = vmatprep.subr.mxu0 0.0
        %914 = vmatpush1.xpose.msra.mxu0 %v881
        %915 = vmatprep.subr.mxu0 0.0
        %916 = vmatpush2.xpose.msra.mxu0 0.0
        %917 = vmatprep.subr.mxu0 0.0
        %918 = vmatpush2.xpose.msra.mxu0 0.0
        %919 = vmatprep.subr.mxu0 0.0
        %920 = vmatpush2.xpose.msra.mxu0 0.0
        %921 = vmatprep.subr.mxu0 0.0
        %922 = vmatpush2.xpose.msra.mxu0 0.0
        %923 = vmatprep.subr.mxu0 0.0
        %924 = vmatpush2.xpose.msra.mxu0 0.0
        %925 = vmatprep.subr.mxu0 0.0
        %926 = vmatpush2.xpose.msra.mxu0 0.0
        %927 = vmatprep.subr.mxu0 0.0
        %928 = vmatpush2.xpose.msra.mxu0 0.0
        %929 = vmatprep.subr.mxu0 0.0
        %930 = vmatpush2.xpose.msra.mxu0 0.0
        %931 = vmatprep.subr.mxu0 0.0
        %932 = vmatpush2.xpose.msra.mxu0 0.0
        %933 = vmatprep.subr.mxu0 0.0
        %934 = vmatpush2.xpose.msra.mxu0 0.0
        %935 = vmatprep.subr.mxu0 0.0
        %936 = vmatpush2.xpose.msra.mxu0 0.0
        %937 = vmatprep.subr.mxu0 0.0
        %938 = vmatpush2.xpose.msra.mxu0 0.0
        %939 = vmatprep.subr.mxu0 0.0
        %940 = vmatpush2.xpose.msra.mxu0 0.0
        %941 = vmatprep.subr.mxu0 0.0
        %942 = vmatpush2.xpose.msra.mxu0 0.0
        %943 = vmatprep.subr.mxu0 0.0
        %944 = vmatpush2.xpose.msra.mxu0 0.0
        %945 = vmatprep.subr.mxu0 0.0
        %946 = vmatpush2.xpose.msra.mxu0 0.0
        %947 = vmatprep.mubr.f32.mxu0 0.0
        %948 = vmatmul.mubr.f32.gmra.mxu0 %v878
        %v949 = vpop.f32.mrf.mxu0
        %v950 = vadd.f32 0.0, %v949
        %v951 = vpop.f32.mrf.mxu0
        %952 = vdwg.mxu0
        %v954 = vsel %vm876, %v861, 0
        %v957 = vsel %vm876, %v868, 0
        %959 = vmatprep.subr.mxu0 0.0
        %960 = vmatpush1.xpose.msra.mxu0 0.0
        %961 = vmatprep.subr.mxu0 0.0
        %962 = vmatpush1.xpose.msra.mxu0 0.0
        %963 = vmatprep.subr.mxu0 0.0
        %964 = vmatpush1.xpose.msra.mxu0 0.0
        %965 = vmatprep.subr.mxu0 0.0
        %966 = vmatpush1.xpose.msra.mxu0 0.0
        %967 = vmatprep.subr.mxu0 0.0
        %968 = vmatpush1.xpose.msra.mxu0 0.0
        %969 = vmatprep.subr.mxu0 0.0
        %970 = vmatpush1.xpose.msra.mxu0 0.0
        %971 = vmatprep.subr.mxu0 0.0
        %972 = vmatpush1.xpose.msra.mxu0 0.0
        %973 = vmatprep.subr.mxu0 0.0
        %974 = vmatpush1.xpose.msra.mxu0 0.0
        %975 = vmatprep.subr.mxu0 0.0
        %976 = vmatpush1.xpose.msra.mxu0 0.0
        %977 = vmatprep.subr.mxu0 0.0
        %978 = vmatpush1.xpose.msra.mxu0 0.0
        %979 = vmatprep.subr.mxu0 0.0
        %980 = vmatpush1.xpose.msra.mxu0 0.0
        %981 = vmatprep.subr.mxu0 0.0
        %982 = vmatpush1.xpose.msra.mxu0 0.0
        %983 = vmatprep.subr.mxu0 0.0
        %984 = vmatpush1.xpose.msra.mxu0 0.0
        %985 = vmatprep.subr.mxu0 0.0
        %986 = vmatpush1.xpose.msra.mxu0 0.0
        %987 = vmatprep.subr.mxu0 0.0
        %988 = vmatpush1.xpose.msra.mxu0 0.0
        %989 = vmatprep.subr.mxu0 0.0
        %990 = vmatpush1.xpose.msra.mxu0 %v957
        %991 = vmatprep.subr.mxu0 0.0
        %992 = vmatpush2.xpose.msra.mxu0 0.0
        %993 = vmatprep.subr.mxu0 0.0
        %994 = vmatpush2.xpose.msra.mxu0 0.0
        %995 = vmatprep.subr.mxu0 0.0
        %996 = vmatpush2.xpose.msra.mxu0 0.0
        %997 = vmatprep.subr.mxu0 0.0
        %998 = vmatpush2.xpose.msra.mxu0 0.0
        %999 = vmatprep.subr.mxu0 0.0
        %1000 = vmatpush2.xpose.msra.mxu0 0.0
        %1001 = vmatprep.subr.mxu0 0.0
        %1002 = vmatpush2.xpose.msra.mxu0 0.0
        %1003 = vmatprep.subr.mxu0 0.0
        %1004 = vmatpush2.xpose.msra.mxu0 0.0
        %1005 = vmatprep.subr.mxu0 0.0
        %1006 = vmatpush2.xpose.msra.mxu0 0.0
        %1007 = vmatprep.subr.mxu0 0.0
        %1008 = vmatpush2.xpose.msra.mxu0 0.0
        %1009 = vmatprep.subr.mxu0 0.0
        %1010 = vmatpush2.xpose.msra.mxu0 0.0
        %1011 = vmatprep.subr.mxu0 0.0
        %1012 = vmatpush2.xpose.msra.mxu0 0.0
        %1013 = vmatprep.subr.mxu0 0.0
        %1014 = vmatpush2.xpose.msra.mxu0 0.0
        %1015 = vmatprep.subr.mxu0 0.0
        %1016 = vmatpush2.xpose.msra.mxu0 0.0
        %1017 = vmatprep.subr.mxu0 0.0
        %1018 = vmatpush2.xpose.msra.mxu0 0.0
        %1019 = vmatprep.subr.mxu0 0.0
        %1020 = vmatpush2.xpose.msra.mxu0 0.0
        %1021 = vmatprep.subr.mxu0 0.0
        %1022 = vmatpush2.xpose.msra.mxu0 0.0
        %1023 = vmatprep.mubr.f32.mxu0 0.0
        %1024 = vmatmul.mubr.f32.gmra.mxu0 %v954
        %v1025 = vpop.f32.mrf.mxu0
        %v1026 = vadd.f32 0.0, %v1025
        %v1027 = vpop.f32.mrf.mxu0
        %1028 = vdwg.mxu0
        %vm1029 = vcmask 64512
        %v1030 = vsel %vm1029, %v950, -inf
        %1031 = vmax.xlane.f32.xlu0 %v1030
        %v1032 = vpop.xlane.xlu0 %1031
        %v1033 = vsel %vm1029, %v1026, -inf
        %1034 = vmax.xlane.f32.xlu0 %v1033
        %v1035 = vpop.xlane.xlu0 %1034
        %v1036 = vsub.f32 %v950, %v1032
        %v1037 = vsub.f32 %v1026, %v1035
        %v1038 = vmul.f32 %v1036, 1.442695
        %v1039 = vpow.pop %v1038
        %v1040 = vmul.f32 %v1037, 1.442695
        %v1041 = vpow.pop %v1040
        %v1042 = vsel %vm1029, %v1039, 0.0
        %1043 = vadd.xlane.f32.xlu0 %v1042
        %v1044 = vpop.xlane.xlu0 %1043
        %v1045 = vsel %vm1029, %v1041, 0.0
        %1046 = vadd.xlane.f32.xlu0 %v1045
        %v1047 = vpop.xlane.xlu0 %1046
        %v1048 = vrcp.pop %v1044
        %v1049 = vrcp.pop %v1047
        %v1050 = vmul.f32 %v1039, %v1048
        %v1051 = vmul.f32 %v1041, %v1049
        %v1053 = vsel %vm1029, %v1050, 0
        %1055 = vmatprep.subr.mxu0 0.0
        %1056 = vmatpush1.msra.mxu0 0.0
        %1057 = vmatprep.subr.mxu0 0.0
        %1058 = vmatpush1.msra.mxu0 0.0
        %1059 = vmatprep.subr.mxu0 0.0
        %1060 = vmatpush1.msra.mxu0 0.0
        %1061 = vmatprep.subr.mxu0 0.0
        %1062 = vmatpush1.msra.mxu0 0.0
        %1063 = vmatprep.subr.mxu0 0.0
        %1064 = vmatpush1.msra.mxu0 0.0
        %1065 = vmatprep.subr.mxu0 0.0
        %1066 = vmatpush1.msra.mxu0 0.0
        %1067 = vmatprep.subr.mxu0 0.0
        %1068 = vmatpush1.msra.mxu0 0.0
        %1069 = vmatprep.subr.mxu0 0.0
        %1070 = vmatpush1.msra.mxu0 0.0
        %1071 = vmatprep.subr.mxu0 0.0
        %1072 = vmatpush1.msra.mxu0 0.0
        %1073 = vmatprep.subr.mxu0 0.0
        %1074 = vmatpush1.msra.mxu0 0.0
        %1075 = vmatprep.subr.mxu0 0.0
        %1076 = vmatpush1.msra.mxu0 0.0
        %1077 = vmatprep.subr.mxu0 0.0
        %1078 = vmatpush1.msra.mxu0 0.0
        %1079 = vmatprep.subr.mxu0 0.0
        %1080 = vmatpush1.msra.mxu0 0.0
        %1081 = vmatprep.subr.mxu0 0.0
        %1082 = vmatpush1.msra.mxu0 0.0
        %1083 = vmatprep.subr.mxu0 0.0
        %1084 = vmatpush1.msra.mxu0 0.0
        %1085 = vmatprep.subr.mxu0 0.0
        %1086 = vmatpush1.msra.mxu0 %v874
        %1087 = vmatprep.subr.mxu0 0.0
        %1088 = vmatpush2.msra.mxu0 0.0
        %1089 = vmatprep.subr.mxu0 0.0
        %1090 = vmatpush2.msra.mxu0 0.0
        %1091 = vmatprep.subr.mxu0 0.0
        %1092 = vmatpush2.msra.mxu0 0.0
        %1093 = vmatprep.subr.mxu0 0.0
        %1094 = vmatpush2.msra.mxu0 0.0
        %1095 = vmatprep.subr.mxu0 0.0
        %1096 = vmatpush2.msra.mxu0 0.0
        %1097 = vmatprep.subr.mxu0 0.0
        %1098 = vmatpush2.msra.mxu0 0.0
        %1099 = vmatprep.subr.mxu0 0.0
        %1100 = vmatpush2.msra.mxu0 0.0
        %1101 = vmatprep.subr.mxu0 0.0
        %1102 = vmatpush2.msra.mxu0 0.0
        %1103 = vmatprep.subr.mxu0 0.0
        %1104 = vmatpush2.msra.mxu0 0.0
        %1105 = vmatprep.subr.mxu0 0.0
        %1106 = vmatpush2.msra.mxu0 0.0
        %1107 = vmatprep.subr.mxu0 0.0
        %1108 = vmatpush2.msra.mxu0 0.0
        %1109 = vmatprep.subr.mxu0 0.0
        %1110 = vmatpush2.msra.mxu0 0.0
        %1111 = vmatprep.subr.mxu0 0.0
        %1112 = vmatpush2.msra.mxu0 0.0
        %1113 = vmatprep.subr.mxu0 0.0
        %1114 = vmatpush2.msra.mxu0 0.0
        %1115 = vmatprep.subr.mxu0 0.0
        %1116 = vmatpush2.msra.mxu0 0.0
        %1117 = vmatprep.subr.mxu0 0.0
        %1118 = vmatpush2.msra.mxu0 0.0
        %1119 = vmatprep.mubr.f32.mxu0 0.0
        %1120 = vmatmul.mubr.f32.gmra.mxu0 %v1053
        %v1121 = vpop.f32.mrf.mxu0
        %v1122 = vadd.f32 0.0, %v1121
        %v1123 = vpop.f32.mrf.mxu0
        %1124 = vdwg.mxu0
        %v1126 = vsel %vm1029, %v1051, 0
        %1128 = vmatprep.subr.mxu0 0.0
        %1129 = vmatpush1.msra.mxu0 0.0
        %1130 = vmatprep.subr.mxu0 0.0
        %1131 = vmatpush1.msra.mxu0 0.0
        %1132 = vmatprep.subr.mxu0 0.0
        %1133 = vmatpush1.msra.mxu0 0.0
        %1134 = vmatprep.subr.mxu0 0.0
        %1135 = vmatpush1.msra.mxu0 0.0
        %1136 = vmatprep.subr.mxu0 0.0
        %1137 = vmatpush1.msra.mxu0 0.0
        %1138 = vmatprep.subr.mxu0 0.0
        %1139 = vmatpush1.msra.mxu0 0.0
        %1140 = vmatprep.subr.mxu0 0.0
        %1141 = vmatpush1.msra.mxu0 0.0
        %1142 = vmatprep.subr.mxu0 0.0
        %1143 = vmatpush1.msra.mxu0 0.0
        %1144 = vmatprep.subr.mxu0 0.0
        %1145 = vmatpush1.msra.mxu0 0.0
        %1146 = vmatprep.subr.mxu0 0.0
        %1147 = vmatpush1.msra.mxu0 0.0
        %1148 = vmatprep.subr.mxu0 0.0
        %1149 = vmatpush1.msra.mxu0 0.0
        %1150 = vmatprep.subr.mxu0 0.0
        %1151 = vmatpush1.msra.mxu0 0.0
        %1152 = vmatprep.subr.mxu0 0.0
        %1153 = vmatpush1.msra.mxu0 0.0
        %1154 = vmatprep.subr.mxu0 0.0
        %1155 = vmatpush1.msra.mxu0 0.0
        %1156 = vmatprep.subr.mxu0 0.0
        %1157 = vmatpush1.msra.mxu0 0.0
        %1158 = vmatprep.subr.mxu0 0.0
        %1159 = vmatpush1.msra.mxu0 %v875
        %1160 = vmatprep.subr.mxu0 0.0
        %1161 = vmatpush2.msra.mxu0 0.0
        %1162 = vmatprep.subr.mxu0 0.0
        %1163 = vmatpush2.msra.mxu0 0.0
        %1164 = vmatprep.subr.mxu0 0.0
        %1165 = vmatpush2.msra.mxu0 0.0
        %1166 = vmatprep.subr.mxu0 0.0
        %1167 = vmatpush2.msra.mxu0 0.0
        %1168 = vmatprep.subr.mxu0 0.0
        %1169 = vmatpush2.msra.mxu0 0.0
        %1170 = vmatprep.subr.mxu0 0.0
        %1171 = vmatpush2.msra.mxu0 0.0
        %1172 = vmatprep.subr.mxu0 0.0
        %1173 = vmatpush2.msra.mxu0 0.0
        %1174 = vmatprep.subr.mxu0 0.0
        %1175 = vmatpush2.msra.mxu0 0.0
        %1176 = vmatprep.subr.mxu0 0.0
        %1177 = vmatpush2.msra.mxu0 0.0
        %1178 = vmatprep.subr.mxu0 0.0
        %1179 = vmatpush2.msra.mxu0 0.0
        %1180 = vmatprep.subr.mxu0 0.0
        %1181 = vmatpush2.msra.mxu0 0.0
        %1182 = vmatprep.subr.mxu0 0.0
        %1183 = vmatpush2.msra.mxu0 0.0
        %1184 = vmatprep.subr.mxu0 0.0
        %1185 = vmatpush2.msra.mxu0 0.0
        %1186 = vmatprep.subr.mxu0 0.0
        %1187 = vmatpush2.msra.mxu0 0.0
        %1188 = vmatprep.subr.mxu0 0.0
        %1189 = vmatpush2.msra.mxu0 0.0
        %1190 = vmatprep.subr.mxu0 0.0
        %1191 = vmatpush2.msra.mxu0 0.0
        %1192 = vmatprep.mubr.f32.mxu0 0.0
        %1193 = vmatmul.mubr.f32.gmra.mxu0 %v1126
        %v1194 = vpop.f32.mrf.mxu0
        %v1195 = vadd.f32 0.0, %v1194
        %v1196 = vpop.f32.mrf.mxu0
        %1197 = vdwg.mxu0
        %1198 = vrot.lane.b32.xlu0 %v860, 96
        %v1199 = vpop.permute.xlu0 %1198
        %1200 = vrot.lane.b32.xlu0 %v867, 96
        %v1201 = vpop.permute.xlu0 %1200
        %v1202 = vsel %vm876, %v1199, 0
        %v1204 = vsel %vm876, %v1201, 0
        %1206 = vmatprep.subr.mxu0 0.0
        %1207 = vmatpush1.xpose.msra.mxu0 0.0
        %1208 = vmatprep.subr.mxu0 0.0
        %1209 = vmatpush1.xpose.msra.mxu0 0.0
        %1210 = vmatprep.subr.mxu0 0.0
        %1211 = vmatpush1.xpose.msra.mxu0 0.0
        %1212 = vmatprep.subr.mxu0 0.0
        %1213 = vmatpush1.xpose.msra.mxu0 0.0
        %1214 = vmatprep.subr.mxu0 0.0
        %1215 = vmatpush1.xpose.msra.mxu0 0.0
        %1216 = vmatprep.subr.mxu0 0.0
        %1217 = vmatpush1.xpose.msra.mxu0 0.0
        %1218 = vmatprep.subr.mxu0 0.0
        %1219 = vmatpush1.xpose.msra.mxu0 0.0
        %1220 = vmatprep.subr.mxu0 0.0
        %1221 = vmatpush1.xpose.msra.mxu0 0.0
        %1222 = vmatprep.subr.mxu0 0.0
        %1223 = vmatpush1.xpose.msra.mxu0 0.0
        %1224 = vmatprep.subr.mxu0 0.0
        %1225 = vmatpush1.xpose.msra.mxu0 0.0
        %1226 = vmatprep.subr.mxu0 0.0
        %1227 = vmatpush1.xpose.msra.mxu0 0.0
        %1228 = vmatprep.subr.mxu0 0.0
        %1229 = vmatpush1.xpose.msra.mxu0 0.0
        %1230 = vmatprep.subr.mxu0 0.0
        %1231 = vmatpush1.xpose.msra.mxu0 0.0
        %1232 = vmatprep.subr.mxu0 0.0
        %1233 = vmatpush1.xpose.msra.mxu0 0.0
        %1234 = vmatprep.subr.mxu0 0.0
        %1235 = vmatpush1.xpose.msra.mxu0 0.0
        %1236 = vmatprep.subr.mxu0 0.0
        %1237 = vmatpush1.xpose.msra.mxu0 %v1204
        %1238 = vmatprep.subr.mxu0 0.0
        %1239 = vmatpush2.xpose.msra.mxu0 0.0
        %1240 = vmatprep.subr.mxu0 0.0
        %1241 = vmatpush2.xpose.msra.mxu0 0.0
        %1242 = vmatprep.subr.mxu0 0.0
        %1243 = vmatpush2.xpose.msra.mxu0 0.0
        %1244 = vmatprep.subr.mxu0 0.0
        %1245 = vmatpush2.xpose.msra.mxu0 0.0
        %1246 = vmatprep.subr.mxu0 0.0
        %1247 = vmatpush2.xpose.msra.mxu0 0.0
        %1248 = vmatprep.subr.mxu0 0.0
        %1249 = vmatpush2.xpose.msra.mxu0 0.0
        %1250 = vmatprep.subr.mxu0 0.0
        %1251 = vmatpush2.xpose.msra.mxu0 0.0
        %1252 = vmatprep.subr.mxu0 0.0
        %1253 = vmatpush2.xpose.msra.mxu0 0.0
        %1254 = vmatprep.subr.mxu0 0.0
        %1255 = vmatpush2.xpose.msra.mxu0 0.0
        %1256 = vmatprep.subr.mxu0 0.0
        %1257 = vmatpush2.xpose.msra.mxu0 0.0
        %1258 = vmatprep.subr.mxu0 0.0
        %1259 = vmatpush2.xpose.msra.mxu0 0.0
        %1260 = vmatprep.subr.mxu0 0.0
        %1261 = vmatpush2.xpose.msra.mxu0 0.0
        %1262 = vmatprep.subr.mxu0 0.0
        %1263 = vmatpush2.xpose.msra.mxu0 0.0
        %1264 = vmatprep.subr.mxu0 0.0
        %1265 = vmatpush2.xpose.msra.mxu0 0.0
        %1266 = vmatprep.subr.mxu0 0.0
        %1267 = vmatpush2.xpose.msra.mxu0 0.0
        %1268 = vmatprep.subr.mxu0 0.0
        %1269 = vmatpush2.xpose.msra.mxu0 0.0
        %1270 = vmatprep.mubr.f32.mxu0 0.0
        %1271 = vmatmul.mubr.f32.gmra.mxu0 %v1202
        %v1272 = vpop.f32.mrf.mxu0
        %v1273 = vadd.f32 0.0, %v1272
        %v1274 = vpop.f32.mrf.mxu0
        %1275 = vdwg.mxu0
        %1276 = vrot.lane.b32.xlu0 %v861, 96
        %v1277 = vpop.permute.xlu0 %1276
        %1278 = vrot.lane.b32.xlu0 %v868, 96
        %v1279 = vpop.permute.xlu0 %1278
        %v1280 = vsel %vm876, %v1277, 0
        %v1282 = vsel %vm876, %v1279, 0
        %1284 = vmatprep.subr.mxu0 0.0
        %1285 = vmatpush1.xpose.msra.mxu0 0.0
        %1286 = vmatprep.subr.mxu0 0.0
        %1287 = vmatpush1.xpose.msra.mxu0 0.0
        %1288 = vmatprep.subr.mxu0 0.0
        %1289 = vmatpush1.xpose.msra.mxu0 0.0
        %1290 = vmatprep.subr.mxu0 0.0
        %1291 = vmatpush1.xpose.msra.mxu0 0.0
        %1292 = vmatprep.subr.mxu0 0.0
        %1293 = vmatpush1.xpose.msra.mxu0 0.0
        %1294 = vmatprep.subr.mxu0 0.0
        %1295 = vmatpush1.xpose.msra.mxu0 0.0
        %1296 = vmatprep.subr.mxu0 0.0
        %1297 = vmatpush1.xpose.msra.mxu0 0.0
        %1298 = vmatprep.subr.mxu0 0.0
        %1299 = vmatpush1.xpose.msra.mxu0 0.0
        %1300 = vmatprep.subr.mxu0 0.0
        %1301 = vmatpush1.xpose.msra.mxu0 0.0
        %1302 = vmatprep.subr.mxu0 0.0
        %1303 = vmatpush1.xpose.msra.mxu0 0.0
        %1304 = vmatprep.subr.mxu0 0.0
        %1305 = vmatpush1.xpose.msra.mxu0 0.0
        %1306 = vmatprep.subr.mxu0 0.0
        %1307 = vmatpush1.xpose.msra.mxu0 0.0
        %1308 = vmatprep.subr.mxu0 0.0
        %1309 = vmatpush1.xpose.msra.mxu0 0.0
        %1310 = vmatprep.subr.mxu0 0.0
        %1311 = vmatpush1.xpose.msra.mxu0 0.0
        %1312 = vmatprep.subr.mxu0 0.0
        %1313 = vmatpush1.xpose.msra.mxu0 0.0
        %1314 = vmatprep.subr.mxu0 0.0
        %1315 = vmatpush1.xpose.msra.mxu0 %v1282
        %1316 = vmatprep.subr.mxu0 0.0
        %1317 = vmatpush2.xpose.msra.mxu0 0.0
        %1318 = vmatprep.subr.mxu0 0.0
        %1319 = vmatpush2.xpose.msra.mxu0 0.0
        %1320 = vmatprep.subr.mxu0 0.0
        %1321 = vmatpush2.xpose.msra.mxu0 0.0
        %1322 = vmatprep.subr.mxu0 0.0
        %1323 = vmatpush2.xpose.msra.mxu0 0.0
        %1324 = vmatprep.subr.mxu0 0.0
        %1325 = vmatpush2.xpose.msra.mxu0 0.0
        %1326 = vmatprep.subr.mxu0 0.0
        %1327 = vmatpush2.xpose.msra.mxu0 0.0
        %1328 = vmatprep.subr.mxu0 0.0
        %1329 = vmatpush2.xpose.msra.mxu0 0.0
        %1330 = vmatprep.subr.mxu0 0.0
        %1331 = vmatpush2.xpose.msra.mxu0 0.0
        %1332 = vmatprep.subr.mxu0 0.0
        %1333 = vmatpush2.xpose.msra.mxu0 0.0
        %1334 = vmatprep.subr.mxu0 0.0
        %1335 = vmatpush2.xpose.msra.mxu0 0.0
        %1336 = vmatprep.subr.mxu0 0.0
        %1337 = vmatpush2.xpose.msra.mxu0 0.0
        %1338 = vmatprep.subr.mxu0 0.0
        %1339 = vmatpush2.xpose.msra.mxu0 0.0
        %1340 = vmatprep.subr.mxu0 0.0
        %1341 = vmatpush2.xpose.msra.mxu0 0.0
        %1342 = vmatprep.subr.mxu0 0.0
        %1343 = vmatpush2.xpose.msra.mxu0 0.0
        %1344 = vmatprep.subr.mxu0 0.0
        %1345 = vmatpush2.xpose.msra.mxu0 0.0
        %1346 = vmatprep.subr.mxu0 0.0
        %1347 = vmatpush2.xpose.msra.mxu0 0.0
        %1348 = vmatprep.mubr.f32.mxu0 0.0
        %1349 = vmatmul.mubr.f32.gmra.mxu0 %v1280
        %v1350 = vpop.f32.mrf.mxu0
        %v1351 = vadd.f32 0.0, %v1350
        %v1352 = vpop.f32.mrf.mxu0
        %1353 = vdwg.mxu0
        %v1354 = vsel %vm1029, %v1273, -inf
        %1355 = vmax.xlane.f32.xlu0 %v1354
        %v1356 = vpop.xlane.xlu0 %1355
        %v1357 = vsel %vm1029, %v1351, -inf
        %1358 = vmax.xlane.f32.xlu0 %v1357
        %v1359 = vpop.xlane.xlu0 %1358
        %v1360 = vsub.f32 %v1273, %v1356
        %v1361 = vsub.f32 %v1351, %v1359
        %v1362 = vmul.f32 %v1360, 1.442695
        %v1363 = vpow.pop %v1362
        %v1364 = vmul.f32 %v1361, 1.442695
        %v1365 = vpow.pop %v1364
        %v1366 = vsel %vm1029, %v1363, 0.0
        %1367 = vadd.xlane.f32.xlu0 %v1366
        %v1368 = vpop.xlane.xlu0 %1367
        %v1369 = vsel %vm1029, %v1365, 0.0
        %1370 = vadd.xlane.f32.xlu0 %v1369
        %v1371 = vpop.xlane.xlu0 %1370
        %v1372 = vrcp.pop %v1368
        %v1373 = vrcp.pop %v1371
        %v1374 = vmul.f32 %v1363, %v1372
        %v1375 = vmul.f32 %v1365, %v1373
        %1377 = vrot.lane.b32.xlu0 %v874, 96
        %v1378 = vpop.permute.xlu0 %1377
        %v1381 = vsel %vm1029, %v1374, 0
        %1383 = vmatprep.subr.mxu0 0.0
        %1384 = vmatpush1.msra.mxu0 0.0
        %1385 = vmatprep.subr.mxu0 0.0
        %1386 = vmatpush1.msra.mxu0 0.0
        %1387 = vmatprep.subr.mxu0 0.0
        %1388 = vmatpush1.msra.mxu0 0.0
        %1389 = vmatprep.subr.mxu0 0.0
        %1390 = vmatpush1.msra.mxu0 0.0
        %1391 = vmatprep.subr.mxu0 0.0
        %1392 = vmatpush1.msra.mxu0 0.0
        %1393 = vmatprep.subr.mxu0 0.0
        %1394 = vmatpush1.msra.mxu0 0.0
        %1395 = vmatprep.subr.mxu0 0.0
        %1396 = vmatpush1.msra.mxu0 0.0
        %1397 = vmatprep.subr.mxu0 0.0
        %1398 = vmatpush1.msra.mxu0 0.0
        %1399 = vmatprep.subr.mxu0 0.0
        %1400 = vmatpush1.msra.mxu0 0.0
        %1401 = vmatprep.subr.mxu0 0.0
        %1402 = vmatpush1.msra.mxu0 0.0
        %1403 = vmatprep.subr.mxu0 0.0
        %1404 = vmatpush1.msra.mxu0 0.0
        %1405 = vmatprep.subr.mxu0 0.0
        %1406 = vmatpush1.msra.mxu0 0.0
        %1407 = vmatprep.subr.mxu0 0.0
        %1408 = vmatpush1.msra.mxu0 0.0
        %1409 = vmatprep.subr.mxu0 0.0
        %1410 = vmatpush1.msra.mxu0 0.0
        %1411 = vmatprep.subr.mxu0 0.0
        %1412 = vmatpush1.msra.mxu0 0.0
        %1413 = vmatprep.subr.mxu0 0.0
        %1414 = vmatpush1.msra.mxu0 %v1378
        %1415 = vmatprep.subr.mxu0 0.0
        %1416 = vmatpush2.msra.mxu0 0.0
        %1417 = vmatprep.subr.mxu0 0.0
        %1418 = vmatpush2.msra.mxu0 0.0
        %1419 = vmatprep.subr.mxu0 0.0
        %1420 = vmatpush2.msra.mxu0 0.0
        %1421 = vmatprep.subr.mxu0 0.0
        %1422 = vmatpush2.msra.mxu0 0.0
        %1423 = vmatprep.subr.mxu0 0.0
        %1424 = vmatpush2.msra.mxu0 0.0
        %1425 = vmatprep.subr.mxu0 0.0
        %1426 = vmatpush2.msra.mxu0 0.0
        %1427 = vmatprep.subr.mxu0 0.0
        %1428 = vmatpush2.msra.mxu0 0.0
        %1429 = vmatprep.subr.mxu0 0.0
        %1430 = vmatpush2.msra.mxu0 0.0
        %1431 = vmatprep.subr.mxu0 0.0
        %1432 = vmatpush2.msra.mxu0 0.0
        %1433 = vmatprep.subr.mxu0 0.0
        %1434 = vmatpush2.msra.mxu0 0.0
        %1435 = vmatprep.subr.mxu0 0.0
        %1436 = vmatpush2.msra.mxu0 0.0
        %1437 = vmatprep.subr.mxu0 0.0
        %1438 = vmatpush2.msra.mxu0 0.0
        %1439 = vmatprep.subr.mxu0 0.0
        %1440 = vmatpush2.msra.mxu0 0.0
        %1441 = vmatprep.subr.mxu0 0.0
        %1442 = vmatpush2.msra.mxu0 0.0
        %1443 = vmatprep.subr.mxu0 0.0
        %1444 = vmatpush2.msra.mxu0 0.0
        %1445 = vmatprep.subr.mxu0 0.0
        %1446 = vmatpush2.msra.mxu0 0.0
        %1447 = vmatprep.mubr.f32.mxu0 0.0
        %1448 = vmatmul.mubr.f32.gmra.mxu0 %v1381
        %v1449 = vpop.f32.mrf.mxu0
        %v1450 = vadd.f32 0.0, %v1449
        %v1451 = vpop.f32.mrf.mxu0
        %1452 = vdwg.mxu0
        %1454 = vrot.lane.b32.xlu0 %v875, 96
        %v1455 = vpop.permute.xlu0 %1454
        %v1458 = vsel %vm1029, %v1375, 0
        %1460 = vmatprep.subr.mxu0 0.0
        %1461 = vmatpush1.msra.mxu0 0.0
        %1462 = vmatprep.subr.mxu0 0.0
        %1463 = vmatpush1.msra.mxu0 0.0
        %1464 = vmatprep.subr.mxu0 0.0
        %1465 = vmatpush1.msra.mxu0 0.0
        %1466 = vmatprep.subr.mxu0 0.0
        %1467 = vmatpush1.msra.mxu0 0.0
        %1468 = vmatprep.subr.mxu0 0.0
        %1469 = vmatpush1.msra.mxu0 0.0
        %1470 = vmatprep.subr.mxu0 0.0
        %1471 = vmatpush1.msra.mxu0 0.0
        %1472 = vmatprep.subr.mxu0 0.0
        %1473 = vmatpush1.msra.mxu0 0.0
        %1474 = vmatprep.subr.mxu0 0.0
        %1475 = vmatpush1.msra.mxu0 0.0
        %1476 = vmatprep.subr.mxu0 0.0
        %1477 = vmatpush1.msra.mxu0 0.0
        %1478 = vmatprep.subr.mxu0 0.0
        %1479 = vmatpush1.msra.mxu0 0.0
        %1480 = vmatprep.subr.mxu0 0.0
        %1481 = vmatpush1.msra.mxu0 0.0
        %1482 = vmatprep.subr.mxu0 0.0
        %1483 = vmatpush1.msra.mxu0 0.0
        %1484 = vmatprep.subr.mxu0 0.0
        %1485 = vmatpush1.msra.mxu0 0.0
        %1486 = vmatprep.subr.mxu0 0.0
        %1487 = vmatpush1.msra.mxu0 0.0
        %1488 = vmatprep.subr.mxu0 0.0
        %1489 = vmatpush1.msra.mxu0 0.0
        %1490 = vmatprep.subr.mxu0 0.0
        %1491 = vmatpush1.msra.mxu0 %v1455
        %1492 = vmatprep.subr.mxu0 0.0
        %1493 = vmatpush2.msra.mxu0 0.0
        %1494 = vmatprep.subr.mxu0 0.0
        %1495 = vmatpush2.msra.mxu0 0.0
        %1496 = vmatprep.subr.mxu0 0.0
        %1497 = vmatpush2.msra.mxu0 0.0
        %1498 = vmatprep.subr.mxu0 0.0
        %1499 = vmatpush2.msra.mxu0 0.0
        %1500 = vmatprep.subr.mxu0 0.0
        %1501 = vmatpush2.msra.mxu0 0.0
        %1502 = vmatprep.subr.mxu0 0.0
        %1503 = vmatpush2.msra.mxu0 0.0
        %1504 = vmatprep.subr.mxu0 0.0
        %1505 = vmatpush2.msra.mxu0 0.0
        %1506 = vmatprep.subr.mxu0 0.0
        %1507 = vmatpush2.msra.mxu0 0.0
        %1508 = vmatprep.subr.mxu0 0.0
        %1509 = vmatpush2.msra.mxu0 0.0
        %1510 = vmatprep.subr.mxu0 0.0
        %1511 = vmatpush2.msra.mxu0 0.0
        %1512 = vmatprep.subr.mxu0 0.0
        %1513 = vmatpush2.msra.mxu0 0.0
        %1514 = vmatprep.subr.mxu0 0.0
        %1515 = vmatpush2.msra.mxu0 0.0
        %1516 = vmatprep.subr.mxu0 0.0
        %1517 = vmatpush2.msra.mxu0 0.0
        %1518 = vmatprep.subr.mxu0 0.0
        %1519 = vmatpush2.msra.mxu0 0.0
        %1520 = vmatprep.subr.mxu0 0.0
        %1521 = vmatpush2.msra.mxu0 0.0
        %1522 = vmatprep.subr.mxu0 0.0
        %1523 = vmatpush2.msra.mxu0 0.0
        %1524 = vmatprep.mubr.f32.mxu0 0.0
        %1525 = vmatmul.mubr.f32.gmra.mxu0 %v1458
        %v1526 = vpop.f32.mrf.mxu0
        %v1527 = vadd.f32 0.0, %v1526
        %v1528 = vpop.f32.mrf.mxu0
        %1529 = vdwg.mxu0
        %1530 = vrot.lane.b32.xlu0 %v860, 64
        %v1531 = vpop.permute.xlu0 %1530
        %1532 = vrot.lane.b32.xlu0 %v867, 64
        %v1533 = vpop.permute.xlu0 %1532
        %v1534 = vsel %vm876, %v1531, 0
        %v1536 = vsel %vm876, %v1533, 0
        %1538 = vmatprep.subr.mxu0 0.0
        %1539 = vmatpush1.xpose.msra.mxu0 0.0
        %1540 = vmatprep.subr.mxu0 0.0
        %1541 = vmatpush1.xpose.msra.mxu0 0.0
        %1542 = vmatprep.subr.mxu0 0.0
        %1543 = vmatpush1.xpose.msra.mxu0 0.0
        %1544 = vmatprep.subr.mxu0 0.0
        %1545 = vmatpush1.xpose.msra.mxu0 0.0
        %1546 = vmatprep.subr.mxu0 0.0
        %1547 = vmatpush1.xpose.msra.mxu0 0.0
        %1548 = vmatprep.subr.mxu0 0.0
        %1549 = vmatpush1.xpose.msra.mxu0 0.0
        %1550 = vmatprep.subr.mxu0 0.0
        %1551 = vmatpush1.xpose.msra.mxu0 0.0
        %1552 = vmatprep.subr.mxu0 0.0
        %1553 = vmatpush1.xpose.msra.mxu0 0.0
        %1554 = vmatprep.subr.mxu0 0.0
        %1555 = vmatpush1.xpose.msra.mxu0 0.0
        %1556 = vmatprep.subr.mxu0 0.0
        %1557 = vmatpush1.xpose.msra.mxu0 0.0
        %1558 = vmatprep.subr.mxu0 0.0
        %1559 = vmatpush1.xpose.msra.mxu0 0.0
        %1560 = vmatprep.subr.mxu0 0.0
        %1561 = vmatpush1.xpose.msra.mxu0 0.0
        %1562 = vmatprep.subr.mxu0 0.0
        %1563 = vmatpush1.xpose.msra.mxu0 0.0
        %1564 = vmatprep.subr.mxu0 0.0
        %1565 = vmatpush1.xpose.msra.mxu0 0.0
        %1566 = vmatprep.subr.mxu0 0.0
        %1567 = vmatpush1.xpose.msra.mxu0 0.0
        %1568 = vmatprep.subr.mxu0 0.0
        %1569 = vmatpush1.xpose.msra.mxu0 %v1536
        %1570 = vmatprep.subr.mxu0 0.0
        %1571 = vmatpush2.xpose.msra.mxu0 0.0
        %1572 = vmatprep.subr.mxu0 0.0
        %1573 = vmatpush2.xpose.msra.mxu0 0.0
        %1574 = vmatprep.subr.mxu0 0.0
        %1575 = vmatpush2.xpose.msra.mxu0 0.0
        %1576 = vmatprep.subr.mxu0 0.0
        %1577 = vmatpush2.xpose.msra.mxu0 0.0
        %1578 = vmatprep.subr.mxu0 0.0
        %1579 = vmatpush2.xpose.msra.mxu0 0.0
        %1580 = vmatprep.subr.mxu0 0.0
        %1581 = vmatpush2.xpose.msra.mxu0 0.0
        %1582 = vmatprep.subr.mxu0 0.0
        %1583 = vmatpush2.xpose.msra.mxu0 0.0
        %1584 = vmatprep.subr.mxu0 0.0
        %1585 = vmatpush2.xpose.msra.mxu0 0.0
        %1586 = vmatprep.subr.mxu0 0.0
        %1587 = vmatpush2.xpose.msra.mxu0 0.0
        %1588 = vmatprep.subr.mxu0 0.0
        %1589 = vmatpush2.xpose.msra.mxu0 0.0
        %1590 = vmatprep.subr.mxu0 0.0
        %1591 = vmatpush2.xpose.msra.mxu0 0.0
        %1592 = vmatprep.subr.mxu0 0.0
        %1593 = vmatpush2.xpose.msra.mxu0 0.0
        %1594 = vmatprep.subr.mxu0 0.0
        %1595 = vmatpush2.xpose.msra.mxu0 0.0
        %1596 = vmatprep.subr.mxu0 0.0
        %1597 = vmatpush2.xpose.msra.mxu0 0.0
        %1598 = vmatprep.subr.mxu0 0.0
        %1599 = vmatpush2.xpose.msra.mxu0 0.0
        %1600 = vmatprep.subr.mxu0 0.0
        %1601 = vmatpush2.xpose.msra.mxu0 0.0
        %1602 = vmatprep.mubr.f32.mxu0 0.0
        %1603 = vmatmul.mubr.f32.gmra.mxu0 %v1534
        %v1604 = vpop.f32.mrf.mxu0
        %v1605 = vadd.f32 0.0, %v1604
        %v1606 = vpop.f32.mrf.mxu0
        %1607 = vdwg.mxu0
        %1608 = vrot.lane.b32.xlu0 %v861, 64
        %v1609 = vpop.permute.xlu0 %1608
        %1610 = vrot.lane.b32.xlu0 %v868, 64
        %v1611 = vpop.permute.xlu0 %1610
        %v1612 = vsel %vm876, %v1609, 0
        %v1614 = vsel %vm876, %v1611, 0
        %1616 = vmatprep.subr.mxu0 0.0
        %1617 = vmatpush1.xpose.msra.mxu0 0.0
        %1618 = vmatprep.subr.mxu0 0.0
        %1619 = vmatpush1.xpose.msra.mxu0 0.0
        %1620 = vmatprep.subr.mxu0 0.0
        %1621 = vmatpush1.xpose.msra.mxu0 0.0
        %1622 = vmatprep.subr.mxu0 0.0
        %1623 = vmatpush1.xpose.msra.mxu0 0.0
        %1624 = vmatprep.subr.mxu0 0.0
        %1625 = vmatpush1.xpose.msra.mxu0 0.0
        %1626 = vmatprep.subr.mxu0 0.0
        %1627 = vmatpush1.xpose.msra.mxu0 0.0
        %1628 = vmatprep.subr.mxu0 0.0
        %1629 = vmatpush1.xpose.msra.mxu0 0.0
        %1630 = vmatprep.subr.mxu0 0.0
        %1631 = vmatpush1.xpose.msra.mxu0 0.0
        %1632 = vmatprep.subr.mxu0 0.0
        %1633 = vmatpush1.xpose.msra.mxu0 0.0
        %1634 = vmatprep.subr.mxu0 0.0
        %1635 = vmatpush1.xpose.msra.mxu0 0.0
        %1636 = vmatprep.subr.mxu0 0.0
        %1637 = vmatpush1.xpose.msra.mxu0 0.0
        %1638 = vmatprep.subr.mxu0 0.0
        %1639 = vmatpush1.xpose.msra.mxu0 0.0
        %1640 = vmatprep.subr.mxu0 0.0
        %1641 = vmatpush1.xpose.msra.mxu0 0.0
        %1642 = vmatprep.subr.mxu0 0.0
        %1643 = vmatpush1.xpose.msra.mxu0 0.0
        %1644 = vmatprep.subr.mxu0 0.0
        %1645 = vmatpush1.xpose.msra.mxu0 0.0
        %1646 = vmatprep.subr.mxu0 0.0
        %1647 = vmatpush1.xpose.msra.mxu0 %v1614
        %1648 = vmatprep.subr.mxu0 0.0
        %1649 = vmatpush2.xpose.msra.mxu0 0.0
        %1650 = vmatprep.subr.mxu0 0.0
        %1651 = vmatpush2.xpose.msra.mxu0 0.0
        %1652 = vmatprep.subr.mxu0 0.0
        %1653 = vmatpush2.xpose.msra.mxu0 0.0
        %1654 = vmatprep.subr.mxu0 0.0
        %1655 = vmatpush2.xpose.msra.mxu0 0.0
        %1656 = vmatprep.subr.mxu0 0.0
        %1657 = vmatpush2.xpose.msra.mxu0 0.0
        %1658 = vmatprep.subr.mxu0 0.0
        %1659 = vmatpush2.xpose.msra.mxu0 0.0
        %1660 = vmatprep.subr.mxu0 0.0
        %1661 = vmatpush2.xpose.msra.mxu0 0.0
        %1662 = vmatprep.subr.mxu0 0.0
        %1663 = vmatpush2.xpose.msra.mxu0 0.0
        %1664 = vmatprep.subr.mxu0 0.0
        %1665 = vmatpush2.xpose.msra.mxu0 0.0
        %1666 = vmatprep.subr.mxu0 0.0
        %1667 = vmatpush2.xpose.msra.mxu0 0.0
        %1668 = vmatprep.subr.mxu0 0.0
        %1669 = vmatpush2.xpose.msra.mxu0 0.0
        %1670 = vmatprep.subr.mxu0 0.0
        %1671 = vmatpush2.xpose.msra.mxu0 0.0
        %1672 = vmatprep.subr.mxu0 0.0
        %1673 = vmatpush2.xpose.msra.mxu0 0.0
        %1674 = vmatprep.subr.mxu0 0.0
        %1675 = vmatpush2.xpose.msra.mxu0 0.0
        %1676 = vmatprep.subr.mxu0 0.0
        %1677 = vmatpush2.xpose.msra.mxu0 0.0
        %1678 = vmatprep.subr.mxu0 0.0
        %1679 = vmatpush2.xpose.msra.mxu0 0.0
        %1680 = vmatprep.mubr.f32.mxu0 0.0
        %1681 = vmatmul.mubr.f32.gmra.mxu0 %v1612
        %v1682 = vpop.f32.mrf.mxu0
        %v1683 = vadd.f32 0.0, %v1682
        %v1684 = vpop.f32.mrf.mxu0
        %1685 = vdwg.mxu0
        %v1686 = vsel %vm1029, %v1605, -inf
        %1687 = vmax.xlane.f32.xlu0 %v1686
        %v1688 = vpop.xlane.xlu0 %1687
        %v1689 = vsel %vm1029, %v1683, -inf
        %1690 = vmax.xlane.f32.xlu0 %v1689
        %v1691 = vpop.xlane.xlu0 %1690
        %v1692 = vsub.f32 %v1605, %v1688
        %v1693 = vsub.f32 %v1683, %v1691
        %v1694 = vmul.f32 %v1692, 1.442695
        %v1695 = vpow.pop %v1694
        %v1696 = vmul.f32 %v1693, 1.442695
        %v1697 = vpow.pop %v1696
        %v1698 = vsel %vm1029, %v1695, 0.0
        %1699 = vadd.xlane.f32.xlu0 %v1698
        %v1700 = vpop.xlane.xlu0 %1699
        %v1701 = vsel %vm1029, %v1697, 0.0
        %1702 = vadd.xlane.f32.xlu0 %v1701
        %v1703 = vpop.xlane.xlu0 %1702
        %v1704 = vrcp.pop %v1700
        %v1705 = vrcp.pop %v1703
        %v1706 = vmul.f32 %v1695, %v1704
        %v1707 = vmul.f32 %v1697, %v1705
        %1708 = vrot.lane.b32.xlu0 %v874, 64
        %v1709 = vpop.permute.xlu0 %1708
        %v1712 = vsel %vm1029, %v1706, 0
        %1714 = vmatprep.subr.mxu0 0.0
        %1715 = vmatpush1.msra.mxu0 0.0
        %1716 = vmatprep.subr.mxu0 0.0
        %1717 = vmatpush1.msra.mxu0 0.0
        %1718 = vmatprep.subr.mxu0 0.0
        %1719 = vmatpush1.msra.mxu0 0.0
        %1720 = vmatprep.subr.mxu0 0.0
        %1721 = vmatpush1.msra.mxu0 0.0
        %1722 = vmatprep.subr.mxu0 0.0
        %1723 = vmatpush1.msra.mxu0 0.0
        %1724 = vmatprep.subr.mxu0 0.0
        %1725 = vmatpush1.msra.mxu0 0.0
        %1726 = vmatprep.subr.mxu0 0.0
        %1727 = vmatpush1.msra.mxu0 0.0
        %1728 = vmatprep.subr.mxu0 0.0
        %1729 = vmatpush1.msra.mxu0 0.0
        %1730 = vmatprep.subr.mxu0 0.0
        %1731 = vmatpush1.msra.mxu0 0.0
        %1732 = vmatprep.subr.mxu0 0.0
        %1733 = vmatpush1.msra.mxu0 0.0
        %1734 = vmatprep.subr.mxu0 0.0
        %1735 = vmatpush1.msra.mxu0 0.0
        %1736 = vmatprep.subr.mxu0 0.0
        %1737 = vmatpush1.msra.mxu0 0.0
        %1738 = vmatprep.subr.mxu0 0.0
        %1739 = vmatpush1.msra.mxu0 0.0
        %1740 = vmatprep.subr.mxu0 0.0
        %1741 = vmatpush1.msra.mxu0 0.0
        %1742 = vmatprep.subr.mxu0 0.0
        %1743 = vmatpush1.msra.mxu0 0.0
        %1744 = vmatprep.subr.mxu0 0.0
        %1745 = vmatpush1.msra.mxu0 %v1709
        %1746 = vmatprep.subr.mxu0 0.0
        %1747 = vmatpush2.msra.mxu0 0.0
        %1748 = vmatprep.subr.mxu0 0.0
        %1749 = vmatpush2.msra.mxu0 0.0
        %1750 = vmatprep.subr.mxu0 0.0
        %1751 = vmatpush2.msra.mxu0 0.0
        %1752 = vmatprep.subr.mxu0 0.0
        %1753 = vmatpush2.msra.mxu0 0.0
        %1754 = vmatprep.subr.mxu0 0.0
        %1755 = vmatpush2.msra.mxu0 0.0
        %1756 = vmatprep.subr.mxu0 0.0
        %1757 = vmatpush2.msra.mxu0 0.0
        %1758 = vmatprep.subr.mxu0 0.0
        %1759 = vmatpush2.msra.mxu0 0.0
        %1760 = vmatprep.subr.mxu0 0.0
        %1761 = vmatpush2.msra.mxu0 0.0
        %1762 = vmatprep.subr.mxu0 0.0
        %1763 = vmatpush2.msra.mxu0 0.0
        %1764 = vmatprep.subr.mxu0 0.0
        %1765 = vmatpush2.msra.mxu0 0.0
        %1766 = vmatprep.subr.mxu0 0.0
        %1767 = vmatpush2.msra.mxu0 0.0
        %1768 = vmatprep.subr.mxu0 0.0
        %1769 = vmatpush2.msra.mxu0 0.0
        %1770 = vmatprep.subr.mxu0 0.0
        %1771 = vmatpush2.msra.mxu0 0.0
        %1772 = vmatprep.subr.mxu0 0.0
        %1773 = vmatpush2.msra.mxu0 0.0
        %1774 = vmatprep.subr.mxu0 0.0
        %1775 = vmatpush2.msra.mxu0 0.0
        %1776 = vmatprep.subr.mxu0 0.0
        %1777 = vmatpush2.msra.mxu0 0.0
        %1778 = vmatprep.mubr.f32.mxu0 0.0
        %1779 = vmatmul.mubr.f32.gmra.mxu0 %v1712
        %v1780 = vpop.f32.mrf.mxu0
        %v1781 = vadd.f32 0.0, %v1780
        %v1782 = vpop.f32.mrf.mxu0
        %1783 = vdwg.mxu0
        %1784 = vrot.lane.b32.xlu0 %v875, 64
        %v1785 = vpop.permute.xlu0 %1784
        %v1788 = vsel %vm1029, %v1707, 0
        %1790 = vmatprep.subr.mxu0 0.0
        %1791 = vmatpush1.msra.mxu0 0.0
        %1792 = vmatprep.subr.mxu0 0.0
        %1793 = vmatpush1.msra.mxu0 0.0
        %1794 = vmatprep.subr.mxu0 0.0
        %1795 = vmatpush1.msra.mxu0 0.0
        %1796 = vmatprep.subr.mxu0 0.0
        %1797 = vmatpush1.msra.mxu0 0.0
        %1798 = vmatprep.subr.mxu0 0.0
        %1799 = vmatpush1.msra.mxu0 0.0
        %1800 = vmatprep.subr.mxu0 0.0
        %1801 = vmatpush1.msra.mxu0 0.0
        %1802 = vmatprep.subr.mxu0 0.0
        %1803 = vmatpush1.msra.mxu0 0.0
        %1804 = vmatprep.subr.mxu0 0.0
        %1805 = vmatpush1.msra.mxu0 0.0
        %1806 = vmatprep.subr.mxu0 0.0
        %1807 = vmatpush1.msra.mxu0 0.0
        %1808 = vmatprep.subr.mxu0 0.0
        %1809 = vmatpush1.msra.mxu0 0.0
        %1810 = vmatprep.subr.mxu0 0.0
        %1811 = vmatpush1.msra.mxu0 0.0
        %1812 = vmatprep.subr.mxu0 0.0
        %1813 = vmatpush1.msra.mxu0 0.0
        %1814 = vmatprep.subr.mxu0 0.0
        %1815 = vmatpush1.msra.mxu0 0.0
        %1816 = vmatprep.subr.mxu0 0.0
        %1817 = vmatpush1.msra.mxu0 0.0
        %1818 = vmatprep.subr.mxu0 0.0
        %1819 = vmatpush1.msra.mxu0 0.0
        %1820 = vmatprep.subr.mxu0 0.0
        %1821 = vmatpush1.msra.mxu0 %v1785
        %1822 = vmatprep.subr.mxu0 0.0
        %1823 = vmatpush2.msra.mxu0 0.0
        %1824 = vmatprep.subr.mxu0 0.0
        %1825 = vmatpush2.msra.mxu0 0.0
        %1826 = vmatprep.subr.mxu0 0.0
        %1827 = vmatpush2.msra.mxu0 0.0
        %1828 = vmatprep.subr.mxu0 0.0
        %1829 = vmatpush2.msra.mxu0 0.0
        %1830 = vmatprep.subr.mxu0 0.0
        %1831 = vmatpush2.msra.mxu0 0.0
        %1832 = vmatprep.subr.mxu0 0.0
        %1833 = vmatpush2.msra.mxu0 0.0
        %1834 = vmatprep.subr.mxu0 0.0
        %1835 = vmatpush2.msra.mxu0 0.0
        %1836 = vmatprep.subr.mxu0 0.0
        %1837 = vmatpush2.msra.mxu0 0.0
        %1838 = vmatprep.subr.mxu0 0.0
        %1839 = vmatpush2.msra.mxu0 0.0
        %1840 = vmatprep.subr.mxu0 0.0
        %1841 = vmatpush2.msra.mxu0 0.0
        %1842 = vmatprep.subr.mxu0 0.0
        %1843 = vmatpush2.msra.mxu0 0.0
        %1844 = vmatprep.subr.mxu0 0.0
        %1845 = vmatpush2.msra.mxu0 0.0
        %1846 = vmatprep.subr.mxu0 0.0
        %1847 = vmatpush2.msra.mxu0 0.0
        %1848 = vmatprep.subr.mxu0 0.0
        %1849 = vmatpush2.msra.mxu0 0.0
        %1850 = vmatprep.subr.mxu0 0.0
        %1851 = vmatpush2.msra.mxu0 0.0
        %1852 = vmatprep.subr.mxu0 0.0
        %1853 = vmatpush2.msra.mxu0 0.0
        %1854 = vmatprep.mubr.f32.mxu0 0.0
        %1855 = vmatmul.mubr.f32.gmra.mxu0 %v1788
        %v1856 = vpop.f32.mrf.mxu0
        %v1857 = vadd.f32 0.0, %v1856
        %v1858 = vpop.f32.mrf.mxu0
        %1859 = vdwg.mxu0
        %1860 = vrot.lane.b32.xlu0 %v860, 32
        %v1861 = vpop.permute.xlu0 %1860
        %1862 = vrot.lane.b32.xlu0 %v867, 32
        %v1863 = vpop.permute.xlu0 %1862
        %v1864 = vsel %vm876, %v1861, 0
        %v1866 = vsel %vm876, %v1863, 0
        %1868 = vmatprep.subr.mxu0 0.0
        %1869 = vmatpush1.xpose.msra.mxu0 0.0
        %1870 = vmatprep.subr.mxu0 0.0
        %1871 = vmatpush1.xpose.msra.mxu0 0.0
        %1872 = vmatprep.subr.mxu0 0.0
        %1873 = vmatpush1.xpose.msra.mxu0 0.0
        %1874 = vmatprep.subr.mxu0 0.0
        %1875 = vmatpush1.xpose.msra.mxu0 0.0
        %1876 = vmatprep.subr.mxu0 0.0
        %1877 = vmatpush1.xpose.msra.mxu0 0.0
        %1878 = vmatprep.subr.mxu0 0.0
        %1879 = vmatpush1.xpose.msra.mxu0 0.0
        %1880 = vmatprep.subr.mxu0 0.0
        %1881 = vmatpush1.xpose.msra.mxu0 0.0
        %1882 = vmatprep.subr.mxu0 0.0
        %1883 = vmatpush1.xpose.msra.mxu0 0.0
        %1884 = vmatprep.subr.mxu0 0.0
        %1885 = vmatpush1.xpose.msra.mxu0 0.0
        %1886 = vmatprep.subr.mxu0 0.0
        %1887 = vmatpush1.xpose.msra.mxu0 0.0
        %1888 = vmatprep.subr.mxu0 0.0
        %1889 = vmatpush1.xpose.msra.mxu0 0.0
        %1890 = vmatprep.subr.mxu0 0.0
        %1891 = vmatpush1.xpose.msra.mxu0 0.0
        %1892 = vmatprep.subr.mxu0 0.0
        %1893 = vmatpush1.xpose.msra.mxu0 0.0
        %1894 = vmatprep.subr.mxu0 0.0
        %1895 = vmatpush1.xpose.msra.mxu0 0.0
        %1896 = vmatprep.subr.mxu0 0.0
        %1897 = vmatpush1.xpose.msra.mxu0 0.0
        %1898 = vmatprep.subr.mxu0 0.0
        %1899 = vmatpush1.xpose.msra.mxu0 %v1866
        %1900 = vmatprep.subr.mxu0 0.0
        %1901 = vmatpush2.xpose.msra.mxu0 0.0
        %1902 = vmatprep.subr.mxu0 0.0
        %1903 = vmatpush2.xpose.msra.mxu0 0.0
        %1904 = vmatprep.subr.mxu0 0.0
        %1905 = vmatpush2.xpose.msra.mxu0 0.0
        %1906 = vmatprep.subr.mxu0 0.0
        %1907 = vmatpush2.xpose.msra.mxu0 0.0
        %1908 = vmatprep.subr.mxu0 0.0
        %1909 = vmatpush2.xpose.msra.mxu0 0.0
        %1910 = vmatprep.subr.mxu0 0.0
        %1911 = vmatpush2.xpose.msra.mxu0 0.0
        %1912 = vmatprep.subr.mxu0 0.0
        %1913 = vmatpush2.xpose.msra.mxu0 0.0
        %1914 = vmatprep.subr.mxu0 0.0
        %1915 = vmatpush2.xpose.msra.mxu0 0.0
        %1916 = vmatprep.subr.mxu0 0.0
        %1917 = vmatpush2.xpose.msra.mxu0 0.0
        %1918 = vmatprep.subr.mxu0 0.0
        %1919 = vmatpush2.xpose.msra.mxu0 0.0
        %1920 = vmatprep.subr.mxu0 0.0
        %1921 = vmatpush2.xpose.msra.mxu0 0.0
        %1922 = vmatprep.subr.mxu0 0.0
        %1923 = vmatpush2.xpose.msra.mxu0 0.0
        %1924 = vmatprep.subr.mxu0 0.0
        %1925 = vmatpush2.xpose.msra.mxu0 0.0
        %1926 = vmatprep.subr.mxu0 0.0
        %1927 = vmatpush2.xpose.msra.mxu0 0.0
        %1928 = vmatprep.subr.mxu0 0.0
        %1929 = vmatpush2.xpose.msra.mxu0 0.0
        %1930 = vmatprep.subr.mxu0 0.0
        %1931 = vmatpush2.xpose.msra.mxu0 0.0
        %1932 = vmatprep.mubr.f32.mxu0 0.0
        %1933 = vmatmul.mubr.f32.gmra.mxu0 %v1864
        %v1934 = vpop.f32.mrf.mxu0
        %v1935 = vadd.f32 0.0, %v1934
        %v1936 = vpop.f32.mrf.mxu0
        %1937 = vdwg.mxu0
        %1938 = vrot.lane.b32.xlu0 %v861, 32
        %v1939 = vpop.permute.xlu0 %1938
        %1940 = vrot.lane.b32.xlu0 %v868, 32
        %v1941 = vpop.permute.xlu0 %1940
        %v1942 = vsel %vm876, %v1939, 0
        %v1944 = vsel %vm876, %v1941, 0
        %1946 = vmatprep.subr.mxu0 0.0
        %1947 = vmatpush1.xpose.msra.mxu0 0.0
        %1948 = vmatprep.subr.mxu0 0.0
        %1949 = vmatpush1.xpose.msra.mxu0 0.0
        %1950 = vmatprep.subr.mxu0 0.0
        %1951 = vmatpush1.xpose.msra.mxu0 0.0
        %1952 = vmatprep.subr.mxu0 0.0
        %1953 = vmatpush1.xpose.msra.mxu0 0.0
        %1954 = vmatprep.subr.mxu0 0.0
        %1955 = vmatpush1.xpose.msra.mxu0 0.0
        %1956 = vmatprep.subr.mxu0 0.0
        %1957 = vmatpush1.xpose.msra.mxu0 0.0
        %1958 = vmatprep.subr.mxu0 0.0
        %1959 = vmatpush1.xpose.msra.mxu0 0.0
        %1960 = vmatprep.subr.mxu0 0.0
        %1961 = vmatpush1.xpose.msra.mxu0 0.0
        %1962 = vmatprep.subr.mxu0 0.0
        %1963 = vmatpush1.xpose.msra.mxu0 0.0
        %1964 = vmatprep.subr.mxu0 0.0
        %1965 = vmatpush1.xpose.msra.mxu0 0.0
        %1966 = vmatprep.subr.mxu0 0.0
        %1967 = vmatpush1.xpose.msra.mxu0 0.0
        %1968 = vmatprep.subr.mxu0 0.0
        %1969 = vmatpush1.xpose.msra.mxu0 0.0
        %1970 = vmatprep.subr.mxu0 0.0
        %1971 = vmatpush1.xpose.msra.mxu0 0.0
        %1972 = vmatprep.subr.mxu0 0.0
        %1973 = vmatpush1.xpose.msra.mxu0 0.0
        %1974 = vmatprep.subr.mxu0 0.0
        %1975 = vmatpush1.xpose.msra.mxu0 0.0
        %1976 = vmatprep.subr.mxu0 0.0
        %1977 = vmatpush1.xpose.msra.mxu0 %v1944
        %1978 = vmatprep.subr.mxu0 0.0
        %1979 = vmatpush2.xpose.msra.mxu0 0.0
        %1980 = vmatprep.subr.mxu0 0.0
        %1981 = vmatpush2.xpose.msra.mxu0 0.0
        %1982 = vmatprep.subr.mxu0 0.0
        %1983 = vmatpush2.xpose.msra.mxu0 0.0
        %1984 = vmatprep.subr.mxu0 0.0
        %1985 = vmatpush2.xpose.msra.mxu0 0.0
        %1986 = vmatprep.subr.mxu0 0.0
        %1987 = vmatpush2.xpose.msra.mxu0 0.0
        %1988 = vmatprep.subr.mxu0 0.0
        %1989 = vmatpush2.xpose.msra.mxu0 0.0
        %1990 = vmatprep.subr.mxu0 0.0
        %1991 = vmatpush2.xpose.msra.mxu0 0.0
        %1992 = vmatprep.subr.mxu0 0.0
        %1993 = vmatpush2.xpose.msra.mxu0 0.0
        %1994 = vmatprep.subr.mxu0 0.0
        %1995 = vmatpush2.xpose.msra.mxu0 0.0
        %1996 = vmatprep.subr.mxu0 0.0
        %1997 = vmatpush2.xpose.msra.mxu0 0.0
        %1998 = vmatprep.subr.mxu0 0.0
        %1999 = vmatpush2.xpose.msra.mxu0 0.0
        %2000 = vmatprep.subr.mxu0 0.0
        %2001 = vmatpush2.xpose.msra.mxu0 0.0
        %2002 = vmatprep.subr.mxu0 0.0
        %2003 = vmatpush2.xpose.msra.mxu0 0.0
        %2004 = vmatprep.subr.mxu0 0.0
        %2005 = vmatpush2.xpose.msra.mxu0 0.0
        %2006 = vmatprep.subr.mxu0 0.0
        %2007 = vmatpush2.xpose.msra.mxu0 0.0
        %2008 = vmatprep.subr.mxu0 0.0
        %2009 = vmatpush2.xpose.msra.mxu0 0.0
        %2010 = vmatprep.mubr.f32.mxu0 0.0
        %2011 = vmatmul.mubr.f32.gmra.mxu0 %v1942
        %v2012 = vpop.f32.mrf.mxu0
        %v2013 = vadd.f32 0.0, %v2012
        %v2014 = vpop.f32.mrf.mxu0
        %2015 = vdwg.mxu0
        %v2016 = vsel %vm1029, %v1935, -inf
        %2017 = vmax.xlane.f32.xlu0 %v2016
        %v2018 = vpop.xlane.xlu0 %2017
        %v2019 = vsel %vm1029, %v2013, -inf
        %2020 = vmax.xlane.f32.xlu0 %v2019
        %v2021 = vpop.xlane.xlu0 %2020
        %v2022 = vsub.f32 %v1935, %v2018
        %v2023 = vsub.f32 %v2013, %v2021
        %v2024 = vmul.f32 %v2022, 1.442695
        %v2025 = vpow.pop %v2024
        %v2026 = vmul.f32 %v2023, 1.442695
        %v2027 = vpow.pop %v2026
        %v2028 = vsel %vm1029, %v2025, 0.0
        %2029 = vadd.xlane.f32.xlu0 %v2028
        %v2030 = vpop.xlane.xlu0 %2029
        %v2031 = vsel %vm1029, %v2027, 0.0
        %2032 = vadd.xlane.f32.xlu0 %v2031
        %v2033 = vpop.xlane.xlu0 %2032
        %v2034 = vrcp.pop %v2030
        %v2035 = vrcp.pop %v2033
        %v2036 = vmul.f32 %v2025, %v2034
        %v2037 = vmul.f32 %v2027, %v2035
        %2038 = vrot.lane.b32.xlu0 %v874, 32
        %v2039 = vpop.permute.xlu0 %2038
        %v2042 = vsel %vm1029, %v2036, 0
        %2044 = vmatprep.subr.mxu0 0.0
        %2045 = vmatpush1.msra.mxu0 0.0
        %2046 = vmatprep.subr.mxu0 0.0
        %2047 = vmatpush1.msra.mxu0 0.0
        %2048 = vmatprep.subr.mxu0 0.0
        %2049 = vmatpush1.msra.mxu0 0.0
        %2050 = vmatprep.subr.mxu0 0.0
        %2051 = vmatpush1.msra.mxu0 0.0
        %2052 = vmatprep.subr.mxu0 0.0
        %2053 = vmatpush1.msra.mxu0 0.0
        %2054 = vmatprep.subr.mxu0 0.0
        %2055 = vmatpush1.msra.mxu0 0.0
        %2056 = vmatprep.subr.mxu0 0.0
        %2057 = vmatpush1.msra.mxu0 0.0
        %2058 = vmatprep.subr.mxu0 0.0
        %2059 = vmatpush1.msra.mxu0 0.0
        %2060 = vmatprep.subr.mxu0 0.0
        %2061 = vmatpush1.msra.mxu0 0.0
        %2062 = vmatprep.subr.mxu0 0.0
        %2063 = vmatpush1.msra.mxu0 0.0
        %2064 = vmatprep.subr.mxu0 0.0
        %2065 = vmatpush1.msra.mxu0 0.0
        %2066 = vmatprep.subr.mxu0 0.0
        %2067 = vmatpush1.msra.mxu0 0.0
        %2068 = vmatprep.subr.mxu0 0.0
        %2069 = vmatpush1.msra.mxu0 0.0
        %2070 = vmatprep.subr.mxu0 0.0
        %2071 = vmatpush1.msra.mxu0 0.0
        %2072 = vmatprep.subr.mxu0 0.0
        %2073 = vmatpush1.msra.mxu0 0.0
        %2074 = vmatprep.subr.mxu0 0.0
        %2075 = vmatpush1.msra.mxu0 %v2039
        %2076 = vmatprep.subr.mxu0 0.0
        %2077 = vmatpush2.msra.mxu0 0.0
        %2078 = vmatprep.subr.mxu0 0.0
        %2079 = vmatpush2.msra.mxu0 0.0
        %2080 = vmatprep.subr.mxu0 0.0
        %2081 = vmatpush2.msra.mxu0 0.0
        %2082 = vmatprep.subr.mxu0 0.0
        %2083 = vmatpush2.msra.mxu0 0.0
        %2084 = vmatprep.subr.mxu0 0.0
        %2085 = vmatpush2.msra.mxu0 0.0
        %2086 = vmatprep.subr.mxu0 0.0
        %2087 = vmatpush2.msra.mxu0 0.0
        %2088 = vmatprep.subr.mxu0 0.0
        %2089 = vmatpush2.msra.mxu0 0.0
        %2090 = vmatprep.subr.mxu0 0.0
        %2091 = vmatpush2.msra.mxu0 0.0
        %2092 = vmatprep.subr.mxu0 0.0
        %2093 = vmatpush2.msra.mxu0 0.0
        %2094 = vmatprep.subr.mxu0 0.0
        %2095 = vmatpush2.msra.mxu0 0.0
        %2096 = vmatprep.subr.mxu0 0.0
        %2097 = vmatpush2.msra.mxu0 0.0
        %2098 = vmatprep.subr.mxu0 0.0
        %2099 = vmatpush2.msra.mxu0 0.0
        %2100 = vmatprep.subr.mxu0 0.0
        %2101 = vmatpush2.msra.mxu0 0.0
        %2102 = vmatprep.subr.mxu0 0.0
        %2103 = vmatpush2.msra.mxu0 0.0
        %2104 = vmatprep.subr.mxu0 0.0
        %2105 = vmatpush2.msra.mxu0 0.0
        %2106 = vmatprep.subr.mxu0 0.0
        %2107 = vmatpush2.msra.mxu0 0.0
        %2108 = vmatprep.mubr.f32.mxu0 0.0
        %2109 = vmatmul.mubr.f32.gmra.mxu0 %v2042
        %v2110 = vpop.f32.mrf.mxu0
        %v2111 = vadd.f32 0.0, %v2110
        %v2112 = vpop.f32.mrf.mxu0
        %2113 = vdwg.mxu0
        %2114 = vrot.lane.b32.xlu0 %v875, 32
        %v2115 = vpop.permute.xlu0 %2114
        %v2118 = vsel %vm1029, %v2037, 0
        %2120 = vmatprep.subr.mxu0 0.0
        %2121 = vmatpush1.msra.mxu0 0.0
        %2122 = vmatprep.subr.mxu0 0.0
        %2123 = vmatpush1.msra.mxu0 0.0
        %2124 = vmatprep.subr.mxu0 0.0
        %2125 = vmatpush1.msra.mxu0 0.0
        %2126 = vmatprep.subr.mxu0 0.0
        %2127 = vmatpush1.msra.mxu0 0.0
        %2128 = vmatprep.subr.mxu0 0.0
        %2129 = vmatpush1.msra.mxu0 0.0
        %2130 = vmatprep.subr.mxu0 0.0
        %2131 = vmatpush1.msra.mxu0 0.0
        %2132 = vmatprep.subr.mxu0 0.0
        %2133 = vmatpush1.msra.mxu0 0.0
        %2134 = vmatprep.subr.mxu0 0.0
        %2135 = vmatpush1.msra.mxu0 0.0
        %2136 = vmatprep.subr.mxu0 0.0
        %2137 = vmatpush1.msra.mxu0 0.0
        %2138 = vmatprep.subr.mxu0 0.0
        %2139 = vmatpush1.msra.mxu0 0.0
        %2140 = vmatprep.subr.mxu0 0.0
        %2141 = vmatpush1.msra.mxu0 0.0
        %2142 = vmatprep.subr.mxu0 0.0
        %2143 = vmatpush1.msra.mxu0 0.0
        %2144 = vmatprep.subr.mxu0 0.0
        %2145 = vmatpush1.msra.mxu0 0.0
        %2146 = vmatprep.subr.mxu0 0.0
        %2147 = vmatpush1.msra.mxu0 0.0
        %2148 = vmatprep.subr.mxu0 0.0
        %2149 = vmatpush1.msra.mxu0 0.0
        %2150 = vmatprep.subr.mxu0 0.0
        %2151 = vmatpush1.msra.mxu0 %v2115
        %2152 = vmatprep.subr.mxu0 0.0
        %2153 = vmatpush2.msra.mxu0 0.0
        %2154 = vmatprep.subr.mxu0 0.0
        %2155 = vmatpush2.msra.mxu0 0.0
        %2156 = vmatprep.subr.mxu0 0.0
        %2157 = vmatpush2.msra.mxu0 0.0
        %2158 = vmatprep.subr.mxu0 0.0
        %2159 = vmatpush2.msra.mxu0 0.0
        %2160 = vmatprep.subr.mxu0 0.0
        %2161 = vmatpush2.msra.mxu0 0.0
        %2162 = vmatprep.subr.mxu0 0.0
        %2163 = vmatpush2.msra.mxu0 0.0
        %2164 = vmatprep.subr.mxu0 0.0
        %2165 = vmatpush2.msra.mxu0 0.0
        %2166 = vmatprep.subr.mxu0 0.0
        %2167 = vmatpush2.msra.mxu0 0.0
        %2168 = vmatprep.subr.mxu0 0.0
        %2169 = vmatpush2.msra.mxu0 0.0
        %2170 = vmatprep.subr.mxu0 0.0
        %2171 = vmatpush2.msra.mxu0 0.0
        %2172 = vmatprep.subr.mxu0 0.0
        %2173 = vmatpush2.msra.mxu0 0.0
        %2174 = vmatprep.subr.mxu0 0.0
        %2175 = vmatpush2.msra.mxu0 0.0
        %2176 = vmatprep.subr.mxu0 0.0
        %2177 = vmatpush2.msra.mxu0 0.0
        %2178 = vmatprep.subr.mxu0 0.0
        %2179 = vmatpush2.msra.mxu0 0.0
        %2180 = vmatprep.subr.mxu0 0.0
        %2181 = vmatpush2.msra.mxu0 0.0
        %2182 = vmatprep.subr.mxu0 0.0
        %2183 = vmatpush2.msra.mxu0 0.0
        %2184 = vmatprep.mubr.f32.mxu0 0.0
        %2185 = vmatmul.mubr.f32.gmra.mxu0 %v2118
        %v2186 = vpop.f32.mrf.mxu0
        %v2187 = vadd.f32 0.0, %v2186
        %v2188 = vpop.f32.mrf.mxu0
        %2189 = vdwg.mxu0
        %2192 = vrot.lane.b32.xlu0 %v1450, 32
        %v2193 = vpop.permute.xlu0 %2192
        %2194 = vrot.lane.b32.xlu0 %v1527, 32
        %v2195 = vpop.permute.xlu0 %2194
        %2200 = vrot.lane.b32.xlu0 %v1781, 64
        %v2201 = vpop.permute.xlu0 %2200
        %2202 = vrot.lane.b32.xlu0 %v1857, 64
        %v2203 = vpop.permute.xlu0 %2202
        %2208 = vrot.lane.b32.xlu0 %v2111, 96
        %v2209 = vpop.permute.xlu0 %2208
        %2210 = vrot.lane.b32.xlu0 %v2187, 96
        %v2211 = vpop.permute.xlu0 %2210
        %v2214 = vsel %vm876, %v1122, %v2193
        %v2215 = vsel %vm876, %v1195, %v2195
        %vm2216 = vcmask 523264
        %v2217 = vsel %vm2216, %v2214, %v2201
        %v2218 = vsel %vm2216, %v2215, %v2203
        %vm2219 = vcmask 785408
        %v2220 = vsel %vm2219, %v2217, %v2209
        %v2221 = vsel %vm2219, %v2218, %v2211
        %v2222 = vld [vmem:[%s508] sm:$0xff]
        %v2223 = vld [vmem:[%s508 + $0x8] sm:$0xff]
        %v2224 = vld [vmem:[%s508 + $0x10] sm:$0xff]
        %v2225 = vld [vmem:[%s508 + $0x18] sm:$0xff]
        %v2226 = vld [vmem:[%s508 + $0x20] sm:$0xff]
        %v2227 = vld [vmem:[%s508 + $0x28] sm:$0xff]
        %v2228 = vld [vmem:[%s508 + $0x30] sm:$0xff]
        %v2229 = vld [vmem:[%s508 + $0x38] sm:$0xff]
        %v2230 = vld [vmem:[%s508 + $0x40] sm:$0xff]
        %v2231 = vld [vmem:[%s508 + $0x48] sm:$0xff]
        %v2232 = vld [vmem:[%s508 + $0x50] sm:$0xff]
        %v2233 = vld [vmem:[%s508 + $0x58] sm:$0xff]
        %v2234 = vld [vmem:[%s508 + $0x60] sm:$0xff]
        %v2235 = vld [vmem:[%s508 + $0x68] sm:$0xff]
        %v2236 = vld [vmem:[%s508 + $0x70] sm:$0xff]
        %v2237 = vld [vmem:[%s508 + $0x78] sm:$0xff]
        %v2238 = vld [vmem:[%s602 + $0x3] sm:$0x1]
        %v2239 = vlaneseq
        %v2240 = vshrl.u32 %v2239, 7
        %v2241 = vsub.s32 0, %v2240
        %v2242 = vrot.slane %v2238, %v2241
        %2243 = vmatprep.subr.mxu0 0.0
        %2244 = vmatpush1.msra.mxu0 %v2237
        %2245 = vmatprep.subr.mxu0 0.0
        %2246 = vmatpush1.msra.mxu0 %v2236
        %2247 = vmatprep.subr.mxu0 0.0
        %2248 = vmatpush1.msra.mxu0 %v2235
        %2249 = vmatprep.subr.mxu0 0.0
        %2250 = vmatpush1.msra.mxu0 %v2234
        %2251 = vmatprep.subr.mxu0 0.0
        %2252 = vmatpush1.msra.mxu0 %v2233
        %2253 = vmatprep.subr.mxu0 0.0
        %2254 = vmatpush1.msra.mxu0 %v2232
        %2255 = vmatprep.subr.mxu0 0.0
        %2256 = vmatpush1.msra.mxu0 %v2231
        %2257 = vmatprep.subr.mxu0 0.0
        %2258 = vmatpush1.msra.mxu0 %v2230
        %2259 = vmatprep.subr.mxu0 0.0
        %2260 = vmatpush1.msra.mxu0 %v2229
        %2261 = vmatprep.subr.mxu0 0.0
        %2262 = vmatpush1.msra.mxu0 %v2228
        %2263 = vmatprep.subr.mxu0 0.0
        %2264 = vmatpush1.msra.mxu0 %v2227
        %2265 = vmatprep.subr.mxu0 0.0
        %2266 = vmatpush1.msra.mxu0 %v2226
        %2267 = vmatprep.subr.mxu0 0.0
        %2268 = vmatpush1.msra.mxu0 %v2225
        %2269 = vmatprep.subr.mxu0 0.0
        %2270 = vmatpush1.msra.mxu0 %v2224
        %2271 = vmatprep.subr.mxu0 0.0
        %2272 = vmatpush1.msra.mxu0 %v2223
        %2273 = vmatprep.subr.mxu0 0.0
        %2274 = vmatpush1.msra.mxu0 %v2222
        %2275 = vmatprep.subr.mxu0 0.0
        %2276 = vmatpush2.msra.mxu0 0.0
        %2277 = vmatprep.subr.mxu0 0.0
        %2278 = vmatpush2.msra.mxu0 0.0
        %2279 = vmatprep.subr.mxu0 0.0
        %2280 = vmatpush2.msra.mxu0 0.0
        %2281 = vmatprep.subr.mxu0 0.0
        %2282 = vmatpush2.msra.mxu0 0.0
        %2283 = vmatprep.subr.mxu0 0.0
        %2284 = vmatpush2.msra.mxu0 0.0
        %2285 = vmatprep.subr.mxu0 0.0
        %2286 = vmatpush2.msra.mxu0 0.0
        %2287 = vmatprep.subr.mxu0 0.0
        %2288 = vmatpush2.msra.mxu0 0.0
        %2289 = vmatprep.subr.mxu0 0.0
        %2290 = vmatpush2.msra.mxu0 0.0
        %2291 = vmatprep.subr.mxu0 0.0
        %2292 = vmatpush2.msra.mxu0 0.0
        %2293 = vmatprep.subr.mxu0 0.0
        %2294 = vmatpush2.msra.mxu0 0.0
        %2295 = vmatprep.subr.mxu0 0.0
        %2296 = vmatpush2.msra.mxu0 0.0
        %2297 = vmatprep.subr.mxu0 0.0
        %2298 = vmatpush2.msra.mxu0 0.0
        %2299 = vmatprep.subr.mxu0 0.0
        %2300 = vmatpush2.msra.mxu0 0.0
        %2301 = vmatprep.subr.mxu0 0.0
        %2302 = vmatpush2.msra.mxu0 0.0
        %2303 = vmatprep.subr.mxu0 0.0
        %2304 = vmatpush2.msra.mxu0 0.0
        %2305 = vmatprep.subr.mxu0 0.0
        %2306 = vmatpush2.msra.mxu0 0.0
        %2307 = vmatprep.mubr.f32.mxu0 0.0
        %2308 = vmatmul.mubr.f32.gmra.mxu0 %v2220
        %v2309 = vpop.f32.mrf.mxu0
        %v2310 = vadd.f32 %v2242, %v2309
        %v2311 = vpop.f32.mrf.mxu0
        %2312 = vmatprep.mubr.f32.mxu0 0.0
        %2313 = vmatmul.mubr.f32.gmra.mxu0 %v2221
        %v2314 = vpop.f32.mrf.mxu0
        %v2315 = vadd.f32 %v2242, %v2314
        %v2316 = vpop.f32.mrf.mxu0
        %2317 = vdwg.mxu0
        %v2318 = vadd.f32 %v2310, %v651
        %v2319 = vadd.f32 %v2315, %v652
        %v2320 = vld [vmem:[%s602 + $0x4] sm:$0x1]
        %v2321 = vld [vmem:[%s602 + $0x5] sm:$0x1]
        %2322 = vadd.xlane.f32.xlu0 %v2318
        %v2323 = vpop.xlane.xlu0 %2322
        %2324 = vadd.xlane.f32.xlu0 %v2319
        %v2325 = vpop.xlane.xlu0 %2324
        %v2326 = vrcp.pop 128.0
        %v2327 = vmul.f32 %v2323, %v2326
        %v2328 = vmul.f32 %v2325, %v2326
        %v2329 = vsub.f32 %v2318, %v2327
        %v2330 = vsub.f32 %v2319, %v2328
        %v2331 = vmul.f32 %v2329, %v2329
        %v2332 = vmul.f32 %v2330, %v2330
        %2333 = vadd.xlane.f32.xlu0 %v2331
        %v2334 = vpop.xlane.xlu0 %2333
        %2335 = vadd.xlane.f32.xlu0 %v2332
        %v2336 = vpop.xlane.xlu0 %2335
        %v2337 = vmul.f32 %v2334, %v2326
        %v2338 = vmul.f32 %v2336, %v2326
        %v2339 = vadd.f32 %v2337, 1e-12
        %v2340 = vadd.f32 %v2338, 1e-12
        %v2341 = vrsqrt.pop %v2339
        %v2342 = vrsqrt.pop %v2340
        %v2343 = vmul.f32 %v2329, %v2341
        %v2344 = vmul.f32 %v2330, %v2342
        %v2345 = vlaneseq
        %v2346 = vshrl.u32 %v2345, 7
        %v2347 = vsub.s32 0, %v2346
        %v2348 = vrot.slane %v2320, %v2347
        %v2349 = vmul.f32 %v2343, %v2348
        %v2350 = vmul.f32 %v2344, %v2348
        %v2351 = vlaneseq
        %v2352 = vshrl.u32 %v2351, 7
        %v2353 = vsub.s32 0, %v2352
        %v2354 = vrot.slane %v2321, %v2353
        %v2355 = vadd.f32 %v2349, %v2354
        %v2356 = vadd.f32 %v2350, %v2354
        %v2357 = vld [vmem:[%s517] sm:$0xff]
        %v2358 = vld [vmem:[%s517 + $0x8] sm:$0xff]
        %v2359 = vld [vmem:[%s517 + $0x10] sm:$0xff]
        %v2360 = vld [vmem:[%s517 + $0x18] sm:$0xff]
        %v2361 = vld [vmem:[%s517 + $0x20] sm:$0xff]
        %v2362 = vld [vmem:[%s517 + $0x28] sm:$0xff]
        %v2363 = vld [vmem:[%s517 + $0x30] sm:$0xff]
        %v2364 = vld [vmem:[%s517 + $0x38] sm:$0xff]
        %v2365 = vld [vmem:[%s517 + $0x40] sm:$0xff]
        %v2366 = vld [vmem:[%s517 + $0x48] sm:$0xff]
        %v2367 = vld [vmem:[%s517 + $0x50] sm:$0xff]
        %v2368 = vld [vmem:[%s517 + $0x58] sm:$0xff]
        %v2369 = vld [vmem:[%s517 + $0x60] sm:$0xff]
        %v2370 = vld [vmem:[%s517 + $0x68] sm:$0xff]
        %v2371 = vld [vmem:[%s517 + $0x70] sm:$0xff]
        %v2372 = vld [vmem:[%s517 + $0x78] sm:$0xff]
        %v2373 = vld [vmem:[%s517 + $0x80] sm:$0xff]
        %v2374 = vld [vmem:[%s517 + $0x88] sm:$0xff]
        %v2375 = vld [vmem:[%s517 + $0x90] sm:$0xff]
        %v2376 = vld [vmem:[%s517 + $0x98] sm:$0xff]
        %v2377 = vld [vmem:[%s517 + $0xa0] sm:$0xff]
        %v2378 = vld [vmem:[%s517 + $0xa8] sm:$0xff]
        %v2379 = vld [vmem:[%s517 + $0xb0] sm:$0xff]
        %v2380 = vld [vmem:[%s517 + $0xb8] sm:$0xff]
        %v2381 = vld [vmem:[%s517 + $0xc0] sm:$0xff]
        %v2382 = vld [vmem:[%s517 + $0xc8] sm:$0xff]
        %v2383 = vld [vmem:[%s517 + $0xd0] sm:$0xff]
        %v2384 = vld [vmem:[%s517 + $0xd8] sm:$0xff]
        %v2385 = vld [vmem:[%s517 + $0xe0] sm:$0xff]
        %v2386 = vld [vmem:[%s517 + $0xe8] sm:$0xff]
        %v2387 = vld [vmem:[%s517 + $0xf0] sm:$0xff]
        %v2388 = vld [vmem:[%s517 + $0xf8] sm:$0xff]
        %v2389 = vld [vmem:[%s597] sm:$0x3]
        %v2391 = vlaneseq
        %v2392 = vshrl.u32 %v2391, 7
        %v2393 = vsub.s32 0, %v2392
        %v2394 = vrot.slane %v2389, %v2393
        %v2395 = vlaneseq
        %v2396 = vshrl.u32 %v2395, 7
        %v2397 = vsub.s32 1, %v2396
        %v2398 = vrot.slane %v2389, %v2397
        %2401 = vmatprep.subr.mxu0 %v2388
        %2402 = vmatpush1.msra.mxu0 %v2387
        %2403 = vmatprep.subr.mxu0 %v2386
        %2404 = vmatpush1.msra.mxu0 %v2385
        %2405 = vmatprep.subr.mxu0 %v2384
        %2406 = vmatpush1.msra.mxu0 %v2383
        %2407 = vmatprep.subr.mxu0 %v2382
        %2408 = vmatpush1.msra.mxu0 %v2381
        %2409 = vmatprep.subr.mxu0 %v2380
        %2410 = vmatpush1.msra.mxu0 %v2379
        %2411 = vmatprep.subr.mxu0 %v2378
        %2412 = vmatpush1.msra.mxu0 %v2377
        %2413 = vmatprep.subr.mxu0 %v2376
        %2414 = vmatpush1.msra.mxu0 %v2375
        %2415 = vmatprep.subr.mxu0 %v2374
        %2416 = vmatpush1.msra.mxu0 %v2373
        %2417 = vmatprep.subr.mxu0 %v2372
        %2418 = vmatpush1.msra.mxu0 %v2371
        %2419 = vmatprep.subr.mxu0 %v2370
        %2420 = vmatpush1.msra.mxu0 %v2369
        %2421 = vmatprep.subr.mxu0 %v2368
        %2422 = vmatpush1.msra.mxu0 %v2367
        %2423 = vmatprep.subr.mxu0 %v2366
        %2424 = vmatpush1.msra.mxu0 %v2365
        %2425 = vmatprep.subr.mxu0 %v2364
        %2426 = vmatpush1.msra.mxu0 %v2363
        %2427 = vmatprep.subr.mxu0 %v2362
        %2428 = vmatpush1.msra.mxu0 %v2361
        %2429 = vmatprep.subr.mxu0 %v2360
        %2430 = vmatpush1.msra.mxu0 %v2359
        %2431 = vmatprep.subr.mxu0 %v2358
        %2432 = vmatpush1.msra.mxu0 %v2357
        %2433 = vmatprep.subr.mxu0 0.0
        %2434 = vmatpush2.msra.mxu0 0.0
        %2435 = vmatprep.subr.mxu0 0.0
        %2436 = vmatpush2.msra.mxu0 0.0
        %2437 = vmatprep.subr.mxu0 0.0
        %2438 = vmatpush2.msra.mxu0 0.0
        %2439 = vmatprep.subr.mxu0 0.0
        %2440 = vmatpush2.msra.mxu0 0.0
        %2441 = vmatprep.subr.mxu0 0.0
        %2442 = vmatpush2.msra.mxu0 0.0
        %2443 = vmatprep.subr.mxu0 0.0
        %2444 = vmatpush2.msra.mxu0 0.0
        %2445 = vmatprep.subr.mxu0 0.0
        %2446 = vmatpush2.msra.mxu0 0.0
        %2447 = vmatprep.subr.mxu0 0.0
        %2448 = vmatpush2.msra.mxu0 0.0
        %2449 = vmatprep.subr.mxu0 0.0
        %2450 = vmatpush2.msra.mxu0 0.0
        %2451 = vmatprep.subr.mxu0 0.0
        %2452 = vmatpush2.msra.mxu0 0.0
        %2453 = vmatprep.subr.mxu0 0.0
        %2454 = vmatpush2.msra.mxu0 0.0
        %2455 = vmatprep.subr.mxu0 0.0
        %2456 = vmatpush2.msra.mxu0 0.0
        %2457 = vmatprep.subr.mxu0 0.0
        %2458 = vmatpush2.msra.mxu0 0.0
        %2459 = vmatprep.subr.mxu0 0.0
        %2460 = vmatpush2.msra.mxu0 0.0
        %2461 = vmatprep.subr.mxu0 0.0
        %2462 = vmatpush2.msra.mxu0 0.0
        %2463 = vmatprep.subr.mxu0 0.0
        %2464 = vmatpush2.msra.mxu0 0.0
        %2465 = vmatprep.mubr.f32.mxu0 0.0
        %2466 = vmatmul.mubr.f32.gmra.mxu0 %v2355
        %v2467 = vpop.f32.mrf.mxu0
        %v2468 = vadd.f32 %v2394, %v2467
        %v2469 = vpop.f32.mrf.mxu0
        %v2470 = vadd.f32 %v2398, %v2469
        %2471 = vmatprep.mubr.f32.mxu0 0.0
        %2472 = vmatmul.mubr.f32.gmra.mxu0 %v2356
        %v2473 = vpop.f32.mrf.mxu0
        %v2474 = vadd.f32 %v2394, %v2473
        %v2475 = vpop.f32.mrf.mxu0
        %v2476 = vadd.f32 %v2398, %v2475
        %2477 = vdwg.mxu0
        %v2478 = vmul.f32 %v2468, 0.5
        %v2479 = vmul.f32 %v2470, 0.5
        %v2480 = vmul.f32 %v2474, 0.5
        %v2481 = vmul.f32 %v2476, 0.5
        %v2482 = vmul.f32 %v2468, 0.70710677
        %v2483 = vmul.f32 %v2470, 0.70710677
        %v2484 = vmul.f32 %v2474, 0.70710677
        %v2485 = vmul.f32 %v2476, 0.70710677
        %v2486 = vand.u32 2147483647, %v2482
        %v2487 = vand.u32 2147483647, %v2483
        %v2488 = vand.u32 2147483647, %v2484
        %v2489 = vand.u32 2147483647, %v2485
        %v2490 = vmul.f32 %v2486, 0.3275911
        %v2491 = vmul.f32 %v2487, 0.3275911
        %v2492 = vmul.f32 %v2488, 0.3275911
        %v2493 = vmul.f32 %v2489, 0.3275911
        %v2494 = vadd.f32 %v2490, 1.0
        %v2495 = vadd.f32 %v2491, 1.0
        %v2496 = vadd.f32 %v2492, 1.0
        %v2497 = vadd.f32 %v2493, 1.0
        %v2498 = vrcp.pop %v2494
        %v2499 = vrcp.pop %v2495
        %v2500 = vrcp.pop %v2496
        %v2501 = vrcp.pop %v2497
        %v2502 = vmul.f32 %v2498, 1.0614054
        %v2503 = vmul.f32 %v2499, 1.0614054
        %v2504 = vmul.f32 %v2500, 1.0614054
        %v2505 = vmul.f32 %v2501, 1.0614054
        %v2506 = vadd.f32 %v2502, -1.4531521
        %v2507 = vadd.f32 %v2503, -1.4531521
        %v2508 = vadd.f32 %v2504, -1.4531521
        %v2509 = vadd.f32 %v2505, -1.4531521
        %v2510 = vmul.f32 %v2506, %v2498
        %v2511 = vmul.f32 %v2507, %v2499
        %v2512 = vmul.f32 %v2508, %v2500
        %v2513 = vmul.f32 %v2509, %v2501
        %v2514 = vadd.f32 %v2510, 1.4214138
        %v2515 = vadd.f32 %v2511, 1.4214138
        %v2516 = vadd.f32 %v2512, 1.4214138
        %v2517 = vadd.f32 %v2513, 1.4214138
        %v2518 = vmul.f32 %v2514, %v2498
        %v2519 = vmul.f32 %v2515, %v2499
        %v2520 = vmul.f32 %v2516, %v2500
        %v2521 = vmul.f32 %v2517, %v2501
        %v2522 = vadd.f32 %v2518, -0.28449672
        %v2523 = vadd.f32 %v2519, -0.28449672
        %v2524 = vadd.f32 %v2520, -0.28449672
        %v2525 = vadd.f32 %v2521, -0.28449672
        %v2526 = vmul.f32 %v2522, %v2498
        %v2527 = vmul.f32 %v2523, %v2499
        %v2528 = vmul.f32 %v2524, %v2500
        %v2529 = vmul.f32 %v2525, %v2501
        %v2530 = vadd.f32 %v2526, 0.2548296
        %v2531 = vadd.f32 %v2527, 0.2548296
        %v2532 = vadd.f32 %v2528, 0.2548296
        %v2533 = vadd.f32 %v2529, 0.2548296
        %v2534 = vmul.f32 %v2530, %v2498
        %v2535 = vmul.f32 %v2531, %v2499
        %v2536 = vmul.f32 %v2532, %v2500
        %v2537 = vmul.f32 %v2533, %v2501
        %v2538 = vsub.f32 0.0, %v2486
        %v2539 = vsub.f32 0.0, %v2487
        %v2540 = vsub.f32 0.0, %v2488
        %v2541 = vsub.f32 0.0, %v2489
        %v2542 = vmul.f32 %v2538, %v2486
        %v2543 = vmul.f32 %v2539, %v2487
        %v2544 = vmul.f32 %v2540, %v2488
        %v2545 = vmul.f32 %v2541, %v2489
        %v2546 = vmul.f32 %v2542, 1.442695
        %v2547 = vpow.pop %v2546
        %v2548 = vmul.f32 %v2543, 1.442695
        %v2549 = vpow.pop %v2548
        %v2550 = vmul.f32 %v2544, 1.442695
        %v2551 = vpow.pop %v2550
        %v2552 = vmul.f32 %v2545, 1.442695
        %v2553 = vpow.pop %v2552
        %v2554 = vmul.f32 %v2534, %v2547
        %v2555 = vmul.f32 %v2535, %v2549
        %v2556 = vmul.f32 %v2536, %v2551
        %v2557 = vmul.f32 %v2537, %v2553
        %v2558 = vsub.f32 1.0, %v2554
        %v2559 = vsub.f32 1.0, %v2555
        %v2560 = vsub.f32 1.0, %v2556
        %v2561 = vsub.f32 1.0, %v2557
        %vm2562 = vcmp.ge.f32.partialorder %v2482, 0.0
        %vm2563 = vcmp.ge.f32.partialorder %v2483, 0.0
        %vm2564 = vcmp.ge.f32.partialorder %v2484, 0.0
        %vm2565 = vcmp.ge.f32.partialorder %v2485, 0.0
        %v2566 = vsub.f32 0.0, %v2558
        %v2567 = vsub.f32 0.0, %v2559
        %v2568 = vsub.f32 0.0, %v2560
        %v2569 = vsub.f32 0.0, %v2561
        %v2570 = vsel %vm2562, %v2558, %v2566
        %v2571 = vsel %vm2563, %v2559, %v2567
        %v2572 = vsel %vm2564, %v2560, %v2568
        %v2573 = vsel %vm2565, %v2561, %v2569
        %v2574 = vadd.f32 %v2570, 1.0
        %v2575 = vadd.f32 %v2571, 1.0
        %v2576 = vadd.f32 %v2572, 1.0
        %v2577 = vadd.f32 %v2573, 1.0
        %v2578 = vmul.f32 %v2478, %v2574
        %v2579 = vmul.f32 %v2479, %v2575
        %v2580 = vmul.f32 %v2480, %v2576
        %v2581 = vmul.f32 %v2481, %v2577
        %v2582 = vld [vmem:[%s526] sm:$0xff]
        %v2583 = vld [vmem:[%s526 + $0x8] sm:$0xff]
        %v2584 = vld [vmem:[%s526 + $0x10] sm:$0xff]
        %v2585 = vld [vmem:[%s526 + $0x18] sm:$0xff]
        %v2586 = vld [vmem:[%s526 + $0x20] sm:$0xff]
        %v2587 = vld [vmem:[%s526 + $0x28] sm:$0xff]
        %v2588 = vld [vmem:[%s526 + $0x30] sm:$0xff]
        %v2589 = vld [vmem:[%s526 + $0x38] sm:$0xff]
        %v2590 = vld [vmem:[%s526 + $0x40] sm:$0xff]
        %v2591 = vld [vmem:[%s526 + $0x48] sm:$0xff]
        %v2592 = vld [vmem:[%s526 + $0x50] sm:$0xff]
        %v2593 = vld [vmem:[%s526 + $0x58] sm:$0xff]
        %v2594 = vld [vmem:[%s526 + $0x60] sm:$0xff]
        %v2595 = vld [vmem:[%s526 + $0x68] sm:$0xff]
        %v2596 = vld [vmem:[%s526 + $0x70] sm:$0xff]
        %v2597 = vld [vmem:[%s526 + $0x78] sm:$0xff]
        %v2598 = vld [vmem:[%s526 + $0x80] sm:$0xff]
        %v2599 = vld [vmem:[%s526 + $0x88] sm:$0xff]
        %v2600 = vld [vmem:[%s526 + $0x90] sm:$0xff]
        %v2601 = vld [vmem:[%s526 + $0x98] sm:$0xff]
        %v2602 = vld [vmem:[%s526 + $0xa0] sm:$0xff]
        %v2603 = vld [vmem:[%s526 + $0xa8] sm:$0xff]
        %v2604 = vld [vmem:[%s526 + $0xb0] sm:$0xff]
        %v2605 = vld [vmem:[%s526 + $0xb8] sm:$0xff]
        %v2606 = vld [vmem:[%s526 + $0xc0] sm:$0xff]
        %v2607 = vld [vmem:[%s526 + $0xc8] sm:$0xff]
        %v2608 = vld [vmem:[%s526 + $0xd0] sm:$0xff]
        %v2609 = vld [vmem:[%s526 + $0xd8] sm:$0xff]
        %v2610 = vld [vmem:[%s526 + $0xe0] sm:$0xff]
        %v2611 = vld [vmem:[%s526 + $0xe8] sm:$0xff]
        %v2612 = vld [vmem:[%s526 + $0xf0] sm:$0xff]
        %v2613 = vld [vmem:[%s526 + $0xf8] sm:$0xff]
        %v2614 = vld [vmem:[%s602 + $0x6] sm:$0x1]
        %v2615 = vlaneseq
        %v2616 = vshrl.u32 %v2615, 7
        %v2617 = vsub.s32 0, %v2616
        %v2618 = vrot.slane %v2614, %v2617
        %2619 = vmatprep.subr.mxu0 0.0
        %2620 = vmatpush1.msra.mxu0 %v2597
        %2621 = vmatprep.subr.mxu0 0.0
        %2622 = vmatpush1.msra.mxu0 %v2596
        %2623 = vmatprep.subr.mxu0 0.0
        %2624 = vmatpush1.msra.mxu0 %v2595
        %2625 = vmatprep.subr.mxu0 0.0
        %2626 = vmatpush1.msra.mxu0 %v2594
        %2627 = vmatprep.subr.mxu0 0.0
        %2628 = vmatpush1.msra.mxu0 %v2593
        %2629 = vmatprep.subr.mxu0 0.0
        %2630 = vmatpush1.msra.mxu0 %v2592
        %2631 = vmatprep.subr.mxu0 0.0
        %2632 = vmatpush1.msra.mxu0 %v2591
        %2633 = vmatprep.subr.mxu0 0.0
        %2634 = vmatpush1.msra.mxu0 %v2590
        %2635 = vmatprep.subr.mxu0 0.0
        %2636 = vmatpush1.msra.mxu0 %v2589
        %2637 = vmatprep.subr.mxu0 0.0
        %2638 = vmatpush1.msra.mxu0 %v2588
        %2639 = vmatprep.subr.mxu0 0.0
        %2640 = vmatpush1.msra.mxu0 %v2587
        %2641 = vmatprep.subr.mxu0 0.0
        %2642 = vmatpush1.msra.mxu0 %v2586
        %2643 = vmatprep.subr.mxu0 0.0
        %2644 = vmatpush1.msra.mxu0 %v2585
        %2645 = vmatprep.subr.mxu0 0.0
        %2646 = vmatpush1.msra.mxu0 %v2584
        %2647 = vmatprep.subr.mxu0 0.0
        %2648 = vmatpush1.msra.mxu0 %v2583
        %2649 = vmatprep.subr.mxu0 0.0
        %2650 = vmatpush1.msra.mxu0 %v2582
        %2651 = vmatprep.subr.mxu0 0.0
        %2652 = vmatpush2.msra.mxu0 %v2613
        %2653 = vmatprep.subr.mxu0 0.0
        %2654 = vmatpush2.msra.mxu0 %v2612
        %2655 = vmatprep.subr.mxu0 0.0
        %2656 = vmatpush2.msra.mxu0 %v2611
        %2657 = vmatprep.subr.mxu0 0.0
        %2658 = vmatpush2.msra.mxu0 %v2610
        %2659 = vmatprep.subr.mxu0 0.0
        %2660 = vmatpush2.msra.mxu0 %v2609
        %2661 = vmatprep.subr.mxu0 0.0
        %2662 = vmatpush2.msra.mxu0 %v2608
        %2663 = vmatprep.subr.mxu0 0.0
        %2664 = vmatpush2.msra.mxu0 %v2607
        %2665 = vmatprep.subr.mxu0 0.0
        %2666 = vmatpush2.msra.mxu0 %v2606
        %2667 = vmatprep.subr.mxu0 0.0
        %2668 = vmatpush2.msra.mxu0 %v2605
        %2669 = vmatprep.subr.mxu0 0.0
        %2670 = vmatpush2.msra.mxu0 %v2604
        %2671 = vmatprep.subr.mxu0 0.0
        %2672 = vmatpush2.msra.mxu0 %v2603
        %2673 = vmatprep.subr.mxu0 0.0
        %2674 = vmatpush2.msra.mxu0 %v2602
        %2675 = vmatprep.subr.mxu0 0.0
        %2676 = vmatpush2.msra.mxu0 %v2601
        %2677 = vmatprep.subr.mxu0 0.0
        %2678 = vmatpush2.msra.mxu0 %v2600
        %2679 = vmatprep.subr.mxu0 0.0
        %2680 = vmatpush2.msra.mxu0 %v2599
        %2681 = vmatprep.subr.mxu0 0.0
        %2682 = vmatpush2.msra.mxu0 %v2598
        %2683 = vmatprep.mubr.f32.mxu0 %v2579
        %2684 = vmatmul.mubr.f32.gmra.mxu0 %v2578
        %v2685 = vpop.f32.mrf.mxu0
        %v2686 = vadd.f32 %v2618, %v2685
        %v2687 = vpop.f32.mrf.mxu0
        %2688 = vmatprep.mubr.f32.mxu0 %v2581
        %2689 = vmatmul.mubr.f32.gmra.mxu0 %v2580
        %v2690 = vpop.f32.mrf.mxu0
        %v2691 = vadd.f32 %v2618, %v2690
        %v2692 = vpop.f32.mrf.mxu0
        %2693 = vdwg.mxu0
        %v2694 = vadd.f32 %v2686, %v2355
        %v2695 = vadd.f32 %v2691, %v2356
        %v2696 = vld [vmem:[%s602 + $0x7] sm:$0x1]
        %v2697 = vld [vmem:[%s602 + $0x8] sm:$0x1]
        %2698 = vadd.xlane.f32.xlu0 %v2694
        %v2699 = vpop.xlane.xlu0 %2698
        %2700 = vadd.xlane.f32.xlu0 %v2695
        %v2701 = vpop.xlane.xlu0 %2700
        %v2702 = vmul.f32 %v2699, %v2326
        %v2703 = vmul.f32 %v2701, %v2326
        %v2704 = vsub.f32 %v2694, %v2702
        %v2705 = vsub.f32 %v2695, %v2703
        %v2706 = vmul.f32 %v2704, %v2704
        %v2707 = vmul.f32 %v2705, %v2705
        %2708 = vadd.xlane.f32.xlu0 %v2706
        %v2709 = vpop.xlane.xlu0 %2708
        %2710 = vadd.xlane.f32.xlu0 %v2707
        %v2711 = vpop.xlane.xlu0 %2710
        %v2712 = vmul.f32 %v2709, %v2326
        %v2713 = vmul.f32 %v2711, %v2326
        %v2714 = vadd.f32 %v2712, 1e-12
        %v2715 = vadd.f32 %v2713, 1e-12
        %v2716 = vrsqrt.pop %v2714
        %v2717 = vrsqrt.pop %v2715
        %v2718 = vmul.f32 %v2704, %v2716
        %v2719 = vmul.f32 %v2705, %v2717
        %v2720 = vlaneseq
        %v2721 = vshrl.u32 %v2720, 7
        %v2722 = vsub.s32 0, %v2721
        %v2723 = vrot.slane %v2696, %v2722
        %v2724 = vmul.f32 %v2718, %v2723
        %v2725 = vmul.f32 %v2719, %v2723
        %v2726 = vlaneseq
        %v2727 = vshrl.u32 %v2726, 7
        %v2728 = vsub.s32 0, %v2727
        %v2729 = vrot.slane %v2697, %v2728
        %v2730 = vadd.f32 %v2724, %v2729
        %v2731 = vadd.f32 %v2725, %v2729
        %2732 = vst [vmem:[#allocation2] sm:$0xff] %v2730
        %2733 = vst [vmem:[#allocation2 + $0x8] sm:$0xff] %v2731
        %p2734 = scmp.eq.s32.totalorder %s34, 1
        // Predicated region
        $region97: #{tpu_custom_call.1} parent=67 // pred_check
          %p2735 = pneg %p2734
        $region98: #{tpu_custom_call.1} parent=67 // pred_check_branch
          %2737 = sbr.rel (%p2735) target = $region100
        $region99: #{tpu_custom_call.1} parent=67 // pred_region
          %v2738 = vld [vmem:[#allocation11] sm:$0xff]
          %v2739 = vld [vmem:[#allocation11 + $0x8] sm:$0xff]
          %v2740 = vld [vmem:[#allocation11 + $0x10] sm:$0xff]
          %v2741 = vld [vmem:[#allocation11 + $0x18] sm:$0xff]
          %v2742 = vld [vmem:[#allocation11 + $0x20] sm:$0xff]
          %v2743 = vld [vmem:[#allocation11 + $0x28] sm:$0xff]
          %v2744 = vld [vmem:[#allocation11 + $0x30] sm:$0xff]
          %v2745 = vld [vmem:[#allocation11 + $0x38] sm:$0xff]
          %v2746 = vld [vmem:[#allocation11 + $0x40] sm:$0xff]
          %v2747 = vld [vmem:[#allocation11 + $0x48] sm:$0xff]
          %v2748 = vld [vmem:[#allocation11 + $0x50] sm:$0xff]
          %v2749 = vld [vmem:[#allocation11 + $0x58] sm:$0xff]
          %v2750 = vld [vmem:[#allocation11 + $0x60] sm:$0xff]
          %v2751 = vld [vmem:[#allocation11 + $0x68] sm:$0xff]
          %v2752 = vld [vmem:[#allocation11 + $0x70] sm:$0xff]
          %v2753 = vld [vmem:[#allocation11 + $0x78] sm:$0xff]
          %v2754 = vld [vmem:[%s2 + $0x2] sm:$0x1]
          %v2755 = vlaneseq
          %v2756 = vshrl.u32 %v2755, 7
          %v2757 = vsub.s32 0, %v2756
          %v2758 = vrot.slane %v2754, %v2757
          %v2761 = vrot.slane %v2731, 7
          %vm2762 = vcmask 1041409
          %v2763 = vsel %vm2762, %v2761, %v2730
          %2765 = vmatprep.subr.mxu0 0.0
          %2766 = vmatpush1.msra.mxu0 %v2753
          %2767 = vmatprep.subr.mxu0 0.0
          %2768 = vmatpush1.msra.mxu0 %v2752
          %2769 = vmatprep.subr.mxu0 0.0
          %2770 = vmatpush1.msra.mxu0 %v2751
          %2771 = vmatprep.subr.mxu0 0.0
          %2772 = vmatpush1.msra.mxu0 %v2750
          %2773 = vmatprep.subr.mxu0 0.0
          %2774 = vmatpush1.msra.mxu0 %v2749
          %2775 = vmatprep.subr.mxu0 0.0
          %2776 = vmatpush1.msra.mxu0 %v2748
          %2777 = vmatprep.subr.mxu0 0.0
          %2778 = vmatpush1.msra.mxu0 %v2747
          %2779 = vmatprep.subr.mxu0 0.0
          %2780 = vmatpush1.msra.mxu0 %v2746
          %2781 = vmatprep.subr.mxu0 0.0
          %2782 = vmatpush1.msra.mxu0 %v2745
          %2783 = vmatprep.subr.mxu0 0.0
          %2784 = vmatpush1.msra.mxu0 %v2744
          %2785 = vmatprep.subr.mxu0 0.0
          %2786 = vmatpush1.msra.mxu0 %v2743
          %2787 = vmatprep.subr.mxu0 0.0
          %2788 = vmatpush1.msra.mxu0 %v2742
          %2789 = vmatprep.subr.mxu0 0.0
          %2790 = vmatpush1.msra.mxu0 %v2741
          %2791 = vmatprep.subr.mxu0 0.0
          %2792 = vmatpush1.msra.mxu0 %v2740
          %2793 = vmatprep.subr.mxu0 0.0
          %2794 = vmatpush1.msra.mxu0 %v2739
          %2795 = vmatprep.subr.mxu0 0.0
          %2796 = vmatpush1.msra.mxu0 %v2738
          %2797 = vmatprep.subr.mxu0 0.0
          %2798 = vmatpush2.msra.mxu0 0.0
          %2799 = vmatprep.subr.mxu0 0.0
          %2800 = vmatpush2.msra.mxu0 0.0
          %2801 = vmatprep.subr.mxu0 0.0
          %2802 = vmatpush2.msra.mxu0 0.0
          %2803 = vmatprep.subr.mxu0 0.0
          %2804 = vmatpush2.msra.mxu0 0.0
          %2805 = vmatprep.subr.mxu0 0.0
          %2806 = vmatpush2.msra.mxu0 0.0
          %2807 = vmatprep.subr.mxu0 0.0
          %2808 = vmatpush2.msra.mxu0 0.0
          %2809 = vmatprep.subr.mxu0 0.0
          %2810 = vmatpush2.msra.mxu0 0.0
          %2811 = vmatprep.subr.mxu0 0.0
          %2812 = vmatpush2.msra.mxu0 0.0
          %2813 = vmatprep.subr.mxu0 0.0
          %2814 = vmatpush2.msra.mxu0 0.0
          %2815 = vmatprep.subr.mxu0 0.0
          %2816 = vmatpush2.msra.mxu0 0.0
          %2817 = vmatprep.subr.mxu0 0.0
          %2818 = vmatpush2.msra.mxu0 0.0
          %2819 = vmatprep.subr.mxu0 0.0
          %2820 = vmatpush2.msra.mxu0 0.0
          %2821 = vmatprep.subr.mxu0 0.0
          %2822 = vmatpush2.msra.mxu0 0.0
          %2823 = vmatprep.subr.mxu0 0.0
          %2824 = vmatpush2.msra.mxu0 0.0
          %2825 = vmatprep.subr.mxu0 0.0
          %2826 = vmatpush2.msra.mxu0 0.0
          %2827 = vmatprep.subr.mxu0 0.0
          %2828 = vmatpush2.msra.mxu0 0.0
          %2829 = vmatprep.mubr.f32.mxu0 0.0
          %2830 = vmatmul.mubr.f32.gmra.mxu0 %v2763
          %v2831 = vpop.f32.mrf.mxu0
          %v2832 = vadd.f32 %v2758, %v2831
          %v2833 = vpop.f32.mrf.mxu0
          %2834 = vdwg.mxu0
          %v2835 = vmax.f32 %v2832, 0.0
          %v2836 = vld [vmem:[#allocation12] sm:$0xff]
          %v2837 = vld [vmem:[#allocation12 + $0x8] sm:$0xff]
          %v2838 = vld [vmem:[#allocation12 + $0x10] sm:$0xff]
          %v2839 = vld [vmem:[#allocation12 + $0x18] sm:$0xff]
          %v2840 = vld [vmem:[#allocation12 + $0x20] sm:$0xff]
          %v2841 = vld [vmem:[#allocation12 + $0x28] sm:$0xff]
          %v2842 = vld [vmem:[#allocation12 + $0x30] sm:$0xff]
          %v2843 = vld [vmem:[#allocation12 + $0x38] sm:$0xff]
          %v2844 = vld [vmem:[#allocation12 + $0x40] sm:$0xff]
          %v2845 = vld [vmem:[#allocation12 + $0x48] sm:$0xff]
          %v2846 = vld [vmem:[#allocation12 + $0x50] sm:$0xff]
          %v2847 = vld [vmem:[#allocation12 + $0x58] sm:$0xff]
          %v2848 = vld [vmem:[#allocation12 + $0x60] sm:$0xff]
          %v2849 = vld [vmem:[#allocation12 + $0x68] sm:$0xff]
          %v2850 = vld [vmem:[#allocation12 + $0x70] sm:$0xff]
          %v2851 = vld [vmem:[#allocation12 + $0x78] sm:$0xff]
          %v2852 = vld [vmem:[%s11] sm:$0x1]
          %v2854 = vlaneseq
          %v2855 = vshrl.u32 %v2854, 7
          %v2856 = vsub.s32 0, %v2855
          %v2857 = vrot.slane %v2852, %v2856
          %2859 = vmatprep.subr.mxu0 0.0
          %2860 = vmatpush1.msra.mxu0 %v2851
          %2861 = vmatprep.subr.mxu0 0.0
          %2862 = vmatpush1.msra.mxu0 %v2850
          %2863 = vmatprep.subr.mxu0 0.0
          %2864 = vmatpush1.msra.mxu0 %v2849
          %2865 = vmatprep.subr.mxu0 0.0
          %2866 = vmatpush1.msra.mxu0 %v2848
          %2867 = vmatprep.subr.mxu0 0.0
          %2868 = vmatpush1.msra.mxu0 %v2847
          %2869 = vmatprep.subr.mxu0 0.0
          %2870 = vmatpush1.msra.mxu0 %v2846
          %2871 = vmatprep.subr.mxu0 0.0
          %2872 = vmatpush1.msra.mxu0 %v2845
          %2873 = vmatprep.subr.mxu0 0.0
          %2874 = vmatpush1.msra.mxu0 %v2844
          %2875 = vmatprep.subr.mxu0 0.0
          %2876 = vmatpush1.msra.mxu0 %v2843
          %2877 = vmatprep.subr.mxu0 0.0
          %2878 = vmatpush1.msra.mxu0 %v2842
          %2879 = vmatprep.subr.mxu0 0.0
          %2880 = vmatpush1.msra.mxu0 %v2841
          %2881 = vmatprep.subr.mxu0 0.0
          %2882 = vmatpush1.msra.mxu0 %v2840
          %2883 = vmatprep.subr.mxu0 0.0
          %2884 = vmatpush1.msra.mxu0 %v2839
          %2885 = vmatprep.subr.mxu0 0.0
          %2886 = vmatpush1.msra.mxu0 %v2838
          %2887 = vmatprep.subr.mxu0 0.0
          %2888 = vmatpush1.msra.mxu0 %v2837
          %2889 = vmatprep.subr.mxu0 0.0
          %2890 = vmatpush1.msra.mxu0 %v2836
          %2891 = vmatprep.subr.mxu0 0.0
          %2892 = vmatpush2.msra.mxu0 0.0
          %2893 = vmatprep.subr.mxu0 0.0
          %2894 = vmatpush2.msra.mxu0 0.0
          %2895 = vmatprep.subr.mxu0 0.0
          %2896 = vmatpush2.msra.mxu0 0.0
          %2897 = vmatprep.subr.mxu0 0.0
          %2898 = vmatpush2.msra.mxu0 0.0
          %2899 = vmatprep.subr.mxu0 0.0
          %2900 = vmatpush2.msra.mxu0 0.0
          %2901 = vmatprep.subr.mxu0 0.0
          %2902 = vmatpush2.msra.mxu0 0.0
          %2903 = vmatprep.subr.mxu0 0.0
          %2904 = vmatpush2.msra.mxu0 0.0
          %2905 = vmatprep.subr.mxu0 0.0
          %2906 = vmatpush2.msra.mxu0 0.0
          %2907 = vmatprep.subr.mxu0 0.0
          %2908 = vmatpush2.msra.mxu0 0.0
          %2909 = vmatprep.subr.mxu0 0.0
          %2910 = vmatpush2.msra.mxu0 0.0
          %2911 = vmatprep.subr.mxu0 0.0
          %2912 = vmatpush2.msra.mxu0 0.0
          %2913 = vmatprep.subr.mxu0 0.0
          %2914 = vmatpush2.msra.mxu0 0.0
          %2915 = vmatprep.subr.mxu0 0.0
          %2916 = vmatpush2.msra.mxu0 0.0
          %2917 = vmatprep.subr.mxu0 0.0
          %2918 = vmatpush2.msra.mxu0 0.0
          %2919 = vmatprep.subr.mxu0 0.0
          %2920 = vmatpush2.msra.mxu0 0.0
          %2921 = vmatprep.subr.mxu0 0.0
          %2922 = vmatpush2.msra.mxu0 0.0
          %2923 = vmatprep.mubr.f32.mxu0 0.0
          %2924 = vmatmul.mubr.f32.gmra.mxu0 %v2835
          %v2925 = vpop.f32.mrf.mxu0
          %v2926 = vadd.f32 %v2857, %v2925
          %v2927 = vpop.f32.mrf.mxu0
          %2928 = vdwg.mxu0
          %2929 = vst [vmem:[#allocation14] sm:$0x3] %v2926
        $region100: #{tpu_custom_call.1} parent=67 // pred_fallthru
          _
        // Predicated region
        $region101: #{tpu_custom_call.1} parent=67 // pred_check
          %p2930 = pneg %p329
        $region102: #{tpu_custom_call.1} parent=67 // pred_check_branch
          %2932 = sbr.rel (%p2930) target = $region104
        $region103: #{tpu_custom_call.1} parent=67 // pred_region
          %s2934 = ssub.s32 32, 32
          %2935 = vsyncadd [#allocation5], %s2934
          %s2937 = sshll.u32 [#allocation14], 4
          %s2938 = int_to_ptr.vmem [resolvable:$true] %s2937
          %2940 = dma.vmem_to_hbm [thread:$0]  %s2938, 32, %s12, [#allocation5]
        $region104: #{tpu_custom_call.1} parent=67 // pred_fallthru
          _
        // Predicated region
        $region105: #{tpu_custom_call.1} parent=67 // pred_check
          %p2941 = pneg %p329
        $region106: #{tpu_custom_call.1} parent=67 // pred_check_branch
          %2943 = sbr.rel (%p2941) target = $region108
        $region107: #{tpu_custom_call.1} parent=67 // pred_region
          %2944 = dma.done [#allocation5], 32
        $region108: #{tpu_custom_call.1} parent=67 // pred_fallthru
          _
      $region68: #{tpu_custom_call.1} parent=5 // pred_fallthru
        _
      %p2945 = scmp.le.s32.totalorder 2, %s29
      // Predicated region
      $region109: #{tpu_custom_call.1} parent=5 // pred_check
        %p2946 = pneg %p2945
      $region110: #{tpu_custom_call.1} parent=5 // pred_check_branch
        %2948 = sbr.rel (%p2946) target = $region112
      $region111: #{tpu_custom_call.1} parent=5 // pred_region
        %s2949 = ssub.s32 %s29, 2
      $region112: #{tpu_custom_call.1} parent=5 // pred_fallthru
        _
    $region6: #{tpu_custom_call.1} parent=1 // loop_footer
      %s33 = sadd.s32 1, %s29
    $region7: #{tpu_custom_call.1} parent=1 // loop_footer_branch
      %28 = sbr.rel target = $region3
    $region8: #{tpu_custom_call.1} parent=1 // loop_exit
      _
    %2950 = vsyncpa [#allocation4], 1
    %s2951 = scalar_lea.sflag [#allocation4], 1
    %2952 = vsyncpa %s2951, 1
    %2953 = vsyncpa [#allocation7], 1
    %s2954 = scalar_lea.sflag [#allocation7], 1
    %2955 = vsyncpa %s2954, 1
    %2956 = vsyncpa [#allocation10], 1
    %s2957 = scalar_lea.sflag [#allocation10], 1
    %2958 = vsyncpa %s2957, 1
    %2959 = vsyncpa [#allocation13], 1
    %2960 = vsyncpa [#allocation5], 1
    %s2961 = scalar_lea.sflag [#allocation5], 1
    %2962 = vsyncpa %s2961, 1

</llo_original>
